<compile_context>
chip_gen: v7x
topology: tpu7x:2x2x1
jax: 0.10.0
libtpu: 0.0.40
codegen_flags: <defaults>
</compile_context>

<pallas_src>
import jax
import jax.numpy as jnp
import numpy as np
from jax.experimental import pallas as pl
from jax.experimental.pallas import tpu as pltpu

EPS = 1e-5
VMEM_LIMIT = 32 * 1024 * 1024   # explicit scoped-VMEM limit; safe on v5e/v6e/v7x
LPAD = 8                        # sublane-aligned left pad inside the 3x3 halo scratch

# MXU input dtype. jnp.bfloat16 gives 2-3x matmul throughput on v6e/v7x (accumulation
# stays f32); kept f32 here so the result matches the f32 reference to tight tolerance
# on every generation.  # TODO(synk): flip to bfloat16 for production on v6e/v7x.
MXU_DTYPE = jnp.float32


# ---------------------------------------------------------------------------
# Kernel 1: per-tile partial per-channel sum / sum-of-squares of x (BN1 stats).
# Each grid step writes an (8, C) block whose first row holds the partials
# (rows 1..7 are zero) so the out block satisfies the (8, 128)/full-dim rule
# while the grid axis stays "parallel" (megacore-friendly on v7x).
# ---------------------------------------------------------------------------
def x_stats_kernel(x_ref, psum_ref, psq_ref):
    x = x_ref[...]                                         # (TM, C)
    C = x.shape[-1]
    s = jnp.sum(x, axis=0, keepdims=True)                  # (1, C)
    q = jnp.sum(x * x, axis=0, keepdims=True)              # (1, C)
    z = jnp.zeros((7, C), jnp.float32)
    psum_ref[...] = jnp.concatenate([s, z], axis=0)        # (8, C)
    psq_ref[...] = jnp.concatenate([q, z], axis=0)


# ---------------------------------------------------------------------------
# Kernel 2: BN1 (pre-folded affine) + ReLU + 1x1 conv (MXU matmul), fused with
# BN2 partial statistics of the conv output (removes the extra HBM pass over h2).
# ---------------------------------------------------------------------------
def bn_relu_conv1x1_stats_kernel(x_ref, s_ref, b_ref, w_ref,
                                 h_ref, psum_ref, psq_ref):
    y = jnp.maximum(x_ref[...] * s_ref[...] + b_ref[...], 0.0)        # (TM, C)
    h = jnp.dot(y.astype(MXU_DTYPE), w_ref[...].astype(MXU_DTYPE),
                preferred_element_type=jnp.float32)                    # (TM, IC)
    h_ref[...] = h
    IC = h.shape[-1]
    s = jnp.sum(h, axis=0, keepdims=True)
    q = jnp.sum(h * h, axis=0, keepdims=True)
    z = jnp.zeros((7, IC), jnp.float32)
    psum_ref[...] = jnp.concatenate([s, z], axis=0)                    # (8, IC)
    psq_ref[...] = jnp.concatenate([q, z], axis=0)


# ---------------------------------------------------------------------------
# Kernel 3: BN2 (pre-folded affine) + ReLU + 3x3 conv (padding=1) as a single
# im2col matmul per image, with the channel concat fused into the store:
#   out[..., :C] = x,  out[..., C:] = conv3x3(relu(bn2(h)))
# Halo handling: zero-filled VMEM scratch (no HBM pad); data is written at a
# sublane-aligned column offset so the store is aligned and the 9 shifted tap
# reads are cheap unaligned loads.
# ---------------------------------------------------------------------------
def bn_relu_conv3x3_concat_kernel(h_ref, x_ref, s_ref, b_ref, w_ref,
                                  o_ref, apad_ref):
    H, W, IC = h_ref.shape[1], h_ref.shape[2], h_ref.shape[3]
    s = s_ref[...].reshape(1, 1, IC)
    b = b_ref[...].reshape(1, 1, IC)
    a = jnp.maximum(h_ref[0] * s + b, 0.0)                 # BN2 + ReLU, (H, W, IC)

    # zero-padded halo scratch; interior stored at sublane-aligned column LPAD
    apad_ref[...] = jnp.zeros_like(apad_ref)
    apad_ref[1:H + 1, LPAD:LPAD + W, :] = a

    # im2col: 9 shifted taps concatenated along lanes -> one big MXU matmul
    taps = [apad_ref[dy:dy + H, LPAD - 1 + dx:LPAD - 1 + dx + W, :]
            for dy in range(3) for dx in range(3)]
    cols = jnp.concatenate(taps, axis=-1).reshape(H * W, 9 * IC)
    res = jnp.dot(cols.astype(MXU_DTYPE), w_ref[...].astype(MXU_DTYPE),
                  preferred_element_type=jnp.float32)       # (H*W, G)

    # fused concat with x -> lane-dense (H*W, C+G) store
    o_ref[0] = jnp.concatenate([x_ref[0], res], axis=-1)


# ---------------------------------------------------------------------------
# Wrapper.
# ---------------------------------------------------------------------------
def _pick_tile_m(M, cap):
    """Largest multiple-of-8 divisor of M that is <= cap (or M itself)."""
    if M <= cap:
        return M
    t = cap - (cap % 8)
    for cand in range(t, 7, -8):
        if M % cand == 0:
            return cand
    return M


def bottleneck_forward(x_nchw, params, tile_m=2048):
    N, C, H, W = x_nchw.shape
    IC = params["w1"].shape[-1]
    G = params["w2"].shape[-1]
    M = N * H * W

    x = jnp.transpose(x_nchw, (0, 2, 3, 1)).astype(jnp.float32)   # NHWC
    x2 = x.reshape(M, C)

    TM = _pick_tile_m(M, tile_m)
    nT = M // TM
    cparams = pltpu.CompilerParams(dimension_semantics=("parallel",),
                                   vmem_limit_bytes=VMEM_LIMIT)

    # --- K1: partial per-channel sum / sumsq of x (BN1 batch stats) --------
    psum1, psq1 = pl.pallas_call(
        x_stats_kernel,
        out_shape=(jax.ShapeDtypeStruct((8 * nT, C), jnp.float32),
                   jax.ShapeDtypeStruct((8 * nT, C), jnp.float32)),
        grid=(nT,),
        in_specs=[pl.BlockSpec((TM, C), lambda i: (i, 0))],
        out_specs=(pl.BlockSpec((8, C), lambda i: (i, 0)),
                   pl.BlockSpec((8, C), lambda i: (i, 0))),
        compiler_params=cparams,
    )(x2)

    mean1 = jnp.sum(psum1, axis=0) / M
    var1 = jnp.maximum(jnp.sum(psq1, axis=0) / M - mean1 * mean1, 0.0)
    scale1 = params["gamma1"] * jax.lax.rsqrt(var1 + EPS)
    shift1 = params["beta1"] - mean1 * scale1

    # --- K2: BN1(affine)+ReLU + 1x1 conv + BN2 partial stats (fused) -------
    h2, psum2, psq2 = pl.pallas_call(
        bn_relu_conv1x1_stats_kernel,
        out_shape=(jax.ShapeDtypeStruct((M, IC), jnp.float32),
                   jax.ShapeDtypeStruct((8 * nT, IC), jnp.float32),
                   jax.ShapeDtypeStruct((8 * nT, IC), jnp.float32)),
        grid=(nT,),
        in_specs=[pl.BlockSpec((TM, C), lambda i: (i, 0)),
                  pl.BlockSpec((1, C), lambda i: (0, 0)),
                  pl.BlockSpec((1, C), lambda i: (0, 0)),
                  pl.BlockSpec((C, IC), lambda i: (0, 0))],
        out_specs=(pl.BlockSpec((TM, IC), lambda i: (i, 0)),
                   pl.BlockSpec((8, IC), lambda i: (i, 0)),
                   pl.BlockSpec((8, IC), lambda i: (i, 0))),
        compiler_params=cparams,
    )(x2, scale1.reshape(1, C), shift1.reshape(1, C), params["w1"])

    mean2 = jnp.sum(psum2, axis=0) / M
    var2 = jnp.maximum(jnp.sum(psq2, axis=0) / M - mean2 * mean2, 0.0)
    scale2 = params["gamma2"] * jax.lax.rsqrt(var2 + EPS)
    shift2 = params["beta2"] - mean2 * scale2

    # --- K3: BN2(affine)+ReLU + 3x3 conv (im2col) + fused concat -----------
    h = h2.reshape(N, H, W, IC)
    x_flat = x.reshape(N, H * W, C)
    w2_flat = params["w2"].reshape(9 * IC, G)     # HWIO -> (9*IC, G), tap-major order

    out = pl.pallas_call(
        bn_relu_conv3x3_concat_kernel,
        out_shape=jax.ShapeDtypeStruct((N, H * W, C + G), jnp.float32),
        grid=(N,),
        in_specs=[pl.BlockSpec((1, H, W, IC), lambda n: (n, 0, 0, 0)),
                  pl.BlockSpec((1, H * W, C), lambda n: (n, 0, 0)),
                  pl.BlockSpec((1, IC), lambda n: (0, 0)),
                  pl.BlockSpec((1, IC), lambda n: (0, 0)),
                  pl.BlockSpec((9 * IC, G), lambda n: (0, 0))],
        out_specs=pl.BlockSpec((1, H * W, C + G), lambda n: (n, 0, 0)),
        scratch_shapes=[pltpu.VMEM((H + 2, W + 2 * LPAD, IC), jnp.float32)],
        compiler_params=cparams,
    )(h, x_flat, scale2.reshape(1, IC), shift2.reshape(1, IC), w2_flat)

    return jnp.transpose(out.reshape(N, H, W, C + G), (0, 3, 1, 2))


# ---------------------------------------------------------------------------
# Pure-JAX reference (for correctness check).
# ---------------------------------------------------------------------------
def reference_forward(x_nchw, params):
    x = jnp.transpose(x_nchw, (0, 2, 3, 1)).astype(jnp.float32)

    def bn_relu(t, gamma, beta):
        mean = jnp.mean(t, axis=(0, 1, 2), keepdims=True)
        var = jnp.mean((t - mean) ** 2, axis=(0, 1, 2), keepdims=True)
        return jnp.maximum((t - mean) / jnp.sqrt(var + EPS) * gamma + beta, 0.0)

    y = bn_relu(x, params["gamma1"], params["beta1"])
    h = jax.lax.conv_general_dilated(
        y, params["w1"][None, None], (1, 1), "VALID",
        dimension_numbers=("NHWC", "HWIO", "NHWC"))
    a = bn_relu(h, params["gamma2"], params["beta2"])
    out = jax.lax.conv_general_dilated(
        a, params["w2"], (1, 1), "SAME",
        dimension_numbers=("NHWC", "HWIO", "NHWC"))
    cat = jnp.concatenate([x, out], axis=-1)
    return jnp.transpose(cat, (0, 3, 1, 2))


if __name__ == "__main__":
    # Small, module-consistent shapes: nChannels=8, growthRate=4 -> interChannels=16.
    N, C, H, W = 2, 8, 16, 16
    growth = 4
    IC = 4 * growth

    key = jax.random.PRNGKey(0)
    ks = jax.random.split(key, 7)
    x = jax.random.normal(ks[0], (N, C, H, W), jnp.float32)

    params = dict(
        gamma1=1.0 + 0.1 * jax.random.normal(ks[1], (C,), jnp.float32),
        beta1=0.1 * jax.random.normal(ks[2], (C,), jnp.float32),
        # conv1 weight in PyTorch is (IC, C, 1, 1); stored here as (C, IC).
        w1=jax.random.normal(ks[3], (C, IC), jnp.float32) / np.sqrt(C),
        gamma2=1.0 + 0.1 * jax.random.normal(ks[4], (IC,), jnp.float32),
        beta2=0.1 * jax.random.normal(ks[5], (IC,), jnp.float32),
        # conv2 weight in PyTorch is (G, IC, 3, 3); stored here as HWIO = (3, 3, IC, G).
        w2=jax.random.normal(ks[6], (3, 3, IC, growth), jnp.float32) / np.sqrt(9 * IC),
    )

    # tile_m=128 so the toy run (M=512) exercises the multi-tile partial-stat path.
    fwd = jax.jit(lambda xx, pp: bottleneck_forward(xx, pp, tile_m=128))

    out = jax.block_until_ready(fwd(x, params))
    ref = jax.block_until_ready(reference_forward(x, params))

    assert out.shape == (N, C + growth, H, W), out.shape
    np.testing.assert_allclose(np.asarray(out), np.asarray(ref), rtol=2e-2, atol=2e-2)

    print("KERNEL_OK")
</pallas_src>

<mosaic_0001>
module attributes {stable_mosaic.version = 11 : i64} {
  func.func @x_stats_kernel(%arg0: i32, %arg1: memref<128x8xf32, #tpu.memory_space<vmem>>, %arg2: memref<8x8xf32, #tpu.memory_space<vmem>>, %arg3: memref<8x8xf32, #tpu.memory_space<vmem>>) attributes {dimension_semantics = [#tpu.dimension_semantics<parallel>], iteration_bounds = array<i64: 4>, scalar_prefetch = 0 : i64, scratch_operands = 0 : i64, tpu.core_type = #tpu.core_type<tc>, window_params = [{transform_indices = @transform_0, window_bounds = array<i64: 128, 8>}, {transform_indices = @transform_1, window_bounds = array<i64: 8, 8>}, {transform_indices = @transform_2, window_bounds = array<i64: 8, 8>}]} {
    %c0 = arith.constant 0 : index
    %c0_0 = arith.constant 0 : index
    %0 = vector.load %arg1[%c0, %c0_0] : memref<128x8xf32, #tpu.memory_space<vmem>>, vector<128x8xf32>
    %cst = arith.constant dense<0.000000e+00> : vector<8xf32>
    %1 = vector.multi_reduction <add>, %0, %cst [0] : vector<128x8xf32> to vector<8xf32>
    %2 = vector.shape_cast %1 : vector<8xf32> to vector<1x8xf32>
    %3 = arith.mulf %0, %0 : vector<128x8xf32>
    %cst_1 = arith.constant dense<0.000000e+00> : vector<8xf32>
    %4 = vector.multi_reduction <add>, %3, %cst_1 [0] : vector<128x8xf32> to vector<8xf32>
    %5 = vector.shape_cast %4 : vector<8xf32> to vector<1x8xf32>
    %cst_2 = arith.constant 0.000000e+00 : f32
    %6 = vector.broadcast %cst_2 : f32 to vector<7x8xf32>
    %7 = tpu.concatenate %2, %6 in 0 : vector<1x8xf32>, vector<7x8xf32> -> vector<8x8xf32>
    %c0_3 = arith.constant 0 : index
    %c0_4 = arith.constant 0 : index
    %8 = vector.load %arg2[%c0_3, %c0_4] : memref<8x8xf32, #tpu.memory_space<vmem>>, vector<8x8xf32>
    tpu.vector_store %arg2[%c0_3, %c0_4], %7 {strides = array<i32>} : memref<8x8xf32, #tpu.memory_space<vmem>>, vector<8x8xf32>,
    %9 = tpu.concatenate %5, %6 in 0 : vector<1x8xf32>, vector<7x8xf32> -> vector<8x8xf32>
    %c0_5 = arith.constant 0 : index
    %c0_6 = arith.constant 0 : index
    %10 = vector.load %arg3[%c0_5, %c0_6] : memref<8x8xf32, #tpu.memory_space<vmem>>, vector<8x8xf32>
    tpu.vector_store %arg3[%c0_5, %c0_6], %9 {strides = array<i32>} : memref<8x8xf32, #tpu.memory_space<vmem>>, vector<8x8xf32>,
    return
  }
  func.func @transform_0(%arg0: i32) -> (i32, i32) {
    %c0_i32 = arith.constant 0 : i32
    %c0_i32_0 = arith.constant 0 : i32
    return %arg0, %c0_i32 : i32, i32
  }
  func.func @transform_1(%arg0: i32) -> (i32, i32) {
    %c0_i32 = arith.constant 0 : i32
    %c0_i32_0 = arith.constant 0 : i32
    return %arg0, %c0_i32 : i32, i32
  }
  func.func @transform_2(%arg0: i32) -> (i32, i32) {
    %c0_i32 = arith.constant 0 : i32
    %c0_i32_0 = arith.constant 0 : i32
    return %arg0, %c0_i32 : i32, i32
  }
}

module attributes {stable_mosaic.version = 11 : i64} {
  func.func @bn_relu_conv1x1_stats_kernel(%arg0: i32, %arg1: memref<128x8xf32, #tpu.memory_space<vmem>>, %arg2: memref<1x8xf32, #tpu.memory_space<vmem>>, %arg3: memref<1x8xf32, #tpu.memory_space<vmem>>, %arg4: memref<8x16xf32, #tpu.memory_space<vmem>>, %arg5: memref<128x16xf32, #tpu.memory_space<vmem>>, %arg6: memref<8x16xf32, #tpu.memory_space<vmem>>, %arg7: memref<8x16xf32, #tpu.memory_space<vmem>>) attributes {dimension_semantics = [#tpu.dimension_semantics<parallel>], iteration_bounds = array<i64: 4>, scalar_prefetch = 0 : i64, scratch_operands = 0 : i64, tpu.core_type = #tpu.core_type<tc>, window_params = [{transform_indices = @transform_0, window_bounds = array<i64: 128, 8>}, {pipeline_mode = #tpu.pipeline_mode<synchronous>, transform_indices = @transform_1, window_bounds = array<i64: 1, 8>}, {pipeline_mode = #tpu.pipeline_mode<synchronous>, transform_indices = @transform_2, window_bounds = array<i64: 1, 8>}, {pipeline_mode = #tpu.pipeline_mode<synchronous>, transform_indices = @transform_3, window_bounds = array<i64: 8, 16>}, {transform_indices = @transform_4, window_bounds = array<i64: 128, 16>}, {transform_indices = @transform_5, window_bounds = array<i64: 8, 16>}, {transform_indices = @transform_6, window_bounds = array<i64: 8, 16>}]} {
    %c0 = arith.constant 0 : index
    %c0_0 = arith.constant 0 : index
    %0 = vector.load %arg1[%c0, %c0_0] : memref<128x8xf32, #tpu.memory_space<vmem>>, vector<128x8xf32>
    %c0_1 = arith.constant 0 : index
    %c0_2 = arith.constant 0 : index
    %1 = vector.load %arg2[%c0_1, %c0_2] : memref<1x8xf32, #tpu.memory_space<vmem>>, vector<1x8xf32>
    %2 = vector.broadcast %1 : vector<1x8xf32> to vector<128x8xf32>
    %3 = arith.mulf %0, %2 : vector<128x8xf32>
    %c0_3 = arith.constant 0 : index
    %c0_4 = arith.constant 0 : index
    %4 = vector.load %arg3[%c0_3, %c0_4] : memref<1x8xf32, #tpu.memory_space<vmem>>, vector<1x8xf32>
    %5 = vector.broadcast %4 : vector<1x8xf32> to vector<128x8xf32>
    %6 = arith.addf %3, %5 : vector<128x8xf32>
    %cst = arith.constant 0.000000e+00 : f32
    %7 = vector.broadcast %cst : f32 to vector<128x8xf32>
    %8 = arith.maximumf %6, %7 : vector<128x8xf32>
    %c0_5 = arith.constant 0 : index
    %c0_6 = arith.constant 0 : index
    %9 = vector.load %arg4[%c0_5, %c0_6] : memref<8x16xf32, #tpu.memory_space<vmem>>, vector<8x16xf32>
    %cst_7 = arith.constant dense<0.000000e+00> : vector<128x16xf32>
    %10 = tpu.matmul %8, %9, %cst_7 {dimension_numbers = #tpu.dot_dimension_numbers<[1], [0], [0], [1], [0, 0, 1, 1], [], []>} : vector<128x8xf32>, vector<8x16xf32>, vector<128x16xf32> -> vector<128x16xf32>
    %c0_8 = arith.constant 0 : index
    %c0_9 = arith.constant 0 : index
    %11 = vector.load %arg5[%c0_8, %c0_9] : memref<128x16xf32, #tpu.memory_space<vmem>>, vector<128x16xf32>
    tpu.vector_store %arg5[%c0_8, %c0_9], %10 {strides = array<i32>} : memref<128x16xf32, #tpu.memory_space<vmem>>, vector<128x16xf32>,
    %cst_10 = arith.constant dense<0.000000e+00> : vector<16xf32>
    %12 = vector.multi_reduction <add>, %10, %cst_10 [0] : vector<128x16xf32> to vector<16xf32>
    %13 = vector.shape_cast %12 : vector<16xf32> to vector<1x16xf32>
    %14 = arith.mulf %10, %10 : vector<128x16xf32>
    %cst_11 = arith.constant dense<0.000000e+00> : vector<16xf32>
    %15 = vector.multi_reduction <add>, %14, %cst_11 [0] : vector<128x16xf32> to vector<16xf32>
    %16 = vector.shape_cast %15 : vector<16xf32> to vector<1x16xf32>
    %cst_12 = arith.constant 0.000000e+00 : f32
    %17 = vector.broadcast %cst_12 : f32 to vector<7x16xf32>
    %18 = tpu.concatenate %13, %17 in 0 : vector<1x16xf32>, vector<7x16xf32> -> vector<8x16xf32>
    %c0_13 = arith.constant 0 : index
    %c0_14 = arith.constant 0 : index
    %19 = vector.load %arg6[%c0_13, %c0_14] : memref<8x16xf32, #tpu.memory_space<vmem>>, vector<8x16xf32>
    tpu.vector_store %arg6[%c0_13, %c0_14], %18 {strides = array<i32>} : memref<8x16xf32, #tpu.memory_space<vmem>>, vector<8x16xf32>,
    %20 = tpu.concatenate %16, %17 in 0 : vector<1x16xf32>, vector<7x16xf32> -> vector<8x16xf32>
    %c0_15 = arith.constant 0 : index
    %c0_16 = arith.constant 0 : index
    %21 = vector.load %arg7[%c0_15, %c0_16] : memref<8x16xf32, #tpu.memory_space<vmem>>, vector<8x16xf32>
    tpu.vector_store %arg7[%c0_15, %c0_16], %20 {strides = array<i32>} : memref<8x16xf32, #tpu.memory_space<vmem>>, vector<8x16xf32>,
    return
  }
  func.func @transform_0(%arg0: i32) -> (i32, i32) {
    %c0_i32 = arith.constant 0 : i32
    %c0_i32_0 = arith.constant 0 : i32
    return %arg0, %c0_i32 : i32, i32
  }
  func.func @transform_1(%arg0: i32) -> (i32, i32) {
    %c0_i32 = arith.constant 0 : i32
    %c0_i32_0 = arith.constant 0 : i32
    %c0_i32_1 = arith.constant 0 : i32
    return %c0_i32, %c0_i32_0 : i32, i32
  }
  func.func @transform_2(%arg0: i32) -> (i32, i32) {
    %c0_i32 = arith.constant 0 : i32
    %c0_i32_0 = arith.constant 0 : i32
    %c0_i32_1 = arith.constant 0 : i32
    return %c0_i32, %c0_i32_0 : i32, i32
  }
  func.func @transform_3(%arg0: i32) -> (i32, i32) {
    %c0_i32 = arith.constant 0 : i32
    %c0_i32_0 = arith.constant 0 : i32
    %c0_i32_1 = arith.constant 0 : i32
    return %c0_i32, %c0_i32_0 : i32, i32
  }
  func.func @transform_4(%arg0: i32) -> (i32, i32) {
    %c0_i32 = arith.constant 0 : i32
    %c0_i32_0 = arith.constant 0 : i32
    return %arg0, %c0_i32 : i32, i32
  }
  func.func @transform_5(%arg0: i32) -> (i32, i32) {
    %c0_i32 = arith.constant 0 : i32
    %c0_i32_0 = arith.constant 0 : i32
    return %arg0, %c0_i32 : i32, i32
  }
  func.func @transform_6(%arg0: i32) -> (i32, i32) {
    %c0_i32 = arith.constant 0 : i32
    %c0_i32_0 = arith.constant 0 : i32
    return %arg0, %c0_i32 : i32, i32
  }
}

module attributes {stable_mosaic.version = 11 : i64} {
  func.func @bn_relu_conv3x3_concat_kernel(%arg0: i32, %arg1: memref<1x16x16x16xf32, #tpu.memory_space<vmem>>, %arg2: memref<1x256x8xf32, #tpu.memory_space<vmem>>, %arg3: memref<1x16xf32, #tpu.memory_space<vmem>>, %arg4: memref<1x16xf32, #tpu.memory_space<vmem>>, %arg5: memref<144x4xf32, #tpu.memory_space<vmem>>, %arg6: memref<1x256x12xf32, #tpu.memory_space<vmem>>, %arg7: memref<18x32x16xf32, #tpu.memory_space<vmem>>) attributes {dimension_semantics = [#tpu.dimension_semantics<parallel>], iteration_bounds = array<i64: 2>, scalar_prefetch = 0 : i64, scratch_operands = 1 : i64, tpu.core_type = #tpu.core_type<tc>, window_params = [{transform_indices = @transform_0, window_bounds = array<i64: 1, 16, 16, 16>}, {transform_indices = @transform_1, window_bounds = array<i64: 1, 256, 8>}, {pipeline_mode = #tpu.pipeline_mode<synchronous>, transform_indices = @transform_2, window_bounds = array<i64: 1, 16>}, {pipeline_mode = #tpu.pipeline_mode<synchronous>, transform_indices = @transform_3, window_bounds = array<i64: 1, 16>}, {pipeline_mode = #tpu.pipeline_mode<synchronous>, transform_indices = @transform_4, window_bounds = array<i64: 144, 4>}, {transform_indices = @transform_5, window_bounds = array<i64: 1, 256, 12>}]} {
    %c0 = arith.constant 0 : index
    %c0_0 = arith.constant 0 : index
    %0 = vector.load %arg3[%c0, %c0_0] : memref<1x16xf32, #tpu.memory_space<vmem>>, vector<1x16xf32>
    %1 = vector.shape_cast %0 : vector<1x16xf32> to vector<1x1x16xf32>
    %c0_1 = arith.constant 0 : index
    %c0_2 = arith.constant 0 : index
    %2 = vector.load %arg4[%c0_1, %c0_2] : memref<1x16xf32, #tpu.memory_space<vmem>>, vector<1x16xf32>
    %3 = vector.shape_cast %2 : vector<1x16xf32> to vector<1x1x16xf32>
    %c0_3 = arith.constant 0 : index
    %c0_4 = arith.constant 0 : index
    %c0_5 = arith.constant 0 : index
    %c0_6 = arith.constant 0 : index
    %4 = vector.load %arg1[%c0_3, %c0_4, %c0_5, %c0_6] : memref<1x16x16x16xf32, #tpu.memory_space<vmem>>, vector<1x16x16x16xf32>
    %5 = vector.shape_cast %4 : vector<1x16x16x16xf32> to vector<16x16x16xf32>
    %6 = vector.broadcast %1 : vector<1x1x16xf32> to vector<16x16x16xf32>
    %7 = arith.mulf %5, %6 : vector<16x16x16xf32>
    %8 = vector.broadcast %3 : vector<1x1x16xf32> to vector<16x16x16xf32>
    %9 = arith.addf %7, %8 : vector<16x16x16xf32>
    %cst = arith.constant 0.000000e+00 : f32
    %10 = vector.broadcast %cst : f32 to vector<16x16x16xf32>
    %11 = arith.maximumf %9, %10 : vector<16x16x16xf32>
    %cst_7 = arith.constant 0.000000e+00 : f32
    %12 = vector.broadcast %cst_7 : f32 to vector<18x32x16xf32>
    %c0_8 = arith.constant 0 : index
    %c0_9 = arith.constant 0 : index
    %c0_10 = arith.constant 0 : index
    %13 = vector.load %arg7[%c0_8, %c0_9, %c0_10] : memref<18x32x16xf32, #tpu.memory_space<vmem>>, vector<18x32x16xf32>
    tpu.vector_store %arg7[%c0_8, %c0_9, %c0_10], %12 {strides = array<i32>} : memref<18x32x16xf32, #tpu.memory_space<vmem>>, vector<18x32x16xf32>,
    %c1 = arith.constant 1 : index
    %c8 = arith.constant 8 : index
    %c0_11 = arith.constant 0 : index
    %14 = vector.load %arg7[%c1, %c8, %c0_11] : memref<18x32x16xf32, #tpu.memory_space<vmem>>, vector<16x16x16xf32>
    tpu.vector_store %arg7[%c1, %c8, %c0_11], %11 {strides = array<i32>} : memref<18x32x16xf32, #tpu.memory_space<vmem>>, vector<16x16x16xf32>,
    %c0_12 = arith.constant 0 : index
    %c7 = arith.constant 7 : index
    %c0_13 = arith.constant 0 : index
    %15 = vector.load %arg7[%c0_12, %c7, %c0_13] : memref<18x32x16xf32, #tpu.memory_space<vmem>>, vector<16x16x16xf32>
    %c0_14 = arith.constant 0 : index
    %c8_15 = arith.constant 8 : index
    %c0_16 = arith.constant 0 : index
    %16 = vector.load %arg7[%c0_14, %c8_15, %c0_16] : memref<18x32x16xf32, #tpu.memory_space<vmem>>, vector<16x16x16xf32>
    %c0_17 = arith.constant 0 : index
    %c9 = arith.constant 9 : index
    %c0_18 = arith.constant 0 : index
    %17 = vector.load %arg7[%c0_17, %c9, %c0_18] : memref<18x32x16xf32, #tpu.memory_space<vmem>>, vector<16x16x16xf32>
    %c1_19 = arith.constant 1 : index
    %c7_20 = arith.constant 7 : index
    %c0_21 = arith.constant 0 : index
    %18 = vector.load %arg7[%c1_19, %c7_20, %c0_21] : memref<18x32x16xf32, #tpu.memory_space<vmem>>, vector<16x16x16xf32>
    %c1_22 = arith.constant 1 : index
    %c8_23 = arith.constant 8 : index
    %c0_24 = arith.constant 0 : index
    %19 = vector.load %arg7[%c1_22, %c8_23, %c0_24] : memref<18x32x16xf32, #tpu.memory_space<vmem>>, vector<16x16x16xf32>
    %c1_25 = arith.constant 1 : index
    %c9_26 = arith.constant 9 : index
    %c0_27 = arith.constant 0 : index
    %20 = vector.load %arg7[%c1_25, %c9_26, %c0_27] : memref<18x32x16xf32, #tpu.memory_space<vmem>>, vector<16x16x16xf32>
    %c2 = arith.constant 2 : index
    %c7_28 = arith.constant 7 : index
    %c0_29 = arith.constant 0 : index
    %21 = vector.load %arg7[%c2, %c7_28, %c0_29] : memref<18x32x16xf32, #tpu.memory_space<vmem>>, vector<16x16x16xf32>
    %c2_30 = arith.constant 2 : index
    %c8_31 = arith.constant 8 : index
    %c0_32 = arith.constant 0 : index
    %22 = vector.load %arg7[%c2_30, %c8_31, %c0_32] : memref<18x32x16xf32, #tpu.memory_space<vmem>>, vector<16x16x16xf32>
    %c2_33 = arith.constant 2 : index
    %c9_34 = arith.constant 9 : index
    %c0_35 = arith.constant 0 : index
    %23 = vector.load %arg7[%c2_33, %c9_34, %c0_35] : memref<18x32x16xf32, #tpu.memory_space<vmem>>, vector<16x16x16xf32>
    %24 = tpu.concatenate %15, %16, %17, %18, %19, %20, %21, %22, %23 in 2 : vector<16x16x16xf32>, vector<16x16x16xf32>, vector<16x16x16xf32>, vector<16x16x16xf32>, vector<16x16x16xf32>, vector<16x16x16xf32>, vector<16x16x16xf32>, vector<16x16x16xf32>, vector<16x16x16xf32> -> vector<16x16x144xf32>
    %25 = vector.shape_cast %24 : vector<16x16x144xf32> to vector<256x144xf32>
    %c0_36 = arith.constant 0 : index
    %c0_37 = arith.constant 0 : index
    %26 = vector.load %arg5[%c0_36, %c0_37] : memref<144x4xf32, #tpu.memory_space<vmem>>, vector<144x4xf32>
    %cst_38 = arith.constant dense<0.000000e+00> : vector<256x4xf32>
    %27 = tpu.matmul %25, %26, %cst_38 {dimension_numbers = #tpu.dot_dimension_numbers<[1], [0], [0], [1], [0, 0, 1, 1], [], []>} : vector<256x144xf32>, vector<144x4xf32>, vector<256x4xf32> -> vector<256x4xf32>
    %c0_39 = arith.constant 0 : index
    %c0_40 = arith.constant 0 : index
    %c0_41 = arith.constant 0 : index
    %28 = vector.load %arg2[%c0_39, %c0_40, %c0_41] : memref<1x256x8xf32, #tpu.memory_space<vmem>>, vector<1x256x8xf32>
    %29 = vector.shape_cast %28 : vector<1x256x8xf32> to vector<256x8xf32>
    %30 = tpu.concatenate %29, %27 in 1 : vector<256x8xf32>, vector<256x4xf32> -> vector<256x12xf32>
    %c0_42 = arith.constant 0 : index
    %c0_43 = arith.constant 0 : index
    %c0_44 = arith.constant 0 : index
    %31 = vector.load %arg6[%c0_42, %c0_43, %c0_44] : memref<1x256x12xf32, #tpu.memory_space<vmem>>, vector<1x256x12xf32>
    %32 = vector.shape_cast %31 : vector<1x256x12xf32> to vector<256x12xf32>
    %33 = vector.shape_cast %30 : vector<256x12xf32> to vector<1x256x12xf32>
    tpu.vector_store %arg6[%c0_42, %c0_43, %c0_44], %33 {strides = array<i32>} : memref<1x256x12xf32, #tpu.memory_space<vmem>>, vector<1x256x12xf32>,
    return
  }
  func.func @transform_0(%arg0: i32) -> (i32, i32, i32, i32) {
    %c0_i32 = arith.constant 0 : i32
    %c0_i32_0 = arith.constant 0 : i32
    %c0_i32_1 = arith.constant 0 : i32
    %c0_i32_2 = arith.constant 0 : i32
    return %arg0, %c0_i32, %c0_i32_0, %c0_i32_1 : i32, i32, i32, i32
  }
  func.func @transform_1(%arg0: i32) -> (i32, i32, i32) {
    %c0_i32 = arith.constant 0 : i32
    %c0_i32_0 = arith.constant 0 : i32
    %c0_i32_1 = arith.constant 0 : i32
    return %arg0, %c0_i32, %c0_i32_0 : i32, i32, i32
  }
  func.func @transform_2(%arg0: i32) -> (i32, i32) {
    %c0_i32 = arith.constant 0 : i32
    %c0_i32_0 = arith.constant 0 : i32
    %c0_i32_1 = arith.constant 0 : i32
    return %c0_i32, %c0_i32_0 : i32, i32
  }
  func.func @transform_3(%arg0: i32) -> (i32, i32) {
    %c0_i32 = arith.constant 0 : i32
    %c0_i32_0 = arith.constant 0 : i32
    %c0_i32_1 = arith.constant 0 : i32
    return %c0_i32, %c0_i32_0 : i32, i32
  }
  func.func @transform_4(%arg0: i32) -> (i32, i32) {
    %c0_i32 = arith.constant 0 : i32
    %c0_i32_0 = arith.constant 0 : i32
    %c0_i32_1 = arith.constant 0 : i32
    return %c0_i32, %c0_i32_0 : i32, i32
  }
  func.func @transform_5(%arg0: i32) -> (i32, i32, i32) {
    %c0_i32 = arith.constant 0 : i32
    %c0_i32_0 = arith.constant 0 : i32
    %c0_i32_1 = arith.constant 0 : i32
    return %arg0, %c0_i32, %c0_i32_0 : i32, i32, i32
  }
}

</mosaic_0001>

<llo_original>
// kernel: _lambda_.3
$region0: #{_lambda_.3}
  #allocation0 [shape = 'u32[]', space=smem, size = 0x4, offset = 0x4, fixed_abs, tag = 'smem constant byte address 0x4 - core index']
  #allocation1 [shape = 'u32[144,128]{1,0:T(1,128)}', space=vmem, size = 0x12000, scoped, tag = 'internal scratch']
  %s0 = inlined_call_operand.vmem [shape: f32[512,8], index: 0, kind: input, shape index: {}]
  %s1 = inlined_call_operand.vmem [shape: f32[32,8], index: 1, kind: output, shape index: {0}]
  %s2 = inlined_call_operand.vmem [shape: f32[32,8], index: 2, kind: output, shape index: {1}]
  %3 = xla_tuple %s1, %s2
  %s4 = sld [smem:[#allocation0]]
  $region45: #{_lambda_.3} parent=0
    _
  %s6 = ssub.s32 1, %s4
  %s7 = scalar_select 0, %s6, %s4
  loop: start=0, step=1, limit=6
  $region2: #{_lambda_.3} parent=0 // loop_pre_header
    _
  $region3: #{_lambda_.3} parent=0 // loop_header
    %s9 = sphi 0, %s13
    %p10 = scmp.ge.s32.totalorder %s9, 6
    %s19 = sphi 0, %s21
    %s22 = sphi 0, %s19
    %s23 = sphi 0, %s22
    %s39 = sphi 0, %s23
    %s45 = sphi 0, %s47
    %s48 = sphi 0, %s45
    %s49 = sphi 0, %s48
    %s65 = sphi 0, %s49
    %s71 = sphi 0, %s73
    %s74 = sphi 0, %s71
    %s75 = sphi 0, %s74
    %s91 = sphi 0, %s75
  $region4: #{_lambda_.3} parent=0 // loop_header_branch
    %12 = sbr.rel (%p10) target = $region8
  $region5: #{_lambda_.3} parent=0 // loop_body
    %s14 = ssub.s32 %s9, 1
    %s15 = ssub.s32 %s9, 2
    %s16 = sadd.s32 %s9, 1
    %s17 = ssub.s32 %s9, %s16
    %p18 = scmp.eq.s32.totalorder %s17, 0
    %s20 = sadd.s32 %s19, 1
    %s21 = scalar_select %p18, %s19, %s20
    %p24 = pneg %p18
    %p25 = scmp.eq.s32.totalorder %s9, 3
    %p26 = por %p24, %p25
    %p27 = scmp.ne.s32.totalorder %s19, %s22
    %p28 = scmp.eq.s32.totalorder %s9, 0
    %p29 = por %p27, %p28
    %p30 = scmp.ne.s32.totalorder %s19, %s22
    %p31 = scmp.eq.s32.totalorder %s14, 3
    %p32 = por %p30, %p31
    %p33 = scmp.ne.s32.totalorder %s22, %s23
    %p34 = scmp.eq.s32.totalorder %s14, 0
    %p35 = por %p33, %p34
    %p36 = scmp.ne.s32.totalorder %s22, %s23
    %p37 = scmp.eq.s32.totalorder %s15, 3
    %p38 = por %p36, %p37
    %p40 = scmp.ne.s32.totalorder %s23, %s39
    %p41 = scmp.eq.s32.totalorder %s15, 0
    %p42 = por %p40, %p41
    %s43 = ssub.s32 %s9, %s16
    %p44 = scmp.eq.s32.totalorder %s43, 0
    %s46 = sadd.s32 %s45, 1
    %s47 = scalar_select %p44, %s45, %s46
    %p50 = pneg %p44
    %p51 = scmp.eq.s32.totalorder %s9, 3
    %p52 = por %p50, %p51
    %p53 = scmp.ne.s32.totalorder %s45, %s48
    %p54 = scmp.eq.s32.totalorder %s9, 0
    %p55 = por %p53, %p54
    %p56 = scmp.ne.s32.totalorder %s45, %s48
    %p57 = scmp.eq.s32.totalorder %s14, 3
    %p58 = por %p56, %p57
    %p59 = scmp.ne.s32.totalorder %s48, %s49
    %p60 = scmp.eq.s32.totalorder %s14, 0
    %p61 = por %p59, %p60
    %p62 = scmp.ne.s32.totalorder %s48, %s49
    %p63 = scmp.eq.s32.totalorder %s15, 3
    %p64 = por %p62, %p63
    %p66 = scmp.ne.s32.totalorder %s49, %s65
    %p67 = scmp.eq.s32.totalorder %s15, 0
    %p68 = por %p66, %p67
    %s69 = ssub.s32 %s9, %s16
    %p70 = scmp.eq.s32.totalorder %s69, 0
    %s72 = sadd.s32 %s71, 1
    %s73 = scalar_select %p70, %s71, %s72
    %p76 = pneg %p70
    %p77 = scmp.eq.s32.totalorder %s9, 3
    %p78 = por %p76, %p77
    %p79 = scmp.ne.s32.totalorder %s71, %s74
    %p80 = scmp.eq.s32.totalorder %s9, 0
    %p81 = por %p79, %p80
    %p82 = scmp.ne.s32.totalorder %s71, %s74
    %p83 = scmp.eq.s32.totalorder %s14, 3
    %p84 = por %p82, %p83
    %p85 = scmp.ne.s32.totalorder %s74, %s75
    %p86 = scmp.eq.s32.totalorder %s14, 0
    %p87 = por %p85, %p86
    %p88 = scmp.ne.s32.totalorder %s74, %s75
    %p89 = scmp.eq.s32.totalorder %s15, 3
    %p90 = por %p88, %p89
    %p92 = scmp.ne.s32.totalorder %s75, %s91
    %p93 = scmp.eq.s32.totalorder %s15, 0
    %p94 = por %p92, %p93
    %p95 = scmp.le.s32.totalorder 1, %s9
    %p96 = scmp.lt.s32.totalorder %s9, 5
    %p97 = pnand %p95, %p96
    %p98 = pneg %p97
    // Predicated region
    $region9: #{_lambda_.3} parent=5 // pred_check
      _
    $region10: #{_lambda_.3} parent=5 // pred_check_branch
      %100 = sbr.rel (%p97) target = $region12
    $region11: #{_lambda_.3} parent=5 // pred_region
      %s101 = ssub.s32 %s9, 1
    $region12: #{_lambda_.3} parent=5 // pred_fallthru
      _
    %p102 = scmp.lt.s32.totalorder %s9, 4
    // Predicated region
    $region13: #{_lambda_.3} parent=5 // pred_check
      %p103 = pneg %p102
    $region14: #{_lambda_.3} parent=5 // pred_check_branch
      %105 = sbr.rel (%p103) target = $region16
    $region15: #{_lambda_.3} parent=5 // pred_region
      // Predicated region
      $region17: #{_lambda_.3} parent=15 // pred_check
        %p106 = pneg %p29
      $region18: #{_lambda_.3} parent=15 // pred_check_branch
        %108 = sbr.rel (%p106) target = $region20
      $region19: #{_lambda_.3} parent=15 // pred_region
        %s109 = smul.u32 16, %s9
        %p110 = scmp.lt.s32.totalorder %s109, 63
        %s111 = scalar_select %p110, %s109, 63
        %s112 = smul.addr %s111, 8
        %s113 = scalar_lea.vmem %s0, %s112
        %s114 = smul.u32 16, %s9
      $region20: #{_lambda_.3} parent=15 // pred_fallthru
        _
    $region16: #{_lambda_.3} parent=5 // pred_fallthru
      _
    %p115 = scmp.le.s32.totalorder 1, %s9
    %p116 = scmp.lt.s32.totalorder %s9, 5
    %p117 = pnand %p115, %p116
    %p118 = pneg %p117
    // Predicated region
    $region21: #{_lambda_.3} parent=5 // pred_check
      _
    $region22: #{_lambda_.3} parent=5 // pred_check_branch
      %120 = sbr.rel (%p117) target = $region24
    $region23: #{_lambda_.3} parent=5 // pred_region
      %s121 = ssub.s32 %s9, 1
      %s122 = smul.u32 16, %s14
      %p123 = scmp.lt.s32.totalorder %s122, 63
      %s124 = scalar_select %p123, %s122, 63
      %s125 = smul.addr %s124, 8
      %s126 = scalar_lea.vmem %s0, %s125
      %p127 = pneg %p35
      %p128 = pneg %p32
      %p129 = pneg %p61
      %p130 = pneg %p58
      %p131 = scmp.lt.s32.totalorder %s14, 3
      %s132 = scalar_select %p131, %s14, 3
      %s133 = smul.addr %s132, 8
      %s134 = scalar_lea.vmem %s1, %s133
      %p135 = pneg %p87
      %p136 = pneg %p84
      %p137 = scmp.lt.s32.totalorder %s14, 3
      %s138 = scalar_select %p137, %s14, 3
      %s139 = smul.addr %s138, 8
      %s140 = scalar_lea.vmem %s2, %s139
      %s141 = smul.u32 16, %s14
      %p142 = scmp.lt.s32.totalorder %s141, 63
      %s143 = scalar_select %p142, %s141, 63
      %s144 = smul.addr %s143, 8
      %s145 = scalar_lea.vmem %s0, %s144
      %s146 = smul.u32 16, %s14
      %p147 = scmp.lt.s32.totalorder %s14, 3
      %s148 = scalar_select %p147, %s14, 3
      %s149 = smul.addr %s148, 8
      %s150 = scalar_lea.vmem %s1, %s149
      %p151 = scmp.lt.s32.totalorder %s14, 3
      %s152 = scalar_select %p151, %s14, 3
      %s153 = smul.addr %s152, 8
      %s154 = scalar_lea.vmem %s2, %s153
      %v155 = vld [vmem:[%s145] sm:$0xff]
      %v156 = vld [vmem:[%s145 + $0x8] sm:$0xff]
      %v157 = vld [vmem:[%s145 + $0x10] sm:$0xff]
      %v158 = vld [vmem:[%s145 + $0x18] sm:$0xff]
      %v159 = vld [vmem:[%s145 + $0x20] sm:$0xff]
      %v160 = vld [vmem:[%s145 + $0x28] sm:$0xff]
      %v161 = vld [vmem:[%s145 + $0x30] sm:$0xff]
      %v162 = vld [vmem:[%s145 + $0x38] sm:$0xff]
      %v163 = vld [vmem:[%s145 + $0x40] sm:$0xff]
      %v164 = vld [vmem:[%s145 + $0x48] sm:$0xff]
      %v165 = vld [vmem:[%s145 + $0x50] sm:$0xff]
      %v166 = vld [vmem:[%s145 + $0x58] sm:$0xff]
      %v167 = vld [vmem:[%s145 + $0x60] sm:$0xff]
      %v168 = vld [vmem:[%s145 + $0x68] sm:$0xff]
      %v169 = vld [vmem:[%s145 + $0x70] sm:$0xff]
      %v170 = vld [vmem:[%s145 + $0x78] sm:$0xff]
      %vm171 = vcmask 64512
      %v172 = vsel %vm171, %v155, 0.0
      %v173 = vsel %vm171, %v156, 0.0
      %v174 = vadd.f32 %v172, %v173
      %v175 = vsel %vm171, %v157, 0.0
      %v176 = vadd.f32 %v174, %v175
      %v177 = vsel %vm171, %v158, 0.0
      %v178 = vadd.f32 %v176, %v177
      %v179 = vsel %vm171, %v159, 0.0
      %v180 = vadd.f32 %v178, %v179
      %v181 = vsel %vm171, %v160, 0.0
      %v182 = vadd.f32 %v180, %v181
      %v183 = vsel %vm171, %v161, 0.0
      %v184 = vadd.f32 %v182, %v183
      %v185 = vsel %vm171, %v162, 0.0
      %v186 = vadd.f32 %v184, %v185
      %v187 = vsel %vm171, %v163, 0.0
      %v188 = vadd.f32 %v186, %v187
      %v189 = vsel %vm171, %v164, 0.0
      %v190 = vadd.f32 %v188, %v189
      %v191 = vsel %vm171, %v165, 0.0
      %v192 = vadd.f32 %v190, %v191
      %v193 = vsel %vm171, %v166, 0.0
      %v194 = vadd.f32 %v192, %v193
      %v195 = vsel %vm171, %v167, 0.0
      %v196 = vadd.f32 %v194, %v195
      %v197 = vsel %vm171, %v168, 0.0
      %v198 = vadd.f32 %v196, %v197
      %v199 = vsel %vm171, %v169, 0.0
      %v200 = vadd.f32 %v198, %v199
      %v201 = vsel %vm171, %v170, 0.0
      %v202 = vadd.f32 %v200, %v201
      %v203 = vrot.slane %v202, 4
      %v204 = vadd.f32 %v202, %v203
      %v205 = vrot.slane %v204, 2
      %v206 = vadd.f32 %v204, %v205
      %v207 = vrot.slane %v206, 1
      %v208 = vadd.f32 %v206, %v207
      %v209 = vmul.f32 %v155, %v155
      %v210 = vmul.f32 %v156, %v156
      %v211 = vmul.f32 %v157, %v157
      %v212 = vmul.f32 %v158, %v158
      %v213 = vmul.f32 %v159, %v159
      %v214 = vmul.f32 %v160, %v160
      %v215 = vmul.f32 %v161, %v161
      %v216 = vmul.f32 %v162, %v162
      %v217 = vmul.f32 %v163, %v163
      %v218 = vmul.f32 %v164, %v164
      %v219 = vmul.f32 %v165, %v165
      %v220 = vmul.f32 %v166, %v166
      %v221 = vmul.f32 %v167, %v167
      %v222 = vmul.f32 %v168, %v168
      %v223 = vmul.f32 %v169, %v169
      %v224 = vmul.f32 %v170, %v170
      %v225 = vsel %vm171, %v209, 0.0
      %v226 = vsel %vm171, %v210, 0.0
      %v227 = vadd.f32 %v225, %v226
      %v228 = vsel %vm171, %v211, 0.0
      %v229 = vadd.f32 %v227, %v228
      %v230 = vsel %vm171, %v212, 0.0
      %v231 = vadd.f32 %v229, %v230
      %v232 = vsel %vm171, %v213, 0.0
      %v233 = vadd.f32 %v231, %v232
      %v234 = vsel %vm171, %v214, 0.0
      %v235 = vadd.f32 %v233, %v234
      %v236 = vsel %vm171, %v215, 0.0
      %v237 = vadd.f32 %v235, %v236
      %v238 = vsel %vm171, %v216, 0.0
      %v239 = vadd.f32 %v237, %v238
      %v240 = vsel %vm171, %v217, 0.0
      %v241 = vadd.f32 %v239, %v240
      %v242 = vsel %vm171, %v218, 0.0
      %v243 = vadd.f32 %v241, %v242
      %v244 = vsel %vm171, %v219, 0.0
      %v245 = vadd.f32 %v243, %v244
      %v246 = vsel %vm171, %v220, 0.0
      %v247 = vadd.f32 %v245, %v246
      %v248 = vsel %vm171, %v221, 0.0
      %v249 = vadd.f32 %v247, %v248
      %v250 = vsel %vm171, %v222, 0.0
      %v251 = vadd.f32 %v249, %v250
      %v252 = vsel %vm171, %v223, 0.0
      %v253 = vadd.f32 %v251, %v252
      %v254 = vsel %vm171, %v224, 0.0
      %v255 = vadd.f32 %v253, %v254
      %v256 = vrot.slane %v255, 4
      %v257 = vadd.f32 %v255, %v256
      %v258 = vrot.slane %v257, 2
      %v259 = vadd.f32 %v257, %v258
      %v260 = vrot.slane %v259, 1
      %v261 = vadd.f32 %v259, %v260
      %vm262 = vcmask 1040384
      %v263 = vsel %vm262, %v208, 0.0
      %264 = vst.msk [vmem:[%s150] sm:$0xff] %vm171, %v263
      %v265 = vsel %vm262, %v261, 0.0
      %266 = vst.msk [vmem:[%s154] sm:$0xff] %vm171, %v265
      %p267 = scmp.lt.s32.totalorder %s14, 3
      %s268 = scalar_select %p267, %s14, 3
      %s269 = smul.addr %s268, 8
      %s270 = scalar_lea.vmem %s1, %s269
      %p271 = scmp.lt.s32.totalorder %s14, 3
      %s272 = scalar_select %p271, %s14, 3
      %s273 = smul.addr %s272, 8
      %s274 = scalar_lea.vmem %s2, %s273
      // Predicated region
      $region25: #{_lambda_.3} parent=23 // pred_check
        %p275 = pneg %p58
      $region26: #{_lambda_.3} parent=23 // pred_check_branch
        %277 = sbr.rel (%p275) target = $region28
      $region27: #{_lambda_.3} parent=23 // pred_region
        _
      $region28: #{_lambda_.3} parent=23 // pred_fallthru
        _
      // Predicated region
      $region29: #{_lambda_.3} parent=23 // pred_check
        %p278 = pneg %p84
      $region30: #{_lambda_.3} parent=23 // pred_check_branch
        %280 = sbr.rel (%p278) target = $region32
      $region31: #{_lambda_.3} parent=23 // pred_region
        _
      $region32: #{_lambda_.3} parent=23 // pred_fallthru
        _
    $region24: #{_lambda_.3} parent=5 // pred_fallthru
      _
    %p281 = scmp.le.s32.totalorder 2, %s9
    // Predicated region
    $region33: #{_lambda_.3} parent=5 // pred_check
      %p282 = pneg %p281
    $region34: #{_lambda_.3} parent=5 // pred_check_branch
      %284 = sbr.rel (%p282) target = $region36
    $region35: #{_lambda_.3} parent=5 // pred_region
      %s285 = ssub.s32 %s9, 2
      // Predicated region
      $region37: #{_lambda_.3} parent=35 // pred_check
        %p286 = pneg %p64
      $region38: #{_lambda_.3} parent=35 // pred_check_branch
        %288 = sbr.rel (%p286) target = $region40
      $region39: #{_lambda_.3} parent=35 // pred_region
        %p289 = scmp.lt.s32.totalorder %s15, 3
        %s290 = scalar_select %p289, %s15, 3
        %s291 = smul.addr %s290, 8
        %s292 = scalar_lea.vmem %s1, %s291
      $region40: #{_lambda_.3} parent=35 // pred_fallthru
        _
      // Predicated region
      $region41: #{_lambda_.3} parent=35 // pred_check
        %p293 = pneg %p90
      $region42: #{_lambda_.3} parent=35 // pred_check_branch
        %295 = sbr.rel (%p293) target = $region44
      $region43: #{_lambda_.3} parent=35 // pred_region
        %p296 = scmp.lt.s32.totalorder %s15, 3
        %s297 = scalar_select %p296, %s15, 3
        %s298 = smul.addr %s297, 8
        %s299 = scalar_lea.vmem %s2, %s298
      $region44: #{_lambda_.3} parent=35 // pred_fallthru
        _
    $region36: #{_lambda_.3} parent=5 // pred_fallthru
      _
  $region6: #{_lambda_.3} parent=0 // loop_footer
    %s13 = sadd.s32 1, %s9
  $region7: #{_lambda_.3} parent=0 // loop_footer_branch
    %8 = sbr.rel target = $region3
  $region8: #{_lambda_.3} parent=0 // loop_exit
    _

// kernel: _lambda_.4
$region0: #{_lambda_.4}
  #allocation0 [shape = 'u32[]', space=smem, size = 0x4, offset = 0x4, fixed_abs, tag = 'smem constant byte address 0x4 - core index']
  #allocation1 [shape = 'u32[144,128]{1,0:T(1,128)}', space=vmem, size = 0x12000, scoped, tag = 'internal scratch']
  %s0 = inlined_call_operand.vmem [shape: f32[512,8], index: 0, kind: input, shape index: {}]
  %s1 = inlined_call_operand.vmem [shape: f32[1,8], index: 1, kind: input, shape index: {}]
  %s2 = inlined_call_operand.vmem [shape: f32[1,8], index: 2, kind: input, shape index: {}]
  %s3 = inlined_call_operand.vmem [shape: f32[8,16], index: 3, kind: input, shape index: {}]
  %s4 = inlined_call_operand.vmem [shape: f32[512,16], index: 4, kind: output, shape index: {0}]
  %s5 = inlined_call_operand.vmem [shape: f32[32,16], index: 5, kind: output, shape index: {1}]
  %s6 = inlined_call_operand.vmem [shape: f32[32,16], index: 6, kind: output, shape index: {2}]
  %7 = xla_tuple %s4, %s5, %s6
  %s8 = sld [smem:[#allocation0]]
  $region65: #{_lambda_.4} parent=0
    _
  %s10 = ssub.s32 1, %s8
  %s11 = scalar_select 0, %s10, %s8
  loop: start=0, step=1, limit=6
  $region2: #{_lambda_.4} parent=0 // loop_pre_header
    _
  $region3: #{_lambda_.4} parent=0 // loop_header
    %s13 = sphi 0, %s17
    %p14 = scmp.ge.s32.totalorder %s13, 6
    %s23 = sphi 0, %s25
    %s26 = sphi 0, %s23
    %s27 = sphi 0, %s26
    %s43 = sphi 0, %s27
    %s47 = sphi 0, %s47
    %s49 = sphi 0, %s47
    %s50 = sphi 0, %s49
    %s64 = sphi 0, %s50
    %s68 = sphi 0, %s68
    %s70 = sphi 0, %s68
    %s71 = sphi 0, %s70
    %s85 = sphi 0, %s71
    %s89 = sphi 0, %s89
    %s91 = sphi 0, %s89
    %s92 = sphi 0, %s91
    %s106 = sphi 0, %s92
    %s112 = sphi 0, %s114
    %s115 = sphi 0, %s112
    %s116 = sphi 0, %s115
    %s132 = sphi 0, %s116
    %s138 = sphi 0, %s140
    %s141 = sphi 0, %s138
    %s142 = sphi 0, %s141
    %s158 = sphi 0, %s142
    %s164 = sphi 0, %s166
    %s167 = sphi 0, %s164
    %s168 = sphi 0, %s167
    %s184 = sphi 0, %s168
  $region4: #{_lambda_.4} parent=0 // loop_header_branch
    %16 = sbr.rel (%p14) target = $region8
  $region5: #{_lambda_.4} parent=0 // loop_body
    %s18 = ssub.s32 %s13, 1
    %s19 = ssub.s32 %s13, 2
    %s20 = sadd.s32 %s13, 1
    %s21 = ssub.s32 %s13, %s20
    %p22 = scmp.eq.s32.totalorder %s21, 0
    %s24 = sadd.s32 %s23, 1
    %s25 = scalar_select %p22, %s23, %s24
    %p28 = pneg %p22
    %p29 = scmp.eq.s32.totalorder %s13, 3
    %p30 = por %p28, %p29
    %p31 = scmp.ne.s32.totalorder %s23, %s26
    %p32 = scmp.eq.s32.totalorder %s13, 0
    %p33 = por %p31, %p32
    %p34 = scmp.ne.s32.totalorder %s23, %s26
    %p35 = scmp.eq.s32.totalorder %s18, 3
    %p36 = por %p34, %p35
    %p37 = scmp.ne.s32.totalorder %s26, %s27
    %p38 = scmp.eq.s32.totalorder %s18, 0
    %p39 = por %p37, %p38
    %p40 = scmp.ne.s32.totalorder %s26, %s27
    %p41 = scmp.eq.s32.totalorder %s19, 3
    %p42 = por %p40, %p41
    %p44 = scmp.ne.s32.totalorder %s27, %s43
    %p45 = scmp.eq.s32.totalorder %s19, 0
    %p46 = por %p44, %p45
    %s48 = sadd.s32 %s47, 1
    %p51 = scmp.eq.s32.totalorder %s13, 3
    %p52 = scmp.ne.s32.totalorder %s47, %s49
    %p53 = scmp.eq.s32.totalorder %s13, 0
    %p54 = por %p52, %p53
    %p55 = scmp.ne.s32.totalorder %s47, %s49
    %p56 = scmp.eq.s32.totalorder %s18, 3
    %p57 = por %p55, %p56
    %p58 = scmp.ne.s32.totalorder %s49, %s50
    %p59 = scmp.eq.s32.totalorder %s18, 0
    %p60 = por %p58, %p59
    %p61 = scmp.ne.s32.totalorder %s49, %s50
    %p62 = scmp.eq.s32.totalorder %s19, 3
    %p63 = por %p61, %p62
    %p65 = scmp.ne.s32.totalorder %s50, %s64
    %p66 = scmp.eq.s32.totalorder %s19, 0
    %p67 = por %p65, %p66
    %s69 = sadd.s32 %s68, 1
    %p72 = scmp.eq.s32.totalorder %s13, 3
    %p73 = scmp.ne.s32.totalorder %s68, %s70
    %p74 = scmp.eq.s32.totalorder %s13, 0
    %p75 = por %p73, %p74
    %p76 = scmp.ne.s32.totalorder %s68, %s70
    %p77 = scmp.eq.s32.totalorder %s18, 3
    %p78 = por %p76, %p77
    %p79 = scmp.ne.s32.totalorder %s70, %s71
    %p80 = scmp.eq.s32.totalorder %s18, 0
    %p81 = por %p79, %p80
    %p82 = scmp.ne.s32.totalorder %s70, %s71
    %p83 = scmp.eq.s32.totalorder %s19, 3
    %p84 = por %p82, %p83
    %p86 = scmp.ne.s32.totalorder %s71, %s85
    %p87 = scmp.eq.s32.totalorder %s19, 0
    %p88 = por %p86, %p87
    %s90 = sadd.s32 %s89, 1
    %p93 = scmp.eq.s32.totalorder %s13, 3
    %p94 = scmp.ne.s32.totalorder %s89, %s91
    %p95 = scmp.eq.s32.totalorder %s13, 0
    %p96 = por %p94, %p95
    %p97 = scmp.ne.s32.totalorder %s89, %s91
    %p98 = scmp.eq.s32.totalorder %s18, 3
    %p99 = por %p97, %p98
    %p100 = scmp.ne.s32.totalorder %s91, %s92
    %p101 = scmp.eq.s32.totalorder %s18, 0
    %p102 = por %p100, %p101
    %p103 = scmp.ne.s32.totalorder %s91, %s92
    %p104 = scmp.eq.s32.totalorder %s19, 3
    %p105 = por %p103, %p104
    %p107 = scmp.ne.s32.totalorder %s92, %s106
    %p108 = scmp.eq.s32.totalorder %s19, 0
    %p109 = por %p107, %p108
    %s110 = ssub.s32 %s13, %s20
    %p111 = scmp.eq.s32.totalorder %s110, 0
    %s113 = sadd.s32 %s112, 1
    %s114 = scalar_select %p111, %s112, %s113
    %p117 = pneg %p111
    %p118 = scmp.eq.s32.totalorder %s13, 3
    %p119 = por %p117, %p118
    %p120 = scmp.ne.s32.totalorder %s112, %s115
    %p121 = scmp.eq.s32.totalorder %s13, 0
    %p122 = por %p120, %p121
    %p123 = scmp.ne.s32.totalorder %s112, %s115
    %p124 = scmp.eq.s32.totalorder %s18, 3
    %p125 = por %p123, %p124
    %p126 = scmp.ne.s32.totalorder %s115, %s116
    %p127 = scmp.eq.s32.totalorder %s18, 0
    %p128 = por %p126, %p127
    %p129 = scmp.ne.s32.totalorder %s115, %s116
    %p130 = scmp.eq.s32.totalorder %s19, 3
    %p131 = por %p129, %p130
    %p133 = scmp.ne.s32.totalorder %s116, %s132
    %p134 = scmp.eq.s32.totalorder %s19, 0
    %p135 = por %p133, %p134
    %s136 = ssub.s32 %s13, %s20
    %p137 = scmp.eq.s32.totalorder %s136, 0
    %s139 = sadd.s32 %s138, 1
    %s140 = scalar_select %p137, %s138, %s139
    %p143 = pneg %p137
    %p144 = scmp.eq.s32.totalorder %s13, 3
    %p145 = por %p143, %p144
    %p146 = scmp.ne.s32.totalorder %s138, %s141
    %p147 = scmp.eq.s32.totalorder %s13, 0
    %p148 = por %p146, %p147
    %p149 = scmp.ne.s32.totalorder %s138, %s141
    %p150 = scmp.eq.s32.totalorder %s18, 3
    %p151 = por %p149, %p150
    %p152 = scmp.ne.s32.totalorder %s141, %s142
    %p153 = scmp.eq.s32.totalorder %s18, 0
    %p154 = por %p152, %p153
    %p155 = scmp.ne.s32.totalorder %s141, %s142
    %p156 = scmp.eq.s32.totalorder %s19, 3
    %p157 = por %p155, %p156
    %p159 = scmp.ne.s32.totalorder %s142, %s158
    %p160 = scmp.eq.s32.totalorder %s19, 0
    %p161 = por %p159, %p160
    %s162 = ssub.s32 %s13, %s20
    %p163 = scmp.eq.s32.totalorder %s162, 0
    %s165 = sadd.s32 %s164, 1
    %s166 = scalar_select %p163, %s164, %s165
    %p169 = pneg %p163
    %p170 = scmp.eq.s32.totalorder %s13, 3
    %p171 = por %p169, %p170
    %p172 = scmp.ne.s32.totalorder %s164, %s167
    %p173 = scmp.eq.s32.totalorder %s13, 0
    %p174 = por %p172, %p173
    %p175 = scmp.ne.s32.totalorder %s164, %s167
    %p176 = scmp.eq.s32.totalorder %s18, 3
    %p177 = por %p175, %p176
    %p178 = scmp.ne.s32.totalorder %s167, %s168
    %p179 = scmp.eq.s32.totalorder %s18, 0
    %p180 = por %p178, %p179
    %p181 = scmp.ne.s32.totalorder %s167, %s168
    %p182 = scmp.eq.s32.totalorder %s19, 3
    %p183 = por %p181, %p182
    %p185 = scmp.ne.s32.totalorder %s168, %s184
    %p186 = scmp.eq.s32.totalorder %s19, 0
    %p187 = por %p185, %p186
    %p188 = scmp.le.s32.totalorder 1, %s13
    %p189 = scmp.lt.s32.totalorder %s13, 5
    %p190 = pnand %p188, %p189
    %p191 = pneg %p190
    // Predicated region
    $region9: #{_lambda_.4} parent=5 // pred_check
      _
    $region10: #{_lambda_.4} parent=5 // pred_check_branch
      %193 = sbr.rel (%p190) target = $region12
    $region11: #{_lambda_.4} parent=5 // pred_region
      %s194 = ssub.s32 %s13, 1
      // Predicated region
      $region13: #{_lambda_.4} parent=11 // pred_check
        %p195 = pneg %p60
      $region14: #{_lambda_.4} parent=11 // pred_check_branch
        %197 = sbr.rel (%p195) target = $region16
      $region15: #{_lambda_.4} parent=11 // pred_region
        _
      $region16: #{_lambda_.4} parent=11 // pred_fallthru
        _
      // Predicated region
      $region17: #{_lambda_.4} parent=11 // pred_check
        %p198 = pneg %p81
      $region18: #{_lambda_.4} parent=11 // pred_check_branch
        %200 = sbr.rel (%p198) target = $region20
      $region19: #{_lambda_.4} parent=11 // pred_region
        _
      $region20: #{_lambda_.4} parent=11 // pred_fallthru
        _
      // Predicated region
      $region21: #{_lambda_.4} parent=11 // pred_check
        %p201 = pneg %p102
      $region22: #{_lambda_.4} parent=11 // pred_check_branch
        %203 = sbr.rel (%p201) target = $region24
      $region23: #{_lambda_.4} parent=11 // pred_region
        _
      $region24: #{_lambda_.4} parent=11 // pred_fallthru
        _
    $region12: #{_lambda_.4} parent=5 // pred_fallthru
      _
    %p204 = scmp.lt.s32.totalorder %s13, 4
    // Predicated region
    $region25: #{_lambda_.4} parent=5 // pred_check
      %p205 = pneg %p204
    $region26: #{_lambda_.4} parent=5 // pred_check_branch
      %207 = sbr.rel (%p205) target = $region28
    $region27: #{_lambda_.4} parent=5 // pred_region
      // Predicated region
      $region29: #{_lambda_.4} parent=27 // pred_check
        %p208 = pneg %p33
      $region30: #{_lambda_.4} parent=27 // pred_check_branch
        %210 = sbr.rel (%p208) target = $region32
      $region31: #{_lambda_.4} parent=27 // pred_region
        %s211 = smul.u32 16, %s13
        %p212 = scmp.lt.s32.totalorder %s211, 63
        %s213 = scalar_select %p212, %s211, 63
        %s214 = smul.addr %s213, 8
        %s215 = scalar_lea.vmem %s0, %s214
        %s216 = smul.u32 16, %s13
      $region32: #{_lambda_.4} parent=27 // pred_fallthru
        _
    $region28: #{_lambda_.4} parent=5 // pred_fallthru
      _
    %p217 = scmp.le.s32.totalorder 1, %s13
    %p218 = scmp.lt.s32.totalorder %s13, 5
    %p219 = pnand %p217, %p218
    %p220 = pneg %p219
    // Predicated region
    $region33: #{_lambda_.4} parent=5 // pred_check
      _
    $region34: #{_lambda_.4} parent=5 // pred_check_branch
      %222 = sbr.rel (%p219) target = $region36
    $region35: #{_lambda_.4} parent=5 // pred_region
      %s223 = ssub.s32 %s13, 1
      %s224 = smul.u32 16, %s18
      %p225 = scmp.lt.s32.totalorder %s224, 63
      %s226 = scalar_select %p225, %s224, 63
      %s227 = smul.addr %s226, 8
      %s228 = scalar_lea.vmem %s0, %s227
      %p229 = pneg %p39
      %p230 = pneg %p36
      %p231 = pneg %p60
      %p232 = pneg %p57
      %p233 = pneg %p81
      %p234 = pneg %p78
      %p235 = pneg %p102
      %p236 = pneg %p99
      %p237 = pneg %p128
      %p238 = pneg %p125
      %s239 = smul.u32 16, %s18
      %p240 = scmp.lt.s32.totalorder %s239, 63
      %s241 = scalar_select %p240, %s239, 63
      %s242 = smul.addr %s241, 8
      %s243 = scalar_lea.vmem %s4, %s242
      %p244 = pneg %p154
      %p245 = pneg %p151
      %p246 = scmp.lt.s32.totalorder %s18, 3
      %s247 = scalar_select %p246, %s18, 3
      %s248 = smul.addr %s247, 8
      %s249 = scalar_lea.vmem %s5, %s248
      %p250 = pneg %p180
      %p251 = pneg %p177
      %p252 = scmp.lt.s32.totalorder %s18, 3
      %s253 = scalar_select %p252, %s18, 3
      %s254 = smul.addr %s253, 8
      %s255 = scalar_lea.vmem %s6, %s254
      %s256 = smul.u32 16, %s18
      %p257 = scmp.lt.s32.totalorder %s256, 63
      %s258 = scalar_select %p257, %s256, 63
      %s259 = smul.addr %s258, 8
      %s260 = scalar_lea.vmem %s0, %s259
      %s261 = smul.u32 16, %s18
      %s262 = smul.u32 16, %s18
      %p263 = scmp.lt.s32.totalorder %s262, 63
      %s264 = scalar_select %p263, %s262, 63
      %s265 = smul.addr %s264, 8
      %s266 = scalar_lea.vmem %s4, %s265
      %s267 = smul.u32 16, %s18
      %p268 = scmp.lt.s32.totalorder %s18, 3
      %s269 = scalar_select %p268, %s18, 3
      %s270 = smul.addr %s269, 8
      %s271 = scalar_lea.vmem %s5, %s270
      %p272 = scmp.lt.s32.totalorder %s18, 3
      %s273 = scalar_select %p272, %s18, 3
      %s274 = smul.addr %s273, 8
      %s275 = scalar_lea.vmem %s6, %s274
      %v276 = vld [vmem:[%s260] sm:$0xff]
      %v277 = vld [vmem:[%s260 + $0x8] sm:$0xff]
      %v278 = vld [vmem:[%s260 + $0x10] sm:$0xff]
      %v279 = vld [vmem:[%s260 + $0x18] sm:$0xff]
      %v280 = vld [vmem:[%s260 + $0x20] sm:$0xff]
      %v281 = vld [vmem:[%s260 + $0x28] sm:$0xff]
      %v282 = vld [vmem:[%s260 + $0x30] sm:$0xff]
      %v283 = vld [vmem:[%s260 + $0x38] sm:$0xff]
      %v284 = vld [vmem:[%s260 + $0x40] sm:$0xff]
      %v285 = vld [vmem:[%s260 + $0x48] sm:$0xff]
      %v286 = vld [vmem:[%s260 + $0x50] sm:$0xff]
      %v287 = vld [vmem:[%s260 + $0x58] sm:$0xff]
      %v288 = vld [vmem:[%s260 + $0x60] sm:$0xff]
      %v289 = vld [vmem:[%s260 + $0x68] sm:$0xff]
      %v290 = vld [vmem:[%s260 + $0x70] sm:$0xff]
      %v291 = vld [vmem:[%s260 + $0x78] sm:$0xff]
      %v292 = vld [vmem:[%s1] sm:$0x1]
      %v294 = vlaneseq
      %v295 = vshrl.u32 %v294, 7
      %v296 = vsub.s32 0, %v295
      %v297 = vrot.slane %v292, %v296
      %v299 = vmul.f32 %v276, %v297
      %v300 = vmul.f32 %v277, %v297
      %v301 = vmul.f32 %v278, %v297
      %v302 = vmul.f32 %v279, %v297
      %v303 = vmul.f32 %v280, %v297
      %v304 = vmul.f32 %v281, %v297
      %v305 = vmul.f32 %v282, %v297
      %v306 = vmul.f32 %v283, %v297
      %v307 = vmul.f32 %v284, %v297
      %v308 = vmul.f32 %v285, %v297
      %v309 = vmul.f32 %v286, %v297
      %v310 = vmul.f32 %v287, %v297
      %v311 = vmul.f32 %v288, %v297
      %v312 = vmul.f32 %v289, %v297
      %v313 = vmul.f32 %v290, %v297
      %v314 = vmul.f32 %v291, %v297
      %v315 = vld [vmem:[%s2] sm:$0x1]
      %v317 = vlaneseq
      %v318 = vshrl.u32 %v317, 7
      %v319 = vsub.s32 0, %v318
      %v320 = vrot.slane %v315, %v319
      %v322 = vadd.f32 %v299, %v320
      %v323 = vadd.f32 %v300, %v320
      %v324 = vadd.f32 %v301, %v320
      %v325 = vadd.f32 %v302, %v320
      %v326 = vadd.f32 %v303, %v320
      %v327 = vadd.f32 %v304, %v320
      %v328 = vadd.f32 %v305, %v320
      %v329 = vadd.f32 %v306, %v320
      %v330 = vadd.f32 %v307, %v320
      %v331 = vadd.f32 %v308, %v320
      %v332 = vadd.f32 %v309, %v320
      %v333 = vadd.f32 %v310, %v320
      %v334 = vadd.f32 %v311, %v320
      %v335 = vadd.f32 %v312, %v320
      %v336 = vadd.f32 %v313, %v320
      %v337 = vadd.f32 %v314, %v320
      %v338 = vmax.f32 %v322, 0.0
      %v339 = vmax.f32 %v323, 0.0
      %v340 = vmax.f32 %v324, 0.0
      %v341 = vmax.f32 %v325, 0.0
      %v342 = vmax.f32 %v326, 0.0
      %v343 = vmax.f32 %v327, 0.0
      %v344 = vmax.f32 %v328, 0.0
      %v345 = vmax.f32 %v329, 0.0
      %v346 = vmax.f32 %v330, 0.0
      %v347 = vmax.f32 %v331, 0.0
      %v348 = vmax.f32 %v332, 0.0
      %v349 = vmax.f32 %v333, 0.0
      %v350 = vmax.f32 %v334, 0.0
      %v351 = vmax.f32 %v335, 0.0
      %v352 = vmax.f32 %v336, 0.0
      %v353 = vmax.f32 %v337, 0.0
      %v354 = vld [vmem:[%s3] sm:$0xff]
      %vm355 = vcmask 64512
      %v357 = vsel %vm355, %v338, 0
      %v360 = vsel %vm355, %v339, 0
      %v363 = vsel %vm355, %v340, 0
      %v366 = vsel %vm355, %v341, 0
      %v369 = vsel %vm355, %v342, 0
      %v372 = vsel %vm355, %v343, 0
      %v375 = vsel %vm355, %v344, 0
      %v378 = vsel %vm355, %v345, 0
      %v381 = vsel %vm355, %v346, 0
      %v384 = vsel %vm355, %v347, 0
      %v387 = vsel %vm355, %v348, 0
      %v390 = vsel %vm355, %v349, 0
      %v393 = vsel %vm355, %v350, 0
      %v396 = vsel %vm355, %v351, 0
      %v399 = vsel %vm355, %v352, 0
      %v402 = vsel %vm355, %v353, 0
      %404 = vmatprep.subr.mxu0 0.0
      %405 = vmatpush1.msra.mxu0 %v354
      %406 = vmatprep.subr.mxu0 0.0
      %407 = vmatpush1.msra.mxu0 0.0
      %408 = vmatprep.subr.mxu0 0.0
      %409 = vmatpush1.msra.mxu0 0.0
      %410 = vmatprep.subr.mxu0 0.0
      %411 = vmatpush1.msra.mxu0 0.0
      %412 = vmatprep.subr.mxu0 0.0
      %413 = vmatpush1.msra.mxu0 0.0
      %414 = vmatprep.subr.mxu0 0.0
      %415 = vmatpush1.msra.mxu0 0.0
      %416 = vmatprep.subr.mxu0 0.0
      %417 = vmatpush1.msra.mxu0 0.0
      %418 = vmatprep.subr.mxu0 0.0
      %419 = vmatpush1.msra.mxu0 0.0
      %420 = vmatprep.subr.mxu0 0.0
      %421 = vmatpush1.msra.mxu0 0.0
      %422 = vmatprep.subr.mxu0 0.0
      %423 = vmatpush1.msra.mxu0 0.0
      %424 = vmatprep.subr.mxu0 0.0
      %425 = vmatpush1.msra.mxu0 0.0
      %426 = vmatprep.subr.mxu0 0.0
      %427 = vmatpush1.msra.mxu0 0.0
      %428 = vmatprep.subr.mxu0 0.0
      %429 = vmatpush1.msra.mxu0 0.0
      %430 = vmatprep.subr.mxu0 0.0
      %431 = vmatpush1.msra.mxu0 0.0
      %432 = vmatprep.subr.mxu0 0.0
      %433 = vmatpush1.msra.mxu0 0.0
      %434 = vmatprep.subr.mxu0 0.0
      %435 = vmatpush1.msra.mxu0 0.0
      %436 = vmatprep.subr.mxu0 0.0
      %437 = vmatpush1.msra.mxu0 0.0
      %438 = vmatprep.subr.mxu0 0.0
      %439 = vmatpush1.msra.mxu0 0.0
      %440 = vmatprep.subr.mxu0 0.0
      %441 = vmatpush1.msra.mxu0 0.0
      %442 = vmatprep.subr.mxu0 0.0
      %443 = vmatpush1.msra.mxu0 0.0
      %444 = vmatprep.subr.mxu0 0.0
      %445 = vmatpush1.msra.mxu0 0.0
      %446 = vmatprep.subr.mxu0 0.0
      %447 = vmatpush1.msra.mxu0 0.0
      %448 = vmatprep.subr.mxu0 0.0
      %449 = vmatpush1.msra.mxu0 0.0
      %450 = vmatprep.subr.mxu0 0.0
      %451 = vmatpush1.msra.mxu0 0.0
      %452 = vmatprep.subr.mxu0 0.0
      %453 = vmatpush1.msra.mxu0 0.0
      %454 = vmatprep.subr.mxu0 0.0
      %455 = vmatpush1.msra.mxu0 0.0
      %456 = vmatprep.subr.mxu0 0.0
      %457 = vmatpush1.msra.mxu0 0.0
      %458 = vmatprep.subr.mxu0 0.0
      %459 = vmatpush1.msra.mxu0 0.0
      %460 = vmatprep.subr.mxu0 0.0
      %461 = vmatpush1.msra.mxu0 0.0
      %462 = vmatprep.subr.mxu0 0.0
      %463 = vmatpush1.msra.mxu0 0.0
      %464 = vmatprep.subr.mxu0 0.0
      %465 = vmatpush1.msra.mxu0 0.0
      %466 = vmatprep.subr.mxu0 0.0
      %467 = vmatpush1.msra.mxu0 0.0
      %468 = vmatprep.mubr.f32.mxu0 0.0
      %469 = vmatmul.mubr.f32.gmra.mrb[0].mxu0 %v357
      %v470 = vpop.f32.mrb[0].mxu0
      %v471 = vadd.f32 0.0, %v470
      %v472 = vpop.f32.mrb[0].mxu0
      %473 = vmatprep.mubr.f32.mxu0 0.0
      %474 = vmatmul.mubr.f32.gmra.mrb[0].mxu0 %v360
      %v475 = vpop.f32.mrb[0].mxu0
      %v476 = vadd.f32 0.0, %v475
      %v477 = vpop.f32.mrb[0].mxu0
      %478 = vmatprep.mubr.f32.mxu0 0.0
      %479 = vmatmul.mubr.f32.gmra.mrb[0].mxu0 %v363
      %v480 = vpop.f32.mrb[0].mxu0
      %v481 = vadd.f32 0.0, %v480
      %v482 = vpop.f32.mrb[0].mxu0
      %483 = vmatprep.mubr.f32.mxu0 0.0
      %484 = vmatmul.mubr.f32.gmra.mrb[0].mxu0 %v366
      %v485 = vpop.f32.mrb[0].mxu0
      %v486 = vadd.f32 0.0, %v485
      %v487 = vpop.f32.mrb[0].mxu0
      %488 = vmatprep.mubr.f32.mxu0 0.0
      %489 = vmatmul.mubr.f32.gmra.mrb[0].mxu0 %v369
      %v490 = vpop.f32.mrb[0].mxu0
      %v491 = vadd.f32 0.0, %v490
      %v492 = vpop.f32.mrb[0].mxu0
      %493 = vmatprep.mubr.f32.mxu0 0.0
      %494 = vmatmul.mubr.f32.gmra.mrb[0].mxu0 %v372
      %v495 = vpop.f32.mrb[0].mxu0
      %v496 = vadd.f32 0.0, %v495
      %v497 = vpop.f32.mrb[0].mxu0
      %498 = vmatprep.mubr.f32.mxu0 0.0
      %499 = vmatmul.mubr.f32.gmra.mrb[0].mxu0 %v375
      %v500 = vpop.f32.mrb[0].mxu0
      %v501 = vadd.f32 0.0, %v500
      %v502 = vpop.f32.mrb[0].mxu0
      %503 = vmatprep.mubr.f32.mxu0 0.0
      %504 = vmatmul.mubr.f32.gmra.mrb[0].mxu0 %v378
      %v505 = vpop.f32.mrb[0].mxu0
      %v506 = vadd.f32 0.0, %v505
      %v507 = vpop.f32.mrb[0].mxu0
      %508 = vmatprep.mubr.f32.mxu0 0.0
      %509 = vmatmul.mubr.f32.gmra.mrb[0].mxu0 %v381
      %v510 = vpop.f32.mrb[0].mxu0
      %v511 = vadd.f32 0.0, %v510
      %v512 = vpop.f32.mrb[0].mxu0
      %513 = vmatprep.mubr.f32.mxu0 0.0
      %514 = vmatmul.mubr.f32.gmra.mrb[0].mxu0 %v384
      %v515 = vpop.f32.mrb[0].mxu0
      %v516 = vadd.f32 0.0, %v515
      %v517 = vpop.f32.mrb[0].mxu0
      %518 = vmatprep.mubr.f32.mxu0 0.0
      %519 = vmatmul.mubr.f32.gmra.mrb[0].mxu0 %v387
      %v520 = vpop.f32.mrb[0].mxu0
      %v521 = vadd.f32 0.0, %v520
      %v522 = vpop.f32.mrb[0].mxu0
      %523 = vmatprep.mubr.f32.mxu0 0.0
      %524 = vmatmul.mubr.f32.gmra.mrb[0].mxu0 %v390
      %v525 = vpop.f32.mrb[0].mxu0
      %v526 = vadd.f32 0.0, %v525
      %v527 = vpop.f32.mrb[0].mxu0
      %528 = vmatprep.mubr.f32.mxu0 0.0
      %529 = vmatmul.mubr.f32.gmra.mrb[0].mxu0 %v393
      %v530 = vpop.f32.mrb[0].mxu0
      %v531 = vadd.f32 0.0, %v530
      %v532 = vpop.f32.mrb[0].mxu0
      %533 = vmatprep.mubr.f32.mxu0 0.0
      %534 = vmatmul.mubr.f32.gmra.mrb[0].mxu0 %v396
      %v535 = vpop.f32.mrb[0].mxu0
      %v536 = vadd.f32 0.0, %v535
      %v537 = vpop.f32.mrb[0].mxu0
      %538 = vmatprep.mubr.f32.mxu0 0.0
      %539 = vmatmul.mubr.f32.gmra.mrb[0].mxu0 %v399
      %v540 = vpop.f32.mrb[0].mxu0
      %v541 = vadd.f32 0.0, %v540
      %v542 = vpop.f32.mrb[0].mxu0
      %543 = vmatprep.mubr.f32.mxu0 0.0
      %544 = vmatmul.mubr.f32.gmra.mrb[0].mxu0 %v402
      %v545 = vpop.f32.mrb[0].mxu0
      %v546 = vadd.f32 0.0, %v545
      %v547 = vpop.f32.mrb[0].mxu0
      %548 = vdwg.mxu0
      %vm549 = vcmask 130048
      %550 = vst.msk [vmem:[%s266] sm:$0xff] %vm549, %v471
      %551 = vst.msk [vmem:[%s266 + $0x8] sm:$0xff] %vm549, %v476
      %552 = vst.msk [vmem:[%s266 + $0x10] sm:$0xff] %vm549, %v481
      %553 = vst.msk [vmem:[%s266 + $0x18] sm:$0xff] %vm549, %v486
      %554 = vst.msk [vmem:[%s266 + $0x20] sm:$0xff] %vm549, %v491
      %555 = vst.msk [vmem:[%s266 + $0x28] sm:$0xff] %vm549, %v496
      %556 = vst.msk [vmem:[%s266 + $0x30] sm:$0xff] %vm549, %v501
      %557 = vst.msk [vmem:[%s266 + $0x38] sm:$0xff] %vm549, %v506
      %558 = vst.msk [vmem:[%s266 + $0x40] sm:$0xff] %vm549, %v511
      %559 = vst.msk [vmem:[%s266 + $0x48] sm:$0xff] %vm549, %v516
      %560 = vst.msk [vmem:[%s266 + $0x50] sm:$0xff] %vm549, %v521
      %561 = vst.msk [vmem:[%s266 + $0x58] sm:$0xff] %vm549, %v526
      %562 = vst.msk [vmem:[%s266 + $0x60] sm:$0xff] %vm549, %v531
      %563 = vst.msk [vmem:[%s266 + $0x68] sm:$0xff] %vm549, %v536
      %564 = vst.msk [vmem:[%s266 + $0x70] sm:$0xff] %vm549, %v541
      %565 = vst.msk [vmem:[%s266 + $0x78] sm:$0xff] %vm549, %v546
      %v566 = vsel %vm549, %v471, 0.0
      %v567 = vsel %vm549, %v476, 0.0
      %v568 = vadd.f32 %v566, %v567
      %v569 = vsel %vm549, %v481, 0.0
      %v570 = vadd.f32 %v568, %v569
      %v571 = vsel %vm549, %v486, 0.0
      %v572 = vadd.f32 %v570, %v571
      %v573 = vsel %vm549, %v491, 0.0
      %v574 = vadd.f32 %v572, %v573
      %v575 = vsel %vm549, %v496, 0.0
      %v576 = vadd.f32 %v574, %v575
      %v577 = vsel %vm549, %v501, 0.0
      %v578 = vadd.f32 %v576, %v577
      %v579 = vsel %vm549, %v506, 0.0
      %v580 = vadd.f32 %v578, %v579
      %v581 = vsel %vm549, %v511, 0.0
      %v582 = vadd.f32 %v580, %v581
      %v583 = vsel %vm549, %v516, 0.0
      %v584 = vadd.f32 %v582, %v583
      %v585 = vsel %vm549, %v521, 0.0
      %v586 = vadd.f32 %v584, %v585
      %v587 = vsel %vm549, %v526, 0.0
      %v588 = vadd.f32 %v586, %v587
      %v589 = vsel %vm549, %v531, 0.0
      %v590 = vadd.f32 %v588, %v589
      %v591 = vsel %vm549, %v536, 0.0
      %v592 = vadd.f32 %v590, %v591
      %v593 = vsel %vm549, %v541, 0.0
      %v594 = vadd.f32 %v592, %v593
      %v595 = vsel %vm549, %v546, 0.0
      %v596 = vadd.f32 %v594, %v595
      %v597 = vrot.slane %v596, 4
      %v598 = vadd.f32 %v596, %v597
      %v599 = vrot.slane %v598, 2
      %v600 = vadd.f32 %v598, %v599
      %v601 = vrot.slane %v600, 1
      %v602 = vadd.f32 %v600, %v601
      %v603 = vmul.f32 %v471, %v471
      %v604 = vmul.f32 %v476, %v476
      %v605 = vmul.f32 %v481, %v481
      %v606 = vmul.f32 %v486, %v486
      %v607 = vmul.f32 %v491, %v491
      %v608 = vmul.f32 %v496, %v496
      %v609 = vmul.f32 %v501, %v501
      %v610 = vmul.f32 %v506, %v506
      %v611 = vmul.f32 %v511, %v511
      %v612 = vmul.f32 %v516, %v516
      %v613 = vmul.f32 %v521, %v521
      %v614 = vmul.f32 %v526, %v526
      %v615 = vmul.f32 %v531, %v531
      %v616 = vmul.f32 %v536, %v536
      %v617 = vmul.f32 %v541, %v541
      %v618 = vmul.f32 %v546, %v546
      %v619 = vsel %vm549, %v603, 0.0
      %v620 = vsel %vm549, %v604, 0.0
      %v621 = vadd.f32 %v619, %v620
      %v622 = vsel %vm549, %v605, 0.0
      %v623 = vadd.f32 %v621, %v622
      %v624 = vsel %vm549, %v606, 0.0
      %v625 = vadd.f32 %v623, %v624
      %v626 = vsel %vm549, %v607, 0.0
      %v627 = vadd.f32 %v625, %v626
      %v628 = vsel %vm549, %v608, 0.0
      %v629 = vadd.f32 %v627, %v628
      %v630 = vsel %vm549, %v609, 0.0
      %v631 = vadd.f32 %v629, %v630
      %v632 = vsel %vm549, %v610, 0.0
      %v633 = vadd.f32 %v631, %v632
      %v634 = vsel %vm549, %v611, 0.0
      %v635 = vadd.f32 %v633, %v634
      %v636 = vsel %vm549, %v612, 0.0
      %v637 = vadd.f32 %v635, %v636
      %v638 = vsel %vm549, %v613, 0.0
      %v639 = vadd.f32 %v637, %v638
      %v640 = vsel %vm549, %v614, 0.0
      %v641 = vadd.f32 %v639, %v640
      %v642 = vsel %vm549, %v615, 0.0
      %v643 = vadd.f32 %v641, %v642
      %v644 = vsel %vm549, %v616, 0.0
      %v645 = vadd.f32 %v643, %v644
      %v646 = vsel %vm549, %v617, 0.0
      %v647 = vadd.f32 %v645, %v646
      %v648 = vsel %vm549, %v618, 0.0
      %v649 = vadd.f32 %v647, %v648
      %v650 = vrot.slane %v649, 4
      %v651 = vadd.f32 %v649, %v650
      %v652 = vrot.slane %v651, 2
      %v653 = vadd.f32 %v651, %v652
      %v654 = vrot.slane %v653, 1
      %v655 = vadd.f32 %v653, %v654
      %vm656 = vcmask 1040384
      %v657 = vsel %vm656, %v602, 0.0
      %658 = vst.msk [vmem:[%s271] sm:$0xff] %vm549, %v657
      %v659 = vsel %vm656, %v655, 0.0
      %660 = vst.msk [vmem:[%s275] sm:$0xff] %vm549, %v659
      %s661 = smul.u32 16, %s18
      %p662 = scmp.lt.s32.totalorder %s661, 63
      %s663 = scalar_select %p662, %s661, 63
      %s664 = smul.addr %s663, 8
      %s665 = scalar_lea.vmem %s4, %s664
      %p666 = scmp.lt.s32.totalorder %s18, 3
      %s667 = scalar_select %p666, %s18, 3
      %s668 = smul.addr %s667, 8
      %s669 = scalar_lea.vmem %s5, %s668
      %p670 = scmp.lt.s32.totalorder %s18, 3
      %s671 = scalar_select %p670, %s18, 3
      %s672 = smul.addr %s671, 8
      %s673 = scalar_lea.vmem %s6, %s672
      // Predicated region
      $region37: #{_lambda_.4} parent=35 // pred_check
        %p674 = pneg %p125
      $region38: #{_lambda_.4} parent=35 // pred_check_branch
        %676 = sbr.rel (%p674) target = $region40
      $region39: #{_lambda_.4} parent=35 // pred_region
        %s677 = smul.u32 16, %s18
      $region40: #{_lambda_.4} parent=35 // pred_fallthru
        _
      // Predicated region
      $region41: #{_lambda_.4} parent=35 // pred_check
        %p678 = pneg %p151
      $region42: #{_lambda_.4} parent=35 // pred_check_branch
        %680 = sbr.rel (%p678) target = $region44
      $region43: #{_lambda_.4} parent=35 // pred_region
        _
      $region44: #{_lambda_.4} parent=35 // pred_fallthru
        _
      // Predicated region
      $region45: #{_lambda_.4} parent=35 // pred_check
        %p681 = pneg %p177
      $region46: #{_lambda_.4} parent=35 // pred_check_branch
        %683 = sbr.rel (%p681) target = $region48
      $region47: #{_lambda_.4} parent=35 // pred_region
        _
      $region48: #{_lambda_.4} parent=35 // pred_fallthru
        _
    $region36: #{_lambda_.4} parent=5 // pred_fallthru
      _
    %p684 = scmp.le.s32.totalorder 2, %s13
    // Predicated region
    $region49: #{_lambda_.4} parent=5 // pred_check
      %p685 = pneg %p684
    $region50: #{_lambda_.4} parent=5 // pred_check_branch
      %687 = sbr.rel (%p685) target = $region52
    $region51: #{_lambda_.4} parent=5 // pred_region
      %s688 = ssub.s32 %s13, 2
      // Predicated region
      $region53: #{_lambda_.4} parent=51 // pred_check
        %p689 = pneg %p131
      $region54: #{_lambda_.4} parent=51 // pred_check_branch
        %691 = sbr.rel (%p689) target = $region56
      $region55: #{_lambda_.4} parent=51 // pred_region
        %s692 = smul.u32 16, %s19
        %p693 = scmp.lt.s32.totalorder %s692, 63
        %s694 = scalar_select %p693, %s692, 63
        %s695 = smul.addr %s694, 8
        %s696 = scalar_lea.vmem %s4, %s695
      $region56: #{_lambda_.4} parent=51 // pred_fallthru
        _
      // Predicated region
      $region57: #{_lambda_.4} parent=51 // pred_check
        %p697 = pneg %p157
      $region58: #{_lambda_.4} parent=51 // pred_check_branch
        %699 = sbr.rel (%p697) target = $region60
      $region59: #{_lambda_.4} parent=51 // pred_region
        %p700 = scmp.lt.s32.totalorder %s19, 3
        %s701 = scalar_select %p700, %s19, 3
        %s702 = smul.addr %s701, 8
        %s703 = scalar_lea.vmem %s5, %s702
      $region60: #{_lambda_.4} parent=51 // pred_fallthru
        _
      // Predicated region
      $region61: #{_lambda_.4} parent=51 // pred_check
        %p704 = pneg %p183
      $region62: #{_lambda_.4} parent=51 // pred_check_branch
        %706 = sbr.rel (%p704) target = $region64
      $region63: #{_lambda_.4} parent=51 // pred_region
        %p707 = scmp.lt.s32.totalorder %s19, 3
        %s708 = scalar_select %p707, %s19, 3
        %s709 = smul.addr %s708, 8
        %s710 = scalar_lea.vmem %s6, %s709
      $region64: #{_lambda_.4} parent=51 // pred_fallthru
        _
    $region52: #{_lambda_.4} parent=5 // pred_fallthru
      _
  $region6: #{_lambda_.4} parent=0 // loop_footer
    %s17 = sadd.s32 1, %s13
  $region7: #{_lambda_.4} parent=0 // loop_footer_branch
    %12 = sbr.rel target = $region3
  $region8: #{_lambda_.4} parent=0 // loop_exit
    _

// kernel: _lambda_.5
$region0: #{_lambda_.5}
  #allocation0 [shape = 'u32[]', space=smem, size = 0x4, offset = 0x4, fixed_abs, tag = 'smem constant byte address 0x4 - core index']
  #allocation1 [shape = 'u32[144,128]{1,0:T(1,128)}', space=vmem, size = 0x12000, scoped, tag = 'internal scratch']
  #allocation2 [shape = 'f32[18,32,16]{2,1,0:T(8,128)}', space=vmem, size = 0x48000, scoped, tag = 'scratch operand']
  %s0 = inlined_call_operand.vmem [shape: f32[2,16,16,16], index: 0, kind: input, shape index: {}]
  %s1 = inlined_call_operand.vmem [shape: f32[2,256,8], index: 1, kind: input, shape index: {}]
  %s2 = inlined_call_operand.vmem [shape: f32[1,16], index: 2, kind: input, shape index: {}]
  %s3 = inlined_call_operand.vmem [shape: f32[1,16], index: 3, kind: input, shape index: {}]
  %s4 = inlined_call_operand.vmem [shape: f32[144,4], index: 4, kind: input, shape index: {}]
  %s5 = inlined_call_operand.vmem [shape: f32[2,256,12], index: 5, kind: output, shape index: {}]
  %s6 = sld [smem:[#allocation0]]
  $region53: #{_lambda_.5} parent=0
    _
  %s8 = ssub.s32 1, %s6
  %s9 = scalar_select 0, %s8, %s6
  loop: start=0, step=1, limit=4
  $region2: #{_lambda_.5} parent=0 // loop_pre_header
    _
  $region3: #{_lambda_.5} parent=0 // loop_header
    %s11 = sphi 0, %s15
    %p12 = scmp.ge.s32.totalorder %s11, 4
    %s21 = sphi 0, %s23
    %s24 = sphi 0, %s21
    %s25 = sphi 0, %s24
    %s41 = sphi 0, %s25
    %s47 = sphi 0, %s49
    %s50 = sphi 0, %s47
    %s51 = sphi 0, %s50
    %s67 = sphi 0, %s51
    %s71 = sphi 0, %s71
    %s73 = sphi 0, %s71
    %s74 = sphi 0, %s73
    %s88 = sphi 0, %s74
    %s92 = sphi 0, %s92
    %s94 = sphi 0, %s92
    %s95 = sphi 0, %s94
    %s109 = sphi 0, %s95
    %s113 = sphi 0, %s113
    %s115 = sphi 0, %s113
    %s116 = sphi 0, %s115
    %s130 = sphi 0, %s116
    %s136 = sphi 0, %s138
    %s139 = sphi 0, %s136
    %s140 = sphi 0, %s139
    %s156 = sphi 0, %s140
  $region4: #{_lambda_.5} parent=0 // loop_header_branch
    %14 = sbr.rel (%p12) target = $region8
  $region5: #{_lambda_.5} parent=0 // loop_body
    %s16 = ssub.s32 %s11, 1
    %s17 = ssub.s32 %s11, 2
    %s18 = sadd.s32 %s11, 1
    %s19 = ssub.s32 %s11, %s18
    %p20 = scmp.eq.s32.totalorder %s19, 0
    %s22 = sadd.s32 %s21, 1
    %s23 = scalar_select %p20, %s21, %s22
    %p26 = pneg %p20
    %p27 = scmp.eq.s32.totalorder %s11, 1
    %p28 = por %p26, %p27
    %p29 = scmp.ne.s32.totalorder %s21, %s24
    %p30 = scmp.eq.s32.totalorder %s11, 0
    %p31 = por %p29, %p30
    %p32 = scmp.ne.s32.totalorder %s21, %s24
    %p33 = scmp.eq.s32.totalorder %s16, 1
    %p34 = por %p32, %p33
    %p35 = scmp.ne.s32.totalorder %s24, %s25
    %p36 = scmp.eq.s32.totalorder %s16, 0
    %p37 = por %p35, %p36
    %p38 = scmp.ne.s32.totalorder %s24, %s25
    %p39 = scmp.eq.s32.totalorder %s17, 1
    %p40 = por %p38, %p39
    %p42 = scmp.ne.s32.totalorder %s25, %s41
    %p43 = scmp.eq.s32.totalorder %s17, 0
    %p44 = por %p42, %p43
    %s45 = ssub.s32 %s11, %s18
    %p46 = scmp.eq.s32.totalorder %s45, 0
    %s48 = sadd.s32 %s47, 1
    %s49 = scalar_select %p46, %s47, %s48
    %p52 = pneg %p46
    %p53 = scmp.eq.s32.totalorder %s11, 1
    %p54 = por %p52, %p53
    %p55 = scmp.ne.s32.totalorder %s47, %s50
    %p56 = scmp.eq.s32.totalorder %s11, 0
    %p57 = por %p55, %p56
    %p58 = scmp.ne.s32.totalorder %s47, %s50
    %p59 = scmp.eq.s32.totalorder %s16, 1
    %p60 = por %p58, %p59
    %p61 = scmp.ne.s32.totalorder %s50, %s51
    %p62 = scmp.eq.s32.totalorder %s16, 0
    %p63 = por %p61, %p62
    %p64 = scmp.ne.s32.totalorder %s50, %s51
    %p65 = scmp.eq.s32.totalorder %s17, 1
    %p66 = por %p64, %p65
    %p68 = scmp.ne.s32.totalorder %s51, %s67
    %p69 = scmp.eq.s32.totalorder %s17, 0
    %p70 = por %p68, %p69
    %s72 = sadd.s32 %s71, 1
    %p75 = scmp.eq.s32.totalorder %s11, 1
    %p76 = scmp.ne.s32.totalorder %s71, %s73
    %p77 = scmp.eq.s32.totalorder %s11, 0
    %p78 = por %p76, %p77
    %p79 = scmp.ne.s32.totalorder %s71, %s73
    %p80 = scmp.eq.s32.totalorder %s16, 1
    %p81 = por %p79, %p80
    %p82 = scmp.ne.s32.totalorder %s73, %s74
    %p83 = scmp.eq.s32.totalorder %s16, 0
    %p84 = por %p82, %p83
    %p85 = scmp.ne.s32.totalorder %s73, %s74
    %p86 = scmp.eq.s32.totalorder %s17, 1
    %p87 = por %p85, %p86
    %p89 = scmp.ne.s32.totalorder %s74, %s88
    %p90 = scmp.eq.s32.totalorder %s17, 0
    %p91 = por %p89, %p90
    %s93 = sadd.s32 %s92, 1
    %p96 = scmp.eq.s32.totalorder %s11, 1
    %p97 = scmp.ne.s32.totalorder %s92, %s94
    %p98 = scmp.eq.s32.totalorder %s11, 0
    %p99 = por %p97, %p98
    %p100 = scmp.ne.s32.totalorder %s92, %s94
    %p101 = scmp.eq.s32.totalorder %s16, 1
    %p102 = por %p100, %p101
    %p103 = scmp.ne.s32.totalorder %s94, %s95
    %p104 = scmp.eq.s32.totalorder %s16, 0
    %p105 = por %p103, %p104
    %p106 = scmp.ne.s32.totalorder %s94, %s95
    %p107 = scmp.eq.s32.totalorder %s17, 1
    %p108 = por %p106, %p107
    %p110 = scmp.ne.s32.totalorder %s95, %s109
    %p111 = scmp.eq.s32.totalorder %s17, 0
    %p112 = por %p110, %p111
    %s114 = sadd.s32 %s113, 1
    %p117 = scmp.eq.s32.totalorder %s11, 1
    %p118 = scmp.ne.s32.totalorder %s113, %s115
    %p119 = scmp.eq.s32.totalorder %s11, 0
    %p120 = por %p118, %p119
    %p121 = scmp.ne.s32.totalorder %s113, %s115
    %p122 = scmp.eq.s32.totalorder %s16, 1
    %p123 = por %p121, %p122
    %p124 = scmp.ne.s32.totalorder %s115, %s116
    %p125 = scmp.eq.s32.totalorder %s16, 0
    %p126 = por %p124, %p125
    %p127 = scmp.ne.s32.totalorder %s115, %s116
    %p128 = scmp.eq.s32.totalorder %s17, 1
    %p129 = por %p127, %p128
    %p131 = scmp.ne.s32.totalorder %s116, %s130
    %p132 = scmp.eq.s32.totalorder %s17, 0
    %p133 = por %p131, %p132
    %s134 = ssub.s32 %s11, %s18
    %p135 = scmp.eq.s32.totalorder %s134, 0
    %s137 = sadd.s32 %s136, 1
    %s138 = scalar_select %p135, %s136, %s137
    %p141 = pneg %p135
    %p142 = scmp.eq.s32.totalorder %s11, 1
    %p143 = por %p141, %p142
    %p144 = scmp.ne.s32.totalorder %s136, %s139
    %p145 = scmp.eq.s32.totalorder %s11, 0
    %p146 = por %p144, %p145
    %p147 = scmp.ne.s32.totalorder %s136, %s139
    %p148 = scmp.eq.s32.totalorder %s16, 1
    %p149 = por %p147, %p148
    %p150 = scmp.ne.s32.totalorder %s139, %s140
    %p151 = scmp.eq.s32.totalorder %s16, 0
    %p152 = por %p150, %p151
    %p153 = scmp.ne.s32.totalorder %s139, %s140
    %p154 = scmp.eq.s32.totalorder %s17, 1
    %p155 = por %p153, %p154
    %p157 = scmp.ne.s32.totalorder %s140, %s156
    %p158 = scmp.eq.s32.totalorder %s17, 0
    %p159 = por %p157, %p158
    %p160 = scmp.le.s32.totalorder 1, %s11
    %p161 = scmp.lt.s32.totalorder %s11, 3
    %p162 = pnand %p160, %p161
    %p163 = pneg %p162
    // Predicated region
    $region9: #{_lambda_.5} parent=5 // pred_check
      _
    $region10: #{_lambda_.5} parent=5 // pred_check_branch
      %165 = sbr.rel (%p162) target = $region12
    $region11: #{_lambda_.5} parent=5 // pred_region
      %s166 = ssub.s32 %s11, 1
      // Predicated region
      $region13: #{_lambda_.5} parent=11 // pred_check
        %p167 = pneg %p84
      $region14: #{_lambda_.5} parent=11 // pred_check_branch
        %169 = sbr.rel (%p167) target = $region16
      $region15: #{_lambda_.5} parent=11 // pred_region
        _
      $region16: #{_lambda_.5} parent=11 // pred_fallthru
        _
      // Predicated region
      $region17: #{_lambda_.5} parent=11 // pred_check
        %p170 = pneg %p105
      $region18: #{_lambda_.5} parent=11 // pred_check_branch
        %172 = sbr.rel (%p170) target = $region20
      $region19: #{_lambda_.5} parent=11 // pred_region
        _
      $region20: #{_lambda_.5} parent=11 // pred_fallthru
        _
      // Predicated region
      $region21: #{_lambda_.5} parent=11 // pred_check
        %p173 = pneg %p126
      $region22: #{_lambda_.5} parent=11 // pred_check_branch
        %175 = sbr.rel (%p173) target = $region24
      $region23: #{_lambda_.5} parent=11 // pred_region
        _
      $region24: #{_lambda_.5} parent=11 // pred_fallthru
        _
    $region12: #{_lambda_.5} parent=5 // pred_fallthru
      _
    %p176 = scmp.lt.s32.totalorder %s11, 2
    // Predicated region
    $region25: #{_lambda_.5} parent=5 // pred_check
      %p177 = pneg %p176
    $region26: #{_lambda_.5} parent=5 // pred_check_branch
      %179 = sbr.rel (%p177) target = $region28
    $region27: #{_lambda_.5} parent=5 // pred_region
      // Predicated region
      $region29: #{_lambda_.5} parent=27 // pred_check
        %p180 = pneg %p31
      $region30: #{_lambda_.5} parent=27 // pred_check_branch
        %182 = sbr.rel (%p180) target = $region32
      $region31: #{_lambda_.5} parent=27 // pred_region
        %p183 = scmp.lt.s32.totalorder %s11, 1
        %s184 = scalar_select %p183, %s11, 1
        %s185 = smul.addr %s184, 32
        %s186 = smul.addr %s185, 8
        %s187 = scalar_lea.vmem %s0, %s186
      $region32: #{_lambda_.5} parent=27 // pred_fallthru
        _
      // Predicated region
      $region33: #{_lambda_.5} parent=27 // pred_check
        %p188 = pneg %p57
      $region34: #{_lambda_.5} parent=27 // pred_check_branch
        %190 = sbr.rel (%p188) target = $region36
      $region35: #{_lambda_.5} parent=27 // pred_region
        %p191 = scmp.lt.s32.totalorder %s11, 1
        %s192 = scalar_select %p191, %s11, 1
        %s193 = smul.addr %s192, 32
        %s194 = smul.addr %s193, 8
        %s195 = scalar_lea.vmem %s1, %s194
      $region36: #{_lambda_.5} parent=27 // pred_fallthru
        _
    $region28: #{_lambda_.5} parent=5 // pred_fallthru
      _
    %p196 = scmp.le.s32.totalorder 1, %s11
    %p197 = scmp.lt.s32.totalorder %s11, 3
    %p198 = pnand %p196, %p197
    %p199 = pneg %p198
    // Predicated region
    $region37: #{_lambda_.5} parent=5 // pred_check
      _
    $region38: #{_lambda_.5} parent=5 // pred_check_branch
      %201 = sbr.rel (%p198) target = $region40
    $region39: #{_lambda_.5} parent=5 // pred_region
      %s202 = ssub.s32 %s11, 1
      %p203 = scmp.lt.s32.totalorder %s16, 1
      %s204 = scalar_select %p203, %s16, 1
      %s205 = smul.addr %s204, 32
      %s206 = smul.addr %s205, 8
      %s207 = scalar_lea.vmem %s0, %s206
      %p208 = pneg %p37
      %p209 = pneg %p34
      %p210 = scmp.lt.s32.totalorder %s16, 1
      %s211 = scalar_select %p210, %s16, 1
      %s212 = smul.addr %s211, 32
      %s213 = smul.addr %s212, 8
      %s214 = scalar_lea.vmem %s1, %s213
      %p215 = pneg %p63
      %p216 = pneg %p60
      %p217 = pneg %p84
      %p218 = pneg %p81
      %p219 = pneg %p105
      %p220 = pneg %p102
      %p221 = pneg %p126
      %p222 = pneg %p123
      %p223 = pneg %p152
      %p224 = pneg %p149
      %p225 = scmp.lt.s32.totalorder %s16, 1
      %s226 = scalar_select %p225, %s16, 1
      %s227 = smul.addr %s226, 32
      %s228 = smul.addr %s227, 8
      %s229 = scalar_lea.vmem %s5, %s228
      %p230 = scmp.lt.s32.totalorder %s16, 1
      %s231 = scalar_select %p230, %s16, 1
      %s232 = smul.addr %s231, 32
      %s233 = smul.addr %s232, 8
      %s234 = scalar_lea.vmem %s0, %s233
      %p235 = scmp.lt.s32.totalorder %s16, 1
      %s236 = scalar_select %p235, %s16, 1
      %s237 = smul.addr %s236, 32
      %s238 = smul.addr %s237, 8
      %s239 = scalar_lea.vmem %s1, %s238
      %p240 = scmp.lt.s32.totalorder %s16, 1
      %s241 = scalar_select %p240, %s16, 1
      %s242 = smul.addr %s241, 32
      %s243 = smul.addr %s242, 8
      %s244 = scalar_lea.vmem %s5, %s243
      %v245 = vld [vmem:[%s2] sm:$0x1]
      %v246 = vld [vmem:[%s3] sm:$0x1]
      %v247 = vld [vmem:[%s234] sm:$0xff]
      %v248 = vld [vmem:[%s234 + $0x8] sm:$0xff]
      %v249 = vld [vmem:[%s234 + $0x10] sm:$0xff]
      %v250 = vld [vmem:[%s234 + $0x18] sm:$0xff]
      %v251 = vld [vmem:[%s234 + $0x20] sm:$0xff]
      %v252 = vld [vmem:[%s234 + $0x28] sm:$0xff]
      %v253 = vld [vmem:[%s234 + $0x30] sm:$0xff]
      %v254 = vld [vmem:[%s234 + $0x38] sm:$0xff]
      %v255 = vld [vmem:[%s234 + $0x40] sm:$0xff]
      %v256 = vld [vmem:[%s234 + $0x48] sm:$0xff]
      %v257 = vld [vmem:[%s234 + $0x50] sm:$0xff]
      %v258 = vld [vmem:[%s234 + $0x58] sm:$0xff]
      %v259 = vld [vmem:[%s234 + $0x60] sm:$0xff]
      %v260 = vld [vmem:[%s234 + $0x68] sm:$0xff]
      %v261 = vld [vmem:[%s234 + $0x70] sm:$0xff]
      %v262 = vld [vmem:[%s234 + $0x78] sm:$0xff]
      %v263 = vld [vmem:[%s234 + $0x80] sm:$0xff]
      %v264 = vld [vmem:[%s234 + $0x88] sm:$0xff]
      %v265 = vld [vmem:[%s234 + $0x90] sm:$0xff]
      %v266 = vld [vmem:[%s234 + $0x98] sm:$0xff]
      %v267 = vld [vmem:[%s234 + $0xa0] sm:$0xff]
      %v268 = vld [vmem:[%s234 + $0xa8] sm:$0xff]
      %v269 = vld [vmem:[%s234 + $0xb0] sm:$0xff]
      %v270 = vld [vmem:[%s234 + $0xb8] sm:$0xff]
      %v271 = vld [vmem:[%s234 + $0xc0] sm:$0xff]
      %v272 = vld [vmem:[%s234 + $0xc8] sm:$0xff]
      %v273 = vld [vmem:[%s234 + $0xd0] sm:$0xff]
      %v274 = vld [vmem:[%s234 + $0xd8] sm:$0xff]
      %v275 = vld [vmem:[%s234 + $0xe0] sm:$0xff]
      %v276 = vld [vmem:[%s234 + $0xe8] sm:$0xff]
      %v277 = vld [vmem:[%s234 + $0xf0] sm:$0xff]
      %v278 = vld [vmem:[%s234 + $0xf8] sm:$0xff]
      %v280 = vlaneseq
      %v281 = vshrl.u32 %v280, 7
      %v282 = vsub.s32 0, %v281
      %v283 = vrot.slane %v245, %v282
      %v285 = vmul.f32 %v247, %v283
      %v286 = vmul.f32 %v248, %v283
      %v287 = vmul.f32 %v249, %v283
      %v288 = vmul.f32 %v250, %v283
      %v289 = vmul.f32 %v251, %v283
      %v290 = vmul.f32 %v252, %v283
      %v291 = vmul.f32 %v253, %v283
      %v292 = vmul.f32 %v254, %v283
      %v293 = vmul.f32 %v255, %v283
      %v294 = vmul.f32 %v256, %v283
      %v295 = vmul.f32 %v257, %v283
      %v296 = vmul.f32 %v258, %v283
      %v297 = vmul.f32 %v259, %v283
      %v298 = vmul.f32 %v260, %v283
      %v299 = vmul.f32 %v261, %v283
      %v300 = vmul.f32 %v262, %v283
      %v301 = vmul.f32 %v263, %v283
      %v302 = vmul.f32 %v264, %v283
      %v303 = vmul.f32 %v265, %v283
      %v304 = vmul.f32 %v266, %v283
      %v305 = vmul.f32 %v267, %v283
      %v306 = vmul.f32 %v268, %v283
      %v307 = vmul.f32 %v269, %v283
      %v308 = vmul.f32 %v270, %v283
      %v309 = vmul.f32 %v271, %v283
      %v310 = vmul.f32 %v272, %v283
      %v311 = vmul.f32 %v273, %v283
      %v312 = vmul.f32 %v274, %v283
      %v313 = vmul.f32 %v275, %v283
      %v314 = vmul.f32 %v276, %v283
      %v315 = vmul.f32 %v277, %v283
      %v316 = vmul.f32 %v278, %v283
      %v318 = vlaneseq
      %v319 = vshrl.u32 %v318, 7
      %v320 = vsub.s32 0, %v319
      %v321 = vrot.slane %v246, %v320
      %v323 = vadd.f32 %v285, %v321
      %v324 = vadd.f32 %v286, %v321
      %v325 = vadd.f32 %v287, %v321
      %v326 = vadd.f32 %v288, %v321
      %v327 = vadd.f32 %v289, %v321
      %v328 = vadd.f32 %v290, %v321
      %v329 = vadd.f32 %v291, %v321
      %v330 = vadd.f32 %v292, %v321
      %v331 = vadd.f32 %v293, %v321
      %v332 = vadd.f32 %v294, %v321
      %v333 = vadd.f32 %v295, %v321
      %v334 = vadd.f32 %v296, %v321
      %v335 = vadd.f32 %v297, %v321
      %v336 = vadd.f32 %v298, %v321
      %v337 = vadd.f32 %v299, %v321
      %v338 = vadd.f32 %v300, %v321
      %v339 = vadd.f32 %v301, %v321
      %v340 = vadd.f32 %v302, %v321
      %v341 = vadd.f32 %v303, %v321
      %v342 = vadd.f32 %v304, %v321
      %v343 = vadd.f32 %v305, %v321
      %v344 = vadd.f32 %v306, %v321
      %v345 = vadd.f32 %v307, %v321
      %v346 = vadd.f32 %v308, %v321
      %v347 = vadd.f32 %v309, %v321
      %v348 = vadd.f32 %v310, %v321
      %v349 = vadd.f32 %v311, %v321
      %v350 = vadd.f32 %v312, %v321
      %v351 = vadd.f32 %v313, %v321
      %v352 = vadd.f32 %v314, %v321
      %v353 = vadd.f32 %v315, %v321
      %v354 = vadd.f32 %v316, %v321
      %v355 = vmax.f32 %v323, 0.0
      %v356 = vmax.f32 %v324, 0.0
      %v357 = vmax.f32 %v325, 0.0
      %v358 = vmax.f32 %v326, 0.0
      %v359 = vmax.f32 %v327, 0.0
      %v360 = vmax.f32 %v328, 0.0
      %v361 = vmax.f32 %v329, 0.0
      %v362 = vmax.f32 %v330, 0.0
      %v363 = vmax.f32 %v331, 0.0
      %v364 = vmax.f32 %v332, 0.0
      %v365 = vmax.f32 %v333, 0.0
      %v366 = vmax.f32 %v334, 0.0
      %v367 = vmax.f32 %v335, 0.0
      %v368 = vmax.f32 %v336, 0.0
      %v369 = vmax.f32 %v337, 0.0
      %v370 = vmax.f32 %v338, 0.0
      %v371 = vmax.f32 %v339, 0.0
      %v372 = vmax.f32 %v340, 0.0
      %v373 = vmax.f32 %v341, 0.0
      %v374 = vmax.f32 %v342, 0.0
      %v375 = vmax.f32 %v343, 0.0
      %v376 = vmax.f32 %v344, 0.0
      %v377 = vmax.f32 %v345, 0.0
      %v378 = vmax.f32 %v346, 0.0
      %v379 = vmax.f32 %v347, 0.0
      %v380 = vmax.f32 %v348, 0.0
      %v381 = vmax.f32 %v349, 0.0
      %v382 = vmax.f32 %v350, 0.0
      %v383 = vmax.f32 %v351, 0.0
      %v384 = vmax.f32 %v352, 0.0
      %v385 = vmax.f32 %v353, 0.0
      %v386 = vmax.f32 %v354, 0.0
      %vm387 = vcmask 130048
      %388 = vst.msk [vmem:[#allocation2] sm:$0xff] %vm387, 0.0
      %389 = vst.msk [vmem:[#allocation2 + $0x8] sm:$0xff] %vm387, 0.0
      %390 = vst.msk [vmem:[#allocation2 + $0x10] sm:$0xff] %vm387, 0.0
      %391 = vst.msk [vmem:[#allocation2 + $0x18] sm:$0xff] %vm387, 0.0
      %392 = vst.msk [vmem:[#allocation2 + $0x20] sm:$0xff] %vm387, 0.0
      %393 = vst.msk [vmem:[#allocation2 + $0x28] sm:$0xff] %vm387, 0.0
      %394 = vst.msk [vmem:[#allocation2 + $0x30] sm:$0xff] %vm387, 0.0
      %395 = vst.msk [vmem:[#allocation2 + $0x38] sm:$0xff] %vm387, 0.0
      %396 = vst.msk [vmem:[#allocation2 + $0x40] sm:$0xff] %vm387, 0.0
      %397 = vst.msk [vmem:[#allocation2 + $0x48] sm:$0xff] %vm387, 0.0
      %398 = vst.msk [vmem:[#allocation2 + $0x50] sm:$0xff] %vm387, 0.0
      %399 = vst.msk [vmem:[#allocation2 + $0x58] sm:$0xff] %vm387, 0.0
      %400 = vst.msk [vmem:[#allocation2 + $0x60] sm:$0xff] %vm387, 0.0
      %401 = vst.msk [vmem:[#allocation2 + $0x68] sm:$0xff] %vm387, 0.0
      %402 = vst.msk [vmem:[#allocation2 + $0x70] sm:$0xff] %vm387, 0.0
      %403 = vst.msk [vmem:[#allocation2 + $0x78] sm:$0xff] %vm387, 0.0
      %404 = vst.msk [vmem:[#allocation2 + $0x80] sm:$0xff] %vm387, 0.0
      %405 = vst.msk [vmem:[#allocation2 + $0x88] sm:$0xff] %vm387, 0.0
      %406 = vst.msk [vmem:[#allocation2 + $0x90] sm:$0xff] %vm387, 0.0
      %407 = vst.msk [vmem:[#allocation2 + $0x98] sm:$0xff] %vm387, 0.0
      %408 = vst.msk [vmem:[#allocation2 + $0xa0] sm:$0xff] %vm387, 0.0
      %409 = vst.msk [vmem:[#allocation2 + $0xa8] sm:$0xff] %vm387, 0.0
      %410 = vst.msk [vmem:[#allocation2 + $0xb0] sm:$0xff] %vm387, 0.0
      %411 = vst.msk [vmem:[#allocation2 + $0xb8] sm:$0xff] %vm387, 0.0
      %412 = vst.msk [vmem:[#allocation2 + $0xc0] sm:$0xff] %vm387, 0.0
      %413 = vst.msk [vmem:[#allocation2 + $0xc8] sm:$0xff] %vm387, 0.0
      %414 = vst.msk [vmem:[#allocation2 + $0xd0] sm:$0xff] %vm387, 0.0
      %415 = vst.msk [vmem:[#allocation2 + $0xd8] sm:$0xff] %vm387, 0.0
      %416 = vst.msk [vmem:[#allocation2 + $0xe0] sm:$0xff] %vm387, 0.0
      %417 = vst.msk [vmem:[#allocation2 + $0xe8] sm:$0xff] %vm387, 0.0
      %418 = vst.msk [vmem:[#allocation2 + $0xf0] sm:$0xff] %vm387, 0.0
      %419 = vst.msk [vmem:[#allocation2 + $0xf8] sm:$0xff] %vm387, 0.0
      %420 = vst.msk [vmem:[#allocation2 + $0x100] sm:$0xff] %vm387, 0.0
      %421 = vst.msk [vmem:[#allocation2 + $0x108] sm:$0xff] %vm387, 0.0
      %422 = vst.msk [vmem:[#allocation2 + $0x110] sm:$0xff] %vm387, 0.0
      %423 = vst.msk [vmem:[#allocation2 + $0x118] sm:$0xff] %vm387, 0.0
      %424 = vst.msk [vmem:[#allocation2 + $0x120] sm:$0xff] %vm387, 0.0
      %425 = vst.msk [vmem:[#allocation2 + $0x128] sm:$0xff] %vm387, 0.0
      %426 = vst.msk [vmem:[#allocation2 + $0x130] sm:$0xff] %vm387, 0.0
      %427 = vst.msk [vmem:[#allocation2 + $0x138] sm:$0xff] %vm387, 0.0
      %428 = vst.msk [vmem:[#allocation2 + $0x140] sm:$0xff] %vm387, 0.0
      %429 = vst.msk [vmem:[#allocation2 + $0x148] sm:$0xff] %vm387, 0.0
      %430 = vst.msk [vmem:[#allocation2 + $0x150] sm:$0xff] %vm387, 0.0
      %431 = vst.msk [vmem:[#allocation2 + $0x158] sm:$0xff] %vm387, 0.0
      %432 = vst.msk [vmem:[#allocation2 + $0x160] sm:$0xff] %vm387, 0.0
      %433 = vst.msk [vmem:[#allocation2 + $0x168] sm:$0xff] %vm387, 0.0
      %434 = vst.msk [vmem:[#allocation2 + $0x170] sm:$0xff] %vm387, 0.0
      %435 = vst.msk [vmem:[#allocation2 + $0x178] sm:$0xff] %vm387, 0.0
      %436 = vst.msk [vmem:[#allocation2 + $0x180] sm:$0xff] %vm387, 0.0
      %437 = vst.msk [vmem:[#allocation2 + $0x188] sm:$0xff] %vm387, 0.0
      %438 = vst.msk [vmem:[#allocation2 + $0x190] sm:$0xff] %vm387, 0.0
      %439 = vst.msk [vmem:[#allocation2 + $0x198] sm:$0xff] %vm387, 0.0
      %440 = vst.msk [vmem:[#allocation2 + $0x1a0] sm:$0xff] %vm387, 0.0
      %441 = vst.msk [vmem:[#allocation2 + $0x1a8] sm:$0xff] %vm387, 0.0
      %442 = vst.msk [vmem:[#allocation2 + $0x1b0] sm:$0xff] %vm387, 0.0
      %443 = vst.msk [vmem:[#allocation2 + $0x1b8] sm:$0xff] %vm387, 0.0
      %444 = vst.msk [vmem:[#allocation2 + $0x1c0] sm:$0xff] %vm387, 0.0
      %445 = vst.msk [vmem:[#allocation2 + $0x1c8] sm:$0xff] %vm387, 0.0
      %446 = vst.msk [vmem:[#allocation2 + $0x1d0] sm:$0xff] %vm387, 0.0
      %447 = vst.msk [vmem:[#allocation2 + $0x1d8] sm:$0xff] %vm387, 0.0
      %448 = vst.msk [vmem:[#allocation2 + $0x1e0] sm:$0xff] %vm387, 0.0
      %449 = vst.msk [vmem:[#allocation2 + $0x1e8] sm:$0xff] %vm387, 0.0
      %450 = vst.msk [vmem:[#allocation2 + $0x1f0] sm:$0xff] %vm387, 0.0
      %451 = vst.msk [vmem:[#allocation2 + $0x1f8] sm:$0xff] %vm387, 0.0
      %452 = vst.msk [vmem:[#allocation2 + $0x200] sm:$0xff] %vm387, 0.0
      %453 = vst.msk [vmem:[#allocation2 + $0x208] sm:$0xff] %vm387, 0.0
      %454 = vst.msk [vmem:[#allocation2 + $0x210] sm:$0xff] %vm387, 0.0
      %455 = vst.msk [vmem:[#allocation2 + $0x218] sm:$0xff] %vm387, 0.0
      %456 = vst.msk [vmem:[#allocation2 + $0x220] sm:$0xff] %vm387, 0.0
      %457 = vst.msk [vmem:[#allocation2 + $0x228] sm:$0xff] %vm387, 0.0
      %458 = vst.msk [vmem:[#allocation2 + $0x230] sm:$0xff] %vm387, 0.0
      %459 = vst.msk [vmem:[#allocation2 + $0x238] sm:$0xff] %vm387, 0.0
      %s460 = scalar_lea.vmem [#allocation2], 32
      %461 = vst.msk [vmem:[%s460 + $0x8] sm:$0xff] %vm387, %v355
      %462 = vst.msk [vmem:[%s460 + $0x10] sm:$0xff] %vm387, %v356
      %463 = vst.msk [vmem:[%s460 + $0x28] sm:$0xff] %vm387, %v357
      %464 = vst.msk [vmem:[%s460 + $0x30] sm:$0xff] %vm387, %v358
      %465 = vst.msk [vmem:[%s460 + $0x48] sm:$0xff] %vm387, %v359
      %466 = vst.msk [vmem:[%s460 + $0x50] sm:$0xff] %vm387, %v360
      %467 = vst.msk [vmem:[%s460 + $0x68] sm:$0xff] %vm387, %v361
      %468 = vst.msk [vmem:[%s460 + $0x70] sm:$0xff] %vm387, %v362
      %469 = vst.msk [vmem:[%s460 + $0x88] sm:$0xff] %vm387, %v363
      %470 = vst.msk [vmem:[%s460 + $0x90] sm:$0xff] %vm387, %v364
      %471 = vst.msk [vmem:[%s460 + $0xa8] sm:$0xff] %vm387, %v365
      %472 = vst.msk [vmem:[%s460 + $0xb0] sm:$0xff] %vm387, %v366
      %473 = vst.msk [vmem:[%s460 + $0xc8] sm:$0xff] %vm387, %v367
      %474 = vst.msk [vmem:[%s460 + $0xd0] sm:$0xff] %vm387, %v368
      %475 = vst.msk [vmem:[%s460 + $0xe8] sm:$0xff] %vm387, %v369
      %476 = vst.msk [vmem:[%s460 + $0xf0] sm:$0xff] %vm387, %v370
      %477 = vst.msk [vmem:[%s460 + $0x108] sm:$0xff] %vm387, %v371
      %478 = vst.msk [vmem:[%s460 + $0x110] sm:$0xff] %vm387, %v372
      %479 = vst.msk [vmem:[%s460 + $0x128] sm:$0xff] %vm387, %v373
      %480 = vst.msk [vmem:[%s460 + $0x130] sm:$0xff] %vm387, %v374
      %481 = vst.msk [vmem:[%s460 + $0x148] sm:$0xff] %vm387, %v375
      %482 = vst.msk [vmem:[%s460 + $0x150] sm:$0xff] %vm387, %v376
      %483 = vst.msk [vmem:[%s460 + $0x168] sm:$0xff] %vm387, %v377
      %484 = vst.msk [vmem:[%s460 + $0x170] sm:$0xff] %vm387, %v378
      %485 = vst.msk [vmem:[%s460 + $0x188] sm:$0xff] %vm387, %v379
      %486 = vst.msk [vmem:[%s460 + $0x190] sm:$0xff] %vm387, %v380
      %487 = vst.msk [vmem:[%s460 + $0x1a8] sm:$0xff] %vm387, %v381
      %488 = vst.msk [vmem:[%s460 + $0x1b0] sm:$0xff] %vm387, %v382
      %489 = vst.msk [vmem:[%s460 + $0x1c8] sm:$0xff] %vm387, %v383
      %490 = vst.msk [vmem:[%s460 + $0x1d0] sm:$0xff] %vm387, %v384
      %491 = vst.msk [vmem:[%s460 + $0x1e8] sm:$0xff] %vm387, %v385
      %492 = vst.msk [vmem:[%s460 + $0x1f0] sm:$0xff] %vm387, %v386
      %v493 = vld [vmem:[#allocation2 + $0x7] sm:$0xff]
      %v494 = vld [vmem:[#allocation2 + $0xf] sm:$0xff]
      %v495 = vld [vmem:[#allocation2 + $0x27] sm:$0xff]
      %v496 = vld [vmem:[#allocation2 + $0x2f] sm:$0xff]
      %v497 = vld [vmem:[#allocation2 + $0x47] sm:$0xff]
      %v498 = vld [vmem:[#allocation2 + $0x4f] sm:$0xff]
      %v499 = vld [vmem:[#allocation2 + $0x67] sm:$0xff]
      %v500 = vld [vmem:[#allocation2 + $0x6f] sm:$0xff]
      %v501 = vld [vmem:[#allocation2 + $0x87] sm:$0xff]
      %v502 = vld [vmem:[#allocation2 + $0x8f] sm:$0xff]
      %v503 = vld [vmem:[#allocation2 + $0xa7] sm:$0xff]
      %v504 = vld [vmem:[#allocation2 + $0xaf] sm:$0xff]
      %v505 = vld [vmem:[#allocation2 + $0xc7] sm:$0xff]
      %v506 = vld [vmem:[#allocation2 + $0xcf] sm:$0xff]
      %v507 = vld [vmem:[#allocation2 + $0xe7] sm:$0xff]
      %v508 = vld [vmem:[#allocation2 + $0xef] sm:$0xff]
      %v509 = vld [vmem:[#allocation2 + $0x107] sm:$0xff]
      %v510 = vld [vmem:[#allocation2 + $0x10f] sm:$0xff]
      %v511 = vld [vmem:[#allocation2 + $0x127] sm:$0xff]
      %v512 = vld [vmem:[#allocation2 + $0x12f] sm:$0xff]
      %v513 = vld [vmem:[#allocation2 + $0x147] sm:$0xff]
      %v514 = vld [vmem:[#allocation2 + $0x14f] sm:$0xff]
      %v515 = vld [vmem:[#allocation2 + $0x167] sm:$0xff]
      %v516 = vld [vmem:[#allocation2 + $0x16f] sm:$0xff]
      %v517 = vld [vmem:[#allocation2 + $0x187] sm:$0xff]
      %v518 = vld [vmem:[#allocation2 + $0x18f] sm:$0xff]
      %v519 = vld [vmem:[#allocation2 + $0x1a7] sm:$0xff]
      %v520 = vld [vmem:[#allocation2 + $0x1af] sm:$0xff]
      %v521 = vld [vmem:[#allocation2 + $0x1c7] sm:$0xff]
      %v522 = vld [vmem:[#allocation2 + $0x1cf] sm:$0xff]
      %v523 = vld [vmem:[#allocation2 + $0x1e7] sm:$0xff]
      %v524 = vld [vmem:[#allocation2 + $0x1ef] sm:$0xff]
      %v525 = vld [vmem:[#allocation2 + $0x8] sm:$0xff]
      %v526 = vld [vmem:[#allocation2 + $0x10] sm:$0xff]
      %v527 = vld [vmem:[#allocation2 + $0x28] sm:$0xff]
      %v528 = vld [vmem:[#allocation2 + $0x30] sm:$0xff]
      %v529 = vld [vmem:[#allocation2 + $0x48] sm:$0xff]
      %v530 = vld [vmem:[#allocation2 + $0x50] sm:$0xff]
      %v531 = vld [vmem:[#allocation2 + $0x68] sm:$0xff]
      %v532 = vld [vmem:[#allocation2 + $0x70] sm:$0xff]
      %v533 = vld [vmem:[#allocation2 + $0x88] sm:$0xff]
      %v534 = vld [vmem:[#allocation2 + $0x90] sm:$0xff]
      %v535 = vld [vmem:[#allocation2 + $0xa8] sm:$0xff]
      %v536 = vld [vmem:[#allocation2 + $0xb0] sm:$0xff]
      %v537 = vld [vmem:[#allocation2 + $0xc8] sm:$0xff]
      %v538 = vld [vmem:[#allocation2 + $0xd0] sm:$0xff]
      %v539 = vld [vmem:[#allocation2 + $0xe8] sm:$0xff]
      %v540 = vld [vmem:[#allocation2 + $0xf0] sm:$0xff]
      %v541 = vld [vmem:[#allocation2 + $0x108] sm:$0xff]
      %v542 = vld [vmem:[#allocation2 + $0x110] sm:$0xff]
      %v543 = vld [vmem:[#allocation2 + $0x128] sm:$0xff]
      %v544 = vld [vmem:[#allocation2 + $0x130] sm:$0xff]
      %v545 = vld [vmem:[#allocation2 + $0x148] sm:$0xff]
      %v546 = vld [vmem:[#allocation2 + $0x150] sm:$0xff]
      %v547 = vld [vmem:[#allocation2 + $0x168] sm:$0xff]
      %v548 = vld [vmem:[#allocation2 + $0x170] sm:$0xff]
      %v549 = vld [vmem:[#allocation2 + $0x188] sm:$0xff]
      %v550 = vld [vmem:[#allocation2 + $0x190] sm:$0xff]
      %v551 = vld [vmem:[#allocation2 + $0x1a8] sm:$0xff]
      %v552 = vld [vmem:[#allocation2 + $0x1b0] sm:$0xff]
      %v553 = vld [vmem:[#allocation2 + $0x1c8] sm:$0xff]
      %v554 = vld [vmem:[#allocation2 + $0x1d0] sm:$0xff]
      %v555 = vld [vmem:[#allocation2 + $0x1e8] sm:$0xff]
      %v556 = vld [vmem:[#allocation2 + $0x1f0] sm:$0xff]
      %v557 = vld [vmem:[#allocation2 + $0x9] sm:$0xff]
      %v558 = vld [vmem:[#allocation2 + $0x11] sm:$0xff]
      %v559 = vld [vmem:[#allocation2 + $0x29] sm:$0xff]
      %v560 = vld [vmem:[#allocation2 + $0x31] sm:$0xff]
      %v561 = vld [vmem:[#allocation2 + $0x49] sm:$0xff]
      %v562 = vld [vmem:[#allocation2 + $0x51] sm:$0xff]
      %v563 = vld [vmem:[#allocation2 + $0x69] sm:$0xff]
      %v564 = vld [vmem:[#allocation2 + $0x71] sm:$0xff]
      %v565 = vld [vmem:[#allocation2 + $0x89] sm:$0xff]
      %v566 = vld [vmem:[#allocation2 + $0x91] sm:$0xff]
      %v567 = vld [vmem:[#allocation2 + $0xa9] sm:$0xff]
      %v568 = vld [vmem:[#allocation2 + $0xb1] sm:$0xff]
      %v569 = vld [vmem:[#allocation2 + $0xc9] sm:$0xff]
      %v570 = vld [vmem:[#allocation2 + $0xd1] sm:$0xff]
      %v571 = vld [vmem:[#allocation2 + $0xe9] sm:$0xff]
      %v572 = vld [vmem:[#allocation2 + $0xf1] sm:$0xff]
      %v573 = vld [vmem:[#allocation2 + $0x109] sm:$0xff]
      %v574 = vld [vmem:[#allocation2 + $0x111] sm:$0xff]
      %v575 = vld [vmem:[#allocation2 + $0x129] sm:$0xff]
      %v576 = vld [vmem:[#allocation2 + $0x131] sm:$0xff]
      %v577 = vld [vmem:[#allocation2 + $0x149] sm:$0xff]
      %v578 = vld [vmem:[#allocation2 + $0x151] sm:$0xff]
      %v579 = vld [vmem:[#allocation2 + $0x169] sm:$0xff]
      %v580 = vld [vmem:[#allocation2 + $0x171] sm:$0xff]
      %v581 = vld [vmem:[#allocation2 + $0x189] sm:$0xff]
      %v582 = vld [vmem:[#allocation2 + $0x191] sm:$0xff]
      %v583 = vld [vmem:[#allocation2 + $0x1a9] sm:$0xff]
      %v584 = vld [vmem:[#allocation2 + $0x1b1] sm:$0xff]
      %v585 = vld [vmem:[#allocation2 + $0x1c9] sm:$0xff]
      %v586 = vld [vmem:[#allocation2 + $0x1d1] sm:$0xff]
      %v587 = vld [vmem:[#allocation2 + $0x1e9] sm:$0xff]
      %v588 = vld [vmem:[#allocation2 + $0x1f1] sm:$0xff]
      %v589 = vld [vmem:[%s460 + $0x7] sm:$0xff]
      %v590 = vld [vmem:[%s460 + $0xf] sm:$0xff]
      %v591 = vld [vmem:[%s460 + $0x27] sm:$0xff]
      %v592 = vld [vmem:[%s460 + $0x2f] sm:$0xff]
      %v593 = vld [vmem:[%s460 + $0x47] sm:$0xff]
      %v594 = vld [vmem:[%s460 + $0x4f] sm:$0xff]
      %v595 = vld [vmem:[%s460 + $0x67] sm:$0xff]
      %v596 = vld [vmem:[%s460 + $0x6f] sm:$0xff]
      %v597 = vld [vmem:[%s460 + $0x87] sm:$0xff]
      %v598 = vld [vmem:[%s460 + $0x8f] sm:$0xff]
      %v599 = vld [vmem:[%s460 + $0xa7] sm:$0xff]
      %v600 = vld [vmem:[%s460 + $0xaf] sm:$0xff]
      %v601 = vld [vmem:[%s460 + $0xc7] sm:$0xff]
      %v602 = vld [vmem:[%s460 + $0xcf] sm:$0xff]
      %v603 = vld [vmem:[%s460 + $0xe7] sm:$0xff]
      %v604 = vld [vmem:[%s460 + $0xef] sm:$0xff]
      %v605 = vld [vmem:[%s460 + $0x107] sm:$0xff]
      %v606 = vld [vmem:[%s460 + $0x10f] sm:$0xff]
      %v607 = vld [vmem:[%s460 + $0x127] sm:$0xff]
      %v608 = vld [vmem:[%s460 + $0x12f] sm:$0xff]
      %v609 = vld [vmem:[%s460 + $0x147] sm:$0xff]
      %v610 = vld [vmem:[%s460 + $0x14f] sm:$0xff]
      %v611 = vld [vmem:[%s460 + $0x167] sm:$0xff]
      %v612 = vld [vmem:[%s460 + $0x16f] sm:$0xff]
      %v613 = vld [vmem:[%s460 + $0x187] sm:$0xff]
      %v614 = vld [vmem:[%s460 + $0x18f] sm:$0xff]
      %v615 = vld [vmem:[%s460 + $0x1a7] sm:$0xff]
      %v616 = vld [vmem:[%s460 + $0x1af] sm:$0xff]
      %v617 = vld [vmem:[%s460 + $0x1c7] sm:$0xff]
      %v618 = vld [vmem:[%s460 + $0x1cf] sm:$0xff]
      %v619 = vld [vmem:[%s460 + $0x1e7] sm:$0xff]
      %v620 = vld [vmem:[%s460 + $0x1ef] sm:$0xff]
      %v621 = vld [vmem:[%s460 + $0x8] sm:$0xff]
      %v622 = vld [vmem:[%s460 + $0x10] sm:$0xff]
      %v623 = vld [vmem:[%s460 + $0x28] sm:$0xff]
      %v624 = vld [vmem:[%s460 + $0x30] sm:$0xff]
      %v625 = vld [vmem:[%s460 + $0x48] sm:$0xff]
      %v626 = vld [vmem:[%s460 + $0x50] sm:$0xff]
      %v627 = vld [vmem:[%s460 + $0x68] sm:$0xff]
      %v628 = vld [vmem:[%s460 + $0x70] sm:$0xff]
      %v629 = vld [vmem:[%s460 + $0x88] sm:$0xff]
      %v630 = vld [vmem:[%s460 + $0x90] sm:$0xff]
      %v631 = vld [vmem:[%s460 + $0xa8] sm:$0xff]
      %v632 = vld [vmem:[%s460 + $0xb0] sm:$0xff]
      %v633 = vld [vmem:[%s460 + $0xc8] sm:$0xff]
      %v634 = vld [vmem:[%s460 + $0xd0] sm:$0xff]
      %v635 = vld [vmem:[%s460 + $0xe8] sm:$0xff]
      %v636 = vld [vmem:[%s460 + $0xf0] sm:$0xff]
      %v637 = vld [vmem:[%s460 + $0x108] sm:$0xff]
      %v638 = vld [vmem:[%s460 + $0x110] sm:$0xff]
      %v639 = vld [vmem:[%s460 + $0x128] sm:$0xff]
      %v640 = vld [vmem:[%s460 + $0x130] sm:$0xff]
      %v641 = vld [vmem:[%s460 + $0x148] sm:$0xff]
      %v642 = vld [vmem:[%s460 + $0x150] sm:$0xff]
      %v643 = vld [vmem:[%s460 + $0x168] sm:$0xff]
      %v644 = vld [vmem:[%s460 + $0x170] sm:$0xff]
      %v645 = vld [vmem:[%s460 + $0x188] sm:$0xff]
      %v646 = vld [vmem:[%s460 + $0x190] sm:$0xff]
      %v647 = vld [vmem:[%s460 + $0x1a8] sm:$0xff]
      %v648 = vld [vmem:[%s460 + $0x1b0] sm:$0xff]
      %v649 = vld [vmem:[%s460 + $0x1c8] sm:$0xff]
      %v650 = vld [vmem:[%s460 + $0x1d0] sm:$0xff]
      %v651 = vld [vmem:[%s460 + $0x1e8] sm:$0xff]
      %v652 = vld [vmem:[%s460 + $0x1f0] sm:$0xff]
      %v653 = vld [vmem:[%s460 + $0x9] sm:$0xff]
      %v654 = vld [vmem:[%s460 + $0x11] sm:$0xff]
      %v655 = vld [vmem:[%s460 + $0x29] sm:$0xff]
      %v656 = vld [vmem:[%s460 + $0x31] sm:$0xff]
      %v657 = vld [vmem:[%s460 + $0x49] sm:$0xff]
      %v658 = vld [vmem:[%s460 + $0x51] sm:$0xff]
      %v659 = vld [vmem:[%s460 + $0x69] sm:$0xff]
      %v660 = vld [vmem:[%s460 + $0x71] sm:$0xff]
      %v661 = vld [vmem:[%s460 + $0x89] sm:$0xff]
      %v662 = vld [vmem:[%s460 + $0x91] sm:$0xff]
      %v663 = vld [vmem:[%s460 + $0xa9] sm:$0xff]
      %v664 = vld [vmem:[%s460 + $0xb1] sm:$0xff]
      %v665 = vld [vmem:[%s460 + $0xc9] sm:$0xff]
      %v666 = vld [vmem:[%s460 + $0xd1] sm:$0xff]
      %v667 = vld [vmem:[%s460 + $0xe9] sm:$0xff]
      %v668 = vld [vmem:[%s460 + $0xf1] sm:$0xff]
      %v669 = vld [vmem:[%s460 + $0x109] sm:$0xff]
      %v670 = vld [vmem:[%s460 + $0x111] sm:$0xff]
      %v671 = vld [vmem:[%s460 + $0x129] sm:$0xff]
      %v672 = vld [vmem:[%s460 + $0x131] sm:$0xff]
      %v673 = vld [vmem:[%s460 + $0x149] sm:$0xff]
      %v674 = vld [vmem:[%s460 + $0x151] sm:$0xff]
      %v675 = vld [vmem:[%s460 + $0x169] sm:$0xff]
      %v676 = vld [vmem:[%s460 + $0x171] sm:$0xff]
      %v677 = vld [vmem:[%s460 + $0x189] sm:$0xff]
      %v678 = vld [vmem:[%s460 + $0x191] sm:$0xff]
      %v679 = vld [vmem:[%s460 + $0x1a9] sm:$0xff]
      %v680 = vld [vmem:[%s460 + $0x1b1] sm:$0xff]
      %v681 = vld [vmem:[%s460 + $0x1c9] sm:$0xff]
      %v682 = vld [vmem:[%s460 + $0x1d1] sm:$0xff]
      %v683 = vld [vmem:[%s460 + $0x1e9] sm:$0xff]
      %v684 = vld [vmem:[%s460 + $0x1f1] sm:$0xff]
      %s685 = scalar_lea.vmem [#allocation2], 64
      %v686 = vld [vmem:[%s685 + $0x7] sm:$0xff]
      %v687 = vld [vmem:[%s685 + $0xf] sm:$0xff]
      %v688 = vld [vmem:[%s685 + $0x27] sm:$0xff]
      %v689 = vld [vmem:[%s685 + $0x2f] sm:$0xff]
      %v690 = vld [vmem:[%s685 + $0x47] sm:$0xff]
      %v691 = vld [vmem:[%s685 + $0x4f] sm:$0xff]
      %v692 = vld [vmem:[%s685 + $0x67] sm:$0xff]
      %v693 = vld [vmem:[%s685 + $0x6f] sm:$0xff]
      %v694 = vld [vmem:[%s685 + $0x87] sm:$0xff]
      %v695 = vld [vmem:[%s685 + $0x8f] sm:$0xff]
      %v696 = vld [vmem:[%s685 + $0xa7] sm:$0xff]
      %v697 = vld [vmem:[%s685 + $0xaf] sm:$0xff]
      %v698 = vld [vmem:[%s685 + $0xc7] sm:$0xff]
      %v699 = vld [vmem:[%s685 + $0xcf] sm:$0xff]
      %v700 = vld [vmem:[%s685 + $0xe7] sm:$0xff]
      %v701 = vld [vmem:[%s685 + $0xef] sm:$0xff]
      %v702 = vld [vmem:[%s685 + $0x107] sm:$0xff]
      %v703 = vld [vmem:[%s685 + $0x10f] sm:$0xff]
      %v704 = vld [vmem:[%s685 + $0x127] sm:$0xff]
      %v705 = vld [vmem:[%s685 + $0x12f] sm:$0xff]
      %v706 = vld [vmem:[%s685 + $0x147] sm:$0xff]
      %v707 = vld [vmem:[%s685 + $0x14f] sm:$0xff]
      %v708 = vld [vmem:[%s685 + $0x167] sm:$0xff]
      %v709 = vld [vmem:[%s685 + $0x16f] sm:$0xff]
      %v710 = vld [vmem:[%s685 + $0x187] sm:$0xff]
      %v711 = vld [vmem:[%s685 + $0x18f] sm:$0xff]
      %v712 = vld [vmem:[%s685 + $0x1a7] sm:$0xff]
      %v713 = vld [vmem:[%s685 + $0x1af] sm:$0xff]
      %v714 = vld [vmem:[%s685 + $0x1c7] sm:$0xff]
      %v715 = vld [vmem:[%s685 + $0x1cf] sm:$0xff]
      %v716 = vld [vmem:[%s685 + $0x1e7] sm:$0xff]
      %v717 = vld [vmem:[%s685 + $0x1ef] sm:$0xff]
      %v718 = vld [vmem:[%s685 + $0x8] sm:$0xff]
      %v719 = vld [vmem:[%s685 + $0x10] sm:$0xff]
      %v720 = vld [vmem:[%s685 + $0x28] sm:$0xff]
      %v721 = vld [vmem:[%s685 + $0x30] sm:$0xff]
      %v722 = vld [vmem:[%s685 + $0x48] sm:$0xff]
      %v723 = vld [vmem:[%s685 + $0x50] sm:$0xff]
      %v724 = vld [vmem:[%s685 + $0x68] sm:$0xff]
      %v725 = vld [vmem:[%s685 + $0x70] sm:$0xff]
      %v726 = vld [vmem:[%s685 + $0x88] sm:$0xff]
      %v727 = vld [vmem:[%s685 + $0x90] sm:$0xff]
      %v728 = vld [vmem:[%s685 + $0xa8] sm:$0xff]
      %v729 = vld [vmem:[%s685 + $0xb0] sm:$0xff]
      %v730 = vld [vmem:[%s685 + $0xc8] sm:$0xff]
      %v731 = vld [vmem:[%s685 + $0xd0] sm:$0xff]
      %v732 = vld [vmem:[%s685 + $0xe8] sm:$0xff]
      %v733 = vld [vmem:[%s685 + $0xf0] sm:$0xff]
      %v734 = vld [vmem:[%s685 + $0x108] sm:$0xff]
      %v735 = vld [vmem:[%s685 + $0x110] sm:$0xff]
      %v736 = vld [vmem:[%s685 + $0x128] sm:$0xff]
      %v737 = vld [vmem:[%s685 + $0x130] sm:$0xff]
      %v738 = vld [vmem:[%s685 + $0x148] sm:$0xff]
      %v739 = vld [vmem:[%s685 + $0x150] sm:$0xff]
      %v740 = vld [vmem:[%s685 + $0x168] sm:$0xff]
      %v741 = vld [vmem:[%s685 + $0x170] sm:$0xff]
      %v742 = vld [vmem:[%s685 + $0x188] sm:$0xff]
      %v743 = vld [vmem:[%s685 + $0x190] sm:$0xff]
      %v744 = vld [vmem:[%s685 + $0x1a8] sm:$0xff]
      %v745 = vld [vmem:[%s685 + $0x1b0] sm:$0xff]
      %v746 = vld [vmem:[%s685 + $0x1c8] sm:$0xff]
      %v747 = vld [vmem:[%s685 + $0x1d0] sm:$0xff]
      %v748 = vld [vmem:[%s685 + $0x1e8] sm:$0xff]
      %v749 = vld [vmem:[%s685 + $0x1f0] sm:$0xff]
      %v750 = vld [vmem:[%s685 + $0x9] sm:$0xff]
      %v751 = vld [vmem:[%s685 + $0x11] sm:$0xff]
      %v752 = vld [vmem:[%s685 + $0x29] sm:$0xff]
      %v753 = vld [vmem:[%s685 + $0x31] sm:$0xff]
      %v754 = vld [vmem:[%s685 + $0x49] sm:$0xff]
      %v755 = vld [vmem:[%s685 + $0x51] sm:$0xff]
      %v756 = vld [vmem:[%s685 + $0x69] sm:$0xff]
      %v757 = vld [vmem:[%s685 + $0x71] sm:$0xff]
      %v758 = vld [vmem:[%s685 + $0x89] sm:$0xff]
      %v759 = vld [vmem:[%s685 + $0x91] sm:$0xff]
      %v760 = vld [vmem:[%s685 + $0xa9] sm:$0xff]
      %v761 = vld [vmem:[%s685 + $0xb1] sm:$0xff]
      %v762 = vld [vmem:[%s685 + $0xc9] sm:$0xff]
      %v763 = vld [vmem:[%s685 + $0xd1] sm:$0xff]
      %v764 = vld [vmem:[%s685 + $0xe9] sm:$0xff]
      %v765 = vld [vmem:[%s685 + $0xf1] sm:$0xff]
      %v766 = vld [vmem:[%s685 + $0x109] sm:$0xff]
      %v767 = vld [vmem:[%s685 + $0x111] sm:$0xff]
      %v768 = vld [vmem:[%s685 + $0x129] sm:$0xff]
      %v769 = vld [vmem:[%s685 + $0x131] sm:$0xff]
      %v770 = vld [vmem:[%s685 + $0x149] sm:$0xff]
      %v771 = vld [vmem:[%s685 + $0x151] sm:$0xff]
      %v772 = vld [vmem:[%s685 + $0x169] sm:$0xff]
      %v773 = vld [vmem:[%s685 + $0x171] sm:$0xff]
      %v774 = vld [vmem:[%s685 + $0x189] sm:$0xff]
      %v775 = vld [vmem:[%s685 + $0x191] sm:$0xff]
      %v776 = vld [vmem:[%s685 + $0x1a9] sm:$0xff]
      %v777 = vld [vmem:[%s685 + $0x1b1] sm:$0xff]
      %v778 = vld [vmem:[%s685 + $0x1c9] sm:$0xff]
      %v779 = vld [vmem:[%s685 + $0x1d1] sm:$0xff]
      %v780 = vld [vmem:[%s685 + $0x1e9] sm:$0xff]
      %v781 = vld [vmem:[%s685 + $0x1f1] sm:$0xff]
      %814 = vrot.lane.b32.xlu0 %v525, 16
      %v815 = vpop.permute.xlu0 %814
      %816 = vrot.lane.b32.xlu0 %v526, 16
      %v817 = vpop.permute.xlu0 %816
      %818 = vrot.lane.b32.xlu0 %v527, 16
      %v819 = vpop.permute.xlu0 %818
      %820 = vrot.lane.b32.xlu0 %v528, 16
      %v821 = vpop.permute.xlu0 %820
      %822 = vrot.lane.b32.xlu0 %v529, 16
      %v823 = vpop.permute.xlu0 %822
      %824 = vrot.lane.b32.xlu0 %v530, 16
      %v825 = vpop.permute.xlu0 %824
      %826 = vrot.lane.b32.xlu0 %v531, 16
      %v827 = vpop.permute.xlu0 %826
      %828 = vrot.lane.b32.xlu0 %v532, 16
      %v829 = vpop.permute.xlu0 %828
      %830 = vrot.lane.b32.xlu0 %v533, 16
      %v831 = vpop.permute.xlu0 %830
      %832 = vrot.lane.b32.xlu0 %v534, 16
      %v833 = vpop.permute.xlu0 %832
      %834 = vrot.lane.b32.xlu0 %v535, 16
      %v835 = vpop.permute.xlu0 %834
      %836 = vrot.lane.b32.xlu0 %v536, 16
      %v837 = vpop.permute.xlu0 %836
      %838 = vrot.lane.b32.xlu0 %v537, 16
      %v839 = vpop.permute.xlu0 %838
      %840 = vrot.lane.b32.xlu0 %v538, 16
      %v841 = vpop.permute.xlu0 %840
      %842 = vrot.lane.b32.xlu0 %v539, 16
      %v843 = vpop.permute.xlu0 %842
      %844 = vrot.lane.b32.xlu0 %v540, 16
      %v845 = vpop.permute.xlu0 %844
      %846 = vrot.lane.b32.xlu0 %v541, 16
      %v847 = vpop.permute.xlu0 %846
      %848 = vrot.lane.b32.xlu0 %v542, 16
      %v849 = vpop.permute.xlu0 %848
      %850 = vrot.lane.b32.xlu0 %v543, 16
      %v851 = vpop.permute.xlu0 %850
      %852 = vrot.lane.b32.xlu0 %v544, 16
      %v853 = vpop.permute.xlu0 %852
      %854 = vrot.lane.b32.xlu0 %v545, 16
      %v855 = vpop.permute.xlu0 %854
      %856 = vrot.lane.b32.xlu0 %v546, 16
      %v857 = vpop.permute.xlu0 %856
      %858 = vrot.lane.b32.xlu0 %v547, 16
      %v859 = vpop.permute.xlu0 %858
      %860 = vrot.lane.b32.xlu0 %v548, 16
      %v861 = vpop.permute.xlu0 %860
      %862 = vrot.lane.b32.xlu0 %v549, 16
      %v863 = vpop.permute.xlu0 %862
      %864 = vrot.lane.b32.xlu0 %v550, 16
      %v865 = vpop.permute.xlu0 %864
      %866 = vrot.lane.b32.xlu0 %v551, 16
      %v867 = vpop.permute.xlu0 %866
      %868 = vrot.lane.b32.xlu0 %v552, 16
      %v869 = vpop.permute.xlu0 %868
      %870 = vrot.lane.b32.xlu0 %v553, 16
      %v871 = vpop.permute.xlu0 %870
      %872 = vrot.lane.b32.xlu0 %v554, 16
      %v873 = vpop.permute.xlu0 %872
      %874 = vrot.lane.b32.xlu0 %v555, 16
      %v875 = vpop.permute.xlu0 %874
      %876 = vrot.lane.b32.xlu0 %v556, 16
      %v877 = vpop.permute.xlu0 %876
      %942 = vrot.lane.b32.xlu0 %v557, 32
      %v943 = vpop.permute.xlu0 %942
      %944 = vrot.lane.b32.xlu0 %v558, 32
      %v945 = vpop.permute.xlu0 %944
      %946 = vrot.lane.b32.xlu0 %v559, 32
      %v947 = vpop.permute.xlu0 %946
      %948 = vrot.lane.b32.xlu0 %v560, 32
      %v949 = vpop.permute.xlu0 %948
      %950 = vrot.lane.b32.xlu0 %v561, 32
      %v951 = vpop.permute.xlu0 %950
      %952 = vrot.lane.b32.xlu0 %v562, 32
      %v953 = vpop.permute.xlu0 %952
      %954 = vrot.lane.b32.xlu0 %v563, 32
      %v955 = vpop.permute.xlu0 %954
      %956 = vrot.lane.b32.xlu0 %v564, 32
      %v957 = vpop.permute.xlu0 %956
      %958 = vrot.lane.b32.xlu0 %v565, 32
      %v959 = vpop.permute.xlu0 %958
      %960 = vrot.lane.b32.xlu0 %v566, 32
      %v961 = vpop.permute.xlu0 %960
      %962 = vrot.lane.b32.xlu0 %v567, 32
      %v963 = vpop.permute.xlu0 %962
      %964 = vrot.lane.b32.xlu0 %v568, 32
      %v965 = vpop.permute.xlu0 %964
      %966 = vrot.lane.b32.xlu0 %v569, 32
      %v967 = vpop.permute.xlu0 %966
      %968 = vrot.lane.b32.xlu0 %v570, 32
      %v969 = vpop.permute.xlu0 %968
      %970 = vrot.lane.b32.xlu0 %v571, 32
      %v971 = vpop.permute.xlu0 %970
      %972 = vrot.lane.b32.xlu0 %v572, 32
      %v973 = vpop.permute.xlu0 %972
      %974 = vrot.lane.b32.xlu0 %v573, 32
      %v975 = vpop.permute.xlu0 %974
      %976 = vrot.lane.b32.xlu0 %v574, 32
      %v977 = vpop.permute.xlu0 %976
      %978 = vrot.lane.b32.xlu0 %v575, 32
      %v979 = vpop.permute.xlu0 %978
      %980 = vrot.lane.b32.xlu0 %v576, 32
      %v981 = vpop.permute.xlu0 %980
      %982 = vrot.lane.b32.xlu0 %v577, 32
      %v983 = vpop.permute.xlu0 %982
      %984 = vrot.lane.b32.xlu0 %v578, 32
      %v985 = vpop.permute.xlu0 %984
      %986 = vrot.lane.b32.xlu0 %v579, 32
      %v987 = vpop.permute.xlu0 %986
      %988 = vrot.lane.b32.xlu0 %v580, 32
      %v989 = vpop.permute.xlu0 %988
      %990 = vrot.lane.b32.xlu0 %v581, 32
      %v991 = vpop.permute.xlu0 %990
      %992 = vrot.lane.b32.xlu0 %v582, 32
      %v993 = vpop.permute.xlu0 %992
      %994 = vrot.lane.b32.xlu0 %v583, 32
      %v995 = vpop.permute.xlu0 %994
      %996 = vrot.lane.b32.xlu0 %v584, 32
      %v997 = vpop.permute.xlu0 %996
      %998 = vrot.lane.b32.xlu0 %v585, 32
      %v999 = vpop.permute.xlu0 %998
      %1000 = vrot.lane.b32.xlu0 %v586, 32
      %v1001 = vpop.permute.xlu0 %1000
      %1002 = vrot.lane.b32.xlu0 %v587, 32
      %v1003 = vpop.permute.xlu0 %1002
      %1004 = vrot.lane.b32.xlu0 %v588, 32
      %v1005 = vpop.permute.xlu0 %1004
      %1070 = vrot.lane.b32.xlu0 %v589, 48
      %v1071 = vpop.permute.xlu0 %1070
      %1072 = vrot.lane.b32.xlu0 %v590, 48
      %v1073 = vpop.permute.xlu0 %1072
      %1074 = vrot.lane.b32.xlu0 %v591, 48
      %v1075 = vpop.permute.xlu0 %1074
      %1076 = vrot.lane.b32.xlu0 %v592, 48
      %v1077 = vpop.permute.xlu0 %1076
      %1078 = vrot.lane.b32.xlu0 %v593, 48
      %v1079 = vpop.permute.xlu0 %1078
      %1080 = vrot.lane.b32.xlu0 %v594, 48
      %v1081 = vpop.permute.xlu0 %1080
      %1082 = vrot.lane.b32.xlu0 %v595, 48
      %v1083 = vpop.permute.xlu0 %1082
      %1084 = vrot.lane.b32.xlu0 %v596, 48
      %v1085 = vpop.permute.xlu0 %1084
      %1086 = vrot.lane.b32.xlu0 %v597, 48
      %v1087 = vpop.permute.xlu0 %1086
      %1088 = vrot.lane.b32.xlu0 %v598, 48
      %v1089 = vpop.permute.xlu0 %1088
      %1090 = vrot.lane.b32.xlu0 %v599, 48
      %v1091 = vpop.permute.xlu0 %1090
      %1092 = vrot.lane.b32.xlu0 %v600, 48
      %v1093 = vpop.permute.xlu0 %1092
      %1094 = vrot.lane.b32.xlu0 %v601, 48
      %v1095 = vpop.permute.xlu0 %1094
      %1096 = vrot.lane.b32.xlu0 %v602, 48
      %v1097 = vpop.permute.xlu0 %1096
      %1098 = vrot.lane.b32.xlu0 %v603, 48
      %v1099 = vpop.permute.xlu0 %1098
      %1100 = vrot.lane.b32.xlu0 %v604, 48
      %v1101 = vpop.permute.xlu0 %1100
      %1102 = vrot.lane.b32.xlu0 %v605, 48
      %v1103 = vpop.permute.xlu0 %1102
      %1104 = vrot.lane.b32.xlu0 %v606, 48
      %v1105 = vpop.permute.xlu0 %1104
      %1106 = vrot.lane.b32.xlu0 %v607, 48
      %v1107 = vpop.permute.xlu0 %1106
      %1108 = vrot.lane.b32.xlu0 %v608, 48
      %v1109 = vpop.permute.xlu0 %1108
      %1110 = vrot.lane.b32.xlu0 %v609, 48
      %v1111 = vpop.permute.xlu0 %1110
      %1112 = vrot.lane.b32.xlu0 %v610, 48
      %v1113 = vpop.permute.xlu0 %1112
      %1114 = vrot.lane.b32.xlu0 %v611, 48
      %v1115 = vpop.permute.xlu0 %1114
      %1116 = vrot.lane.b32.xlu0 %v612, 48
      %v1117 = vpop.permute.xlu0 %1116
      %1118 = vrot.lane.b32.xlu0 %v613, 48
      %v1119 = vpop.permute.xlu0 %1118
      %1120 = vrot.lane.b32.xlu0 %v614, 48
      %v1121 = vpop.permute.xlu0 %1120
      %1122 = vrot.lane.b32.xlu0 %v615, 48
      %v1123 = vpop.permute.xlu0 %1122
      %1124 = vrot.lane.b32.xlu0 %v616, 48
      %v1125 = vpop.permute.xlu0 %1124
      %1126 = vrot.lane.b32.xlu0 %v617, 48
      %v1127 = vpop.permute.xlu0 %1126
      %1128 = vrot.lane.b32.xlu0 %v618, 48
      %v1129 = vpop.permute.xlu0 %1128
      %1130 = vrot.lane.b32.xlu0 %v619, 48
      %v1131 = vpop.permute.xlu0 %1130
      %1132 = vrot.lane.b32.xlu0 %v620, 48
      %v1133 = vpop.permute.xlu0 %1132
      %1198 = vrot.lane.b32.xlu0 %v621, 64
      %v1199 = vpop.permute.xlu0 %1198
      %1200 = vrot.lane.b32.xlu0 %v622, 64
      %v1201 = vpop.permute.xlu0 %1200
      %1202 = vrot.lane.b32.xlu0 %v623, 64
      %v1203 = vpop.permute.xlu0 %1202
      %1204 = vrot.lane.b32.xlu0 %v624, 64
      %v1205 = vpop.permute.xlu0 %1204
      %1206 = vrot.lane.b32.xlu0 %v625, 64
      %v1207 = vpop.permute.xlu0 %1206
      %1208 = vrot.lane.b32.xlu0 %v626, 64
      %v1209 = vpop.permute.xlu0 %1208
      %1210 = vrot.lane.b32.xlu0 %v627, 64
      %v1211 = vpop.permute.xlu0 %1210
      %1212 = vrot.lane.b32.xlu0 %v628, 64
      %v1213 = vpop.permute.xlu0 %1212
      %1214 = vrot.lane.b32.xlu0 %v629, 64
      %v1215 = vpop.permute.xlu0 %1214
      %1216 = vrot.lane.b32.xlu0 %v630, 64
      %v1217 = vpop.permute.xlu0 %1216
      %1218 = vrot.lane.b32.xlu0 %v631, 64
      %v1219 = vpop.permute.xlu0 %1218
      %1220 = vrot.lane.b32.xlu0 %v632, 64
      %v1221 = vpop.permute.xlu0 %1220
      %1222 = vrot.lane.b32.xlu0 %v633, 64
      %v1223 = vpop.permute.xlu0 %1222
      %1224 = vrot.lane.b32.xlu0 %v634, 64
      %v1225 = vpop.permute.xlu0 %1224
      %1226 = vrot.lane.b32.xlu0 %v635, 64
      %v1227 = vpop.permute.xlu0 %1226
      %1228 = vrot.lane.b32.xlu0 %v636, 64
      %v1229 = vpop.permute.xlu0 %1228
      %1230 = vrot.lane.b32.xlu0 %v637, 64
      %v1231 = vpop.permute.xlu0 %1230
      %1232 = vrot.lane.b32.xlu0 %v638, 64
      %v1233 = vpop.permute.xlu0 %1232
      %1234 = vrot.lane.b32.xlu0 %v639, 64
      %v1235 = vpop.permute.xlu0 %1234
      %1236 = vrot.lane.b32.xlu0 %v640, 64
      %v1237 = vpop.permute.xlu0 %1236
      %1238 = vrot.lane.b32.xlu0 %v641, 64
      %v1239 = vpop.permute.xlu0 %1238
      %1240 = vrot.lane.b32.xlu0 %v642, 64
      %v1241 = vpop.permute.xlu0 %1240
      %1242 = vrot.lane.b32.xlu0 %v643, 64
      %v1243 = vpop.permute.xlu0 %1242
      %1244 = vrot.lane.b32.xlu0 %v644, 64
      %v1245 = vpop.permute.xlu0 %1244
      %1246 = vrot.lane.b32.xlu0 %v645, 64
      %v1247 = vpop.permute.xlu0 %1246
      %1248 = vrot.lane.b32.xlu0 %v646, 64
      %v1249 = vpop.permute.xlu0 %1248
      %1250 = vrot.lane.b32.xlu0 %v647, 64
      %v1251 = vpop.permute.xlu0 %1250
      %1252 = vrot.lane.b32.xlu0 %v648, 64
      %v1253 = vpop.permute.xlu0 %1252
      %1254 = vrot.lane.b32.xlu0 %v649, 64
      %v1255 = vpop.permute.xlu0 %1254
      %1256 = vrot.lane.b32.xlu0 %v650, 64
      %v1257 = vpop.permute.xlu0 %1256
      %1258 = vrot.lane.b32.xlu0 %v651, 64
      %v1259 = vpop.permute.xlu0 %1258
      %1260 = vrot.lane.b32.xlu0 %v652, 64
      %v1261 = vpop.permute.xlu0 %1260
      %1326 = vrot.lane.b32.xlu0 %v653, 80
      %v1327 = vpop.permute.xlu0 %1326
      %1328 = vrot.lane.b32.xlu0 %v654, 80
      %v1329 = vpop.permute.xlu0 %1328
      %1330 = vrot.lane.b32.xlu0 %v655, 80
      %v1331 = vpop.permute.xlu0 %1330
      %1332 = vrot.lane.b32.xlu0 %v656, 80
      %v1333 = vpop.permute.xlu0 %1332
      %1334 = vrot.lane.b32.xlu0 %v657, 80
      %v1335 = vpop.permute.xlu0 %1334
      %1336 = vrot.lane.b32.xlu0 %v658, 80
      %v1337 = vpop.permute.xlu0 %1336
      %1338 = vrot.lane.b32.xlu0 %v659, 80
      %v1339 = vpop.permute.xlu0 %1338
      %1340 = vrot.lane.b32.xlu0 %v660, 80
      %v1341 = vpop.permute.xlu0 %1340
      %1342 = vrot.lane.b32.xlu0 %v661, 80
      %v1343 = vpop.permute.xlu0 %1342
      %1344 = vrot.lane.b32.xlu0 %v662, 80
      %v1345 = vpop.permute.xlu0 %1344
      %1346 = vrot.lane.b32.xlu0 %v663, 80
      %v1347 = vpop.permute.xlu0 %1346
      %1348 = vrot.lane.b32.xlu0 %v664, 80
      %v1349 = vpop.permute.xlu0 %1348
      %1350 = vrot.lane.b32.xlu0 %v665, 80
      %v1351 = vpop.permute.xlu0 %1350
      %1352 = vrot.lane.b32.xlu0 %v666, 80
      %v1353 = vpop.permute.xlu0 %1352
      %1354 = vrot.lane.b32.xlu0 %v667, 80
      %v1355 = vpop.permute.xlu0 %1354
      %1356 = vrot.lane.b32.xlu0 %v668, 80
      %v1357 = vpop.permute.xlu0 %1356
      %1358 = vrot.lane.b32.xlu0 %v669, 80
      %v1359 = vpop.permute.xlu0 %1358
      %1360 = vrot.lane.b32.xlu0 %v670, 80
      %v1361 = vpop.permute.xlu0 %1360
      %1362 = vrot.lane.b32.xlu0 %v671, 80
      %v1363 = vpop.permute.xlu0 %1362
      %1364 = vrot.lane.b32.xlu0 %v672, 80
      %v1365 = vpop.permute.xlu0 %1364
      %1366 = vrot.lane.b32.xlu0 %v673, 80
      %v1367 = vpop.permute.xlu0 %1366
      %1368 = vrot.lane.b32.xlu0 %v674, 80
      %v1369 = vpop.permute.xlu0 %1368
      %1370 = vrot.lane.b32.xlu0 %v675, 80
      %v1371 = vpop.permute.xlu0 %1370
      %1372 = vrot.lane.b32.xlu0 %v676, 80
      %v1373 = vpop.permute.xlu0 %1372
      %1374 = vrot.lane.b32.xlu0 %v677, 80
      %v1375 = vpop.permute.xlu0 %1374
      %1376 = vrot.lane.b32.xlu0 %v678, 80
      %v1377 = vpop.permute.xlu0 %1376
      %1378 = vrot.lane.b32.xlu0 %v679, 80
      %v1379 = vpop.permute.xlu0 %1378
      %1380 = vrot.lane.b32.xlu0 %v680, 80
      %v1381 = vpop.permute.xlu0 %1380
      %1382 = vrot.lane.b32.xlu0 %v681, 80
      %v1383 = vpop.permute.xlu0 %1382
      %1384 = vrot.lane.b32.xlu0 %v682, 80
      %v1385 = vpop.permute.xlu0 %1384
      %1386 = vrot.lane.b32.xlu0 %v683, 80
      %v1387 = vpop.permute.xlu0 %1386
      %1388 = vrot.lane.b32.xlu0 %v684, 80
      %v1389 = vpop.permute.xlu0 %1388
      %1454 = vrot.lane.b32.xlu0 %v686, 96
      %v1455 = vpop.permute.xlu0 %1454
      %1456 = vrot.lane.b32.xlu0 %v687, 96
      %v1457 = vpop.permute.xlu0 %1456
      %1458 = vrot.lane.b32.xlu0 %v688, 96
      %v1459 = vpop.permute.xlu0 %1458
      %1460 = vrot.lane.b32.xlu0 %v689, 96
      %v1461 = vpop.permute.xlu0 %1460
      %1462 = vrot.lane.b32.xlu0 %v690, 96
      %v1463 = vpop.permute.xlu0 %1462
      %1464 = vrot.lane.b32.xlu0 %v691, 96
      %v1465 = vpop.permute.xlu0 %1464
      %1466 = vrot.lane.b32.xlu0 %v692, 96
      %v1467 = vpop.permute.xlu0 %1466
      %1468 = vrot.lane.b32.xlu0 %v693, 96
      %v1469 = vpop.permute.xlu0 %1468
      %1470 = vrot.lane.b32.xlu0 %v694, 96
      %v1471 = vpop.permute.xlu0 %1470
      %1472 = vrot.lane.b32.xlu0 %v695, 96
      %v1473 = vpop.permute.xlu0 %1472
      %1474 = vrot.lane.b32.xlu0 %v696, 96
      %v1475 = vpop.permute.xlu0 %1474
      %1476 = vrot.lane.b32.xlu0 %v697, 96
      %v1477 = vpop.permute.xlu0 %1476
      %1478 = vrot.lane.b32.xlu0 %v698, 96
      %v1479 = vpop.permute.xlu0 %1478
      %1480 = vrot.lane.b32.xlu0 %v699, 96
      %v1481 = vpop.permute.xlu0 %1480
      %1482 = vrot.lane.b32.xlu0 %v700, 96
      %v1483 = vpop.permute.xlu0 %1482
      %1484 = vrot.lane.b32.xlu0 %v701, 96
      %v1485 = vpop.permute.xlu0 %1484
      %1486 = vrot.lane.b32.xlu0 %v702, 96
      %v1487 = vpop.permute.xlu0 %1486
      %1488 = vrot.lane.b32.xlu0 %v703, 96
      %v1489 = vpop.permute.xlu0 %1488
      %1490 = vrot.lane.b32.xlu0 %v704, 96
      %v1491 = vpop.permute.xlu0 %1490
      %1492 = vrot.lane.b32.xlu0 %v705, 96
      %v1493 = vpop.permute.xlu0 %1492
      %1494 = vrot.lane.b32.xlu0 %v706, 96
      %v1495 = vpop.permute.xlu0 %1494
      %1496 = vrot.lane.b32.xlu0 %v707, 96
      %v1497 = vpop.permute.xlu0 %1496
      %1498 = vrot.lane.b32.xlu0 %v708, 96
      %v1499 = vpop.permute.xlu0 %1498
      %1500 = vrot.lane.b32.xlu0 %v709, 96
      %v1501 = vpop.permute.xlu0 %1500
      %1502 = vrot.lane.b32.xlu0 %v710, 96
      %v1503 = vpop.permute.xlu0 %1502
      %1504 = vrot.lane.b32.xlu0 %v711, 96
      %v1505 = vpop.permute.xlu0 %1504
      %1506 = vrot.lane.b32.xlu0 %v712, 96
      %v1507 = vpop.permute.xlu0 %1506
      %1508 = vrot.lane.b32.xlu0 %v713, 96
      %v1509 = vpop.permute.xlu0 %1508
      %1510 = vrot.lane.b32.xlu0 %v714, 96
      %v1511 = vpop.permute.xlu0 %1510
      %1512 = vrot.lane.b32.xlu0 %v715, 96
      %v1513 = vpop.permute.xlu0 %1512
      %1514 = vrot.lane.b32.xlu0 %v716, 96
      %v1515 = vpop.permute.xlu0 %1514
      %1516 = vrot.lane.b32.xlu0 %v717, 96
      %v1517 = vpop.permute.xlu0 %1516
      %1582 = vrot.lane.b32.xlu0 %v718, 112
      %v1583 = vpop.permute.xlu0 %1582
      %1584 = vrot.lane.b32.xlu0 %v719, 112
      %v1585 = vpop.permute.xlu0 %1584
      %1586 = vrot.lane.b32.xlu0 %v720, 112
      %v1587 = vpop.permute.xlu0 %1586
      %1588 = vrot.lane.b32.xlu0 %v721, 112
      %v1589 = vpop.permute.xlu0 %1588
      %1590 = vrot.lane.b32.xlu0 %v722, 112
      %v1591 = vpop.permute.xlu0 %1590
      %1592 = vrot.lane.b32.xlu0 %v723, 112
      %v1593 = vpop.permute.xlu0 %1592
      %1594 = vrot.lane.b32.xlu0 %v724, 112
      %v1595 = vpop.permute.xlu0 %1594
      %1596 = vrot.lane.b32.xlu0 %v725, 112
      %v1597 = vpop.permute.xlu0 %1596
      %1598 = vrot.lane.b32.xlu0 %v726, 112
      %v1599 = vpop.permute.xlu0 %1598
      %1600 = vrot.lane.b32.xlu0 %v727, 112
      %v1601 = vpop.permute.xlu0 %1600
      %1602 = vrot.lane.b32.xlu0 %v728, 112
      %v1603 = vpop.permute.xlu0 %1602
      %1604 = vrot.lane.b32.xlu0 %v729, 112
      %v1605 = vpop.permute.xlu0 %1604
      %1606 = vrot.lane.b32.xlu0 %v730, 112
      %v1607 = vpop.permute.xlu0 %1606
      %1608 = vrot.lane.b32.xlu0 %v731, 112
      %v1609 = vpop.permute.xlu0 %1608
      %1610 = vrot.lane.b32.xlu0 %v732, 112
      %v1611 = vpop.permute.xlu0 %1610
      %1612 = vrot.lane.b32.xlu0 %v733, 112
      %v1613 = vpop.permute.xlu0 %1612
      %1614 = vrot.lane.b32.xlu0 %v734, 112
      %v1615 = vpop.permute.xlu0 %1614
      %1616 = vrot.lane.b32.xlu0 %v735, 112
      %v1617 = vpop.permute.xlu0 %1616
      %1618 = vrot.lane.b32.xlu0 %v736, 112
      %v1619 = vpop.permute.xlu0 %1618
      %1620 = vrot.lane.b32.xlu0 %v737, 112
      %v1621 = vpop.permute.xlu0 %1620
      %1622 = vrot.lane.b32.xlu0 %v738, 112
      %v1623 = vpop.permute.xlu0 %1622
      %1624 = vrot.lane.b32.xlu0 %v739, 112
      %v1625 = vpop.permute.xlu0 %1624
      %1626 = vrot.lane.b32.xlu0 %v740, 112
      %v1627 = vpop.permute.xlu0 %1626
      %1628 = vrot.lane.b32.xlu0 %v741, 112
      %v1629 = vpop.permute.xlu0 %1628
      %1630 = vrot.lane.b32.xlu0 %v742, 112
      %v1631 = vpop.permute.xlu0 %1630
      %1632 = vrot.lane.b32.xlu0 %v743, 112
      %v1633 = vpop.permute.xlu0 %1632
      %1634 = vrot.lane.b32.xlu0 %v744, 112
      %v1635 = vpop.permute.xlu0 %1634
      %1636 = vrot.lane.b32.xlu0 %v745, 112
      %v1637 = vpop.permute.xlu0 %1636
      %1638 = vrot.lane.b32.xlu0 %v746, 112
      %v1639 = vpop.permute.xlu0 %1638
      %1640 = vrot.lane.b32.xlu0 %v747, 112
      %v1641 = vpop.permute.xlu0 %1640
      %1642 = vrot.lane.b32.xlu0 %v748, 112
      %v1643 = vpop.permute.xlu0 %1642
      %1644 = vrot.lane.b32.xlu0 %v749, 112
      %v1645 = vpop.permute.xlu0 %1644
      %v1678 = vsel %vm387, %v493, %v815
      %v1679 = vsel %vm387, %v494, %v817
      %v1680 = vsel %vm387, %v495, %v819
      %v1681 = vsel %vm387, %v496, %v821
      %v1682 = vsel %vm387, %v497, %v823
      %v1683 = vsel %vm387, %v498, %v825
      %v1684 = vsel %vm387, %v499, %v827
      %v1685 = vsel %vm387, %v500, %v829
      %v1686 = vsel %vm387, %v501, %v831
      %v1687 = vsel %vm387, %v502, %v833
      %v1688 = vsel %vm387, %v503, %v835
      %v1689 = vsel %vm387, %v504, %v837
      %v1690 = vsel %vm387, %v505, %v839
      %v1691 = vsel %vm387, %v506, %v841
      %v1692 = vsel %vm387, %v507, %v843
      %v1693 = vsel %vm387, %v508, %v845
      %v1694 = vsel %vm387, %v509, %v847
      %v1695 = vsel %vm387, %v510, %v849
      %v1696 = vsel %vm387, %v511, %v851
      %v1697 = vsel %vm387, %v512, %v853
      %v1698 = vsel %vm387, %v513, %v855
      %v1699 = vsel %vm387, %v514, %v857
      %v1700 = vsel %vm387, %v515, %v859
      %v1701 = vsel %vm387, %v516, %v861
      %v1702 = vsel %vm387, %v517, %v863
      %v1703 = vsel %vm387, %v518, %v865
      %v1704 = vsel %vm387, %v519, %v867
      %v1705 = vsel %vm387, %v520, %v869
      %v1706 = vsel %vm387, %v521, %v871
      %v1707 = vsel %vm387, %v522, %v873
      %v1708 = vsel %vm387, %v523, %v875
      %v1709 = vsel %vm387, %v524, %v877
      %vm1710 = vcmask 261120
      %v1711 = vsel %vm1710, %v1678, %v943
      %v1712 = vsel %vm1710, %v1679, %v945
      %v1713 = vsel %vm1710, %v1680, %v947
      %v1714 = vsel %vm1710, %v1681, %v949
      %v1715 = vsel %vm1710, %v1682, %v951
      %v1716 = vsel %vm1710, %v1683, %v953
      %v1717 = vsel %vm1710, %v1684, %v955
      %v1718 = vsel %vm1710, %v1685, %v957
      %v1719 = vsel %vm1710, %v1686, %v959
      %v1720 = vsel %vm1710, %v1687, %v961
      %v1721 = vsel %vm1710, %v1688, %v963
      %v1722 = vsel %vm1710, %v1689, %v965
      %v1723 = vsel %vm1710, %v1690, %v967
      %v1724 = vsel %vm1710, %v1691, %v969
      %v1725 = vsel %vm1710, %v1692, %v971
      %v1726 = vsel %vm1710, %v1693, %v973
      %v1727 = vsel %vm1710, %v1694, %v975
      %v1728 = vsel %vm1710, %v1695, %v977
      %v1729 = vsel %vm1710, %v1696, %v979
      %v1730 = vsel %vm1710, %v1697, %v981
      %v1731 = vsel %vm1710, %v1698, %v983
      %v1732 = vsel %vm1710, %v1699, %v985
      %v1733 = vsel %vm1710, %v1700, %v987
      %v1734 = vsel %vm1710, %v1701, %v989
      %v1735 = vsel %vm1710, %v1702, %v991
      %v1736 = vsel %vm1710, %v1703, %v993
      %v1737 = vsel %vm1710, %v1704, %v995
      %v1738 = vsel %vm1710, %v1705, %v997
      %v1739 = vsel %vm1710, %v1706, %v999
      %v1740 = vsel %vm1710, %v1707, %v1001
      %v1741 = vsel %vm1710, %v1708, %v1003
      %v1742 = vsel %vm1710, %v1709, %v1005
      %vm1743 = vcmask 392192
      %v1744 = vsel %vm1743, %v1711, %v1071
      %v1745 = vsel %vm1743, %v1712, %v1073
      %v1746 = vsel %vm1743, %v1713, %v1075
      %v1747 = vsel %vm1743, %v1714, %v1077
      %v1748 = vsel %vm1743, %v1715, %v1079
      %v1749 = vsel %vm1743, %v1716, %v1081
      %v1750 = vsel %vm1743, %v1717, %v1083
      %v1751 = vsel %vm1743, %v1718, %v1085
      %v1752 = vsel %vm1743, %v1719, %v1087
      %v1753 = vsel %vm1743, %v1720, %v1089
      %v1754 = vsel %vm1743, %v1721, %v1091
      %v1755 = vsel %vm1743, %v1722, %v1093
      %v1756 = vsel %vm1743, %v1723, %v1095
      %v1757 = vsel %vm1743, %v1724, %v1097
      %v1758 = vsel %vm1743, %v1725, %v1099
      %v1759 = vsel %vm1743, %v1726, %v1101
      %v1760 = vsel %vm1743, %v1727, %v1103
      %v1761 = vsel %vm1743, %v1728, %v1105
      %v1762 = vsel %vm1743, %v1729, %v1107
      %v1763 = vsel %vm1743, %v1730, %v1109
      %v1764 = vsel %vm1743, %v1731, %v1111
      %v1765 = vsel %vm1743, %v1732, %v1113
      %v1766 = vsel %vm1743, %v1733, %v1115
      %v1767 = vsel %vm1743, %v1734, %v1117
      %v1768 = vsel %vm1743, %v1735, %v1119
      %v1769 = vsel %vm1743, %v1736, %v1121
      %v1770 = vsel %vm1743, %v1737, %v1123
      %v1771 = vsel %vm1743, %v1738, %v1125
      %v1772 = vsel %vm1743, %v1739, %v1127
      %v1773 = vsel %vm1743, %v1740, %v1129
      %v1774 = vsel %vm1743, %v1741, %v1131
      %v1775 = vsel %vm1743, %v1742, %v1133
      %vm1776 = vcmask 523264
      %v1777 = vsel %vm1776, %v1744, %v1199
      %v1778 = vsel %vm1776, %v1745, %v1201
      %v1779 = vsel %vm1776, %v1746, %v1203
      %v1780 = vsel %vm1776, %v1747, %v1205
      %v1781 = vsel %vm1776, %v1748, %v1207
      %v1782 = vsel %vm1776, %v1749, %v1209
      %v1783 = vsel %vm1776, %v1750, %v1211
      %v1784 = vsel %vm1776, %v1751, %v1213
      %v1785 = vsel %vm1776, %v1752, %v1215
      %v1786 = vsel %vm1776, %v1753, %v1217
      %v1787 = vsel %vm1776, %v1754, %v1219
      %v1788 = vsel %vm1776, %v1755, %v1221
      %v1789 = vsel %vm1776, %v1756, %v1223
      %v1790 = vsel %vm1776, %v1757, %v1225
      %v1791 = vsel %vm1776, %v1758, %v1227
      %v1792 = vsel %vm1776, %v1759, %v1229
      %v1793 = vsel %vm1776, %v1760, %v1231
      %v1794 = vsel %vm1776, %v1761, %v1233
      %v1795 = vsel %vm1776, %v1762, %v1235
      %v1796 = vsel %vm1776, %v1763, %v1237
      %v1797 = vsel %vm1776, %v1764, %v1239
      %v1798 = vsel %vm1776, %v1765, %v1241
      %v1799 = vsel %vm1776, %v1766, %v1243
      %v1800 = vsel %vm1776, %v1767, %v1245
      %v1801 = vsel %vm1776, %v1768, %v1247
      %v1802 = vsel %vm1776, %v1769, %v1249
      %v1803 = vsel %vm1776, %v1770, %v1251
      %v1804 = vsel %vm1776, %v1771, %v1253
      %v1805 = vsel %vm1776, %v1772, %v1255
      %v1806 = vsel %vm1776, %v1773, %v1257
      %v1807 = vsel %vm1776, %v1774, %v1259
      %v1808 = vsel %vm1776, %v1775, %v1261
      %vm1809 = vcmask 654336
      %v1810 = vsel %vm1809, %v1777, %v1327
      %v1811 = vsel %vm1809, %v1778, %v1329
      %v1812 = vsel %vm1809, %v1779, %v1331
      %v1813 = vsel %vm1809, %v1780, %v1333
      %v1814 = vsel %vm1809, %v1781, %v1335
      %v1815 = vsel %vm1809, %v1782, %v1337
      %v1816 = vsel %vm1809, %v1783, %v1339
      %v1817 = vsel %vm1809, %v1784, %v1341
      %v1818 = vsel %vm1809, %v1785, %v1343
      %v1819 = vsel %vm1809, %v1786, %v1345
      %v1820 = vsel %vm1809, %v1787, %v1347
      %v1821 = vsel %vm1809, %v1788, %v1349
      %v1822 = vsel %vm1809, %v1789, %v1351
      %v1823 = vsel %vm1809, %v1790, %v1353
      %v1824 = vsel %vm1809, %v1791, %v1355
      %v1825 = vsel %vm1809, %v1792, %v1357
      %v1826 = vsel %vm1809, %v1793, %v1359
      %v1827 = vsel %vm1809, %v1794, %v1361
      %v1828 = vsel %vm1809, %v1795, %v1363
      %v1829 = vsel %vm1809, %v1796, %v1365
      %v1830 = vsel %vm1809, %v1797, %v1367
      %v1831 = vsel %vm1809, %v1798, %v1369
      %v1832 = vsel %vm1809, %v1799, %v1371
      %v1833 = vsel %vm1809, %v1800, %v1373
      %v1834 = vsel %vm1809, %v1801, %v1375
      %v1835 = vsel %vm1809, %v1802, %v1377
      %v1836 = vsel %vm1809, %v1803, %v1379
      %v1837 = vsel %vm1809, %v1804, %v1381
      %v1838 = vsel %vm1809, %v1805, %v1383
      %v1839 = vsel %vm1809, %v1806, %v1385
      %v1840 = vsel %vm1809, %v1807, %v1387
      %v1841 = vsel %vm1809, %v1808, %v1389
      %vm1842 = vcmask 785408
      %v1843 = vsel %vm1842, %v1810, %v1455
      %v1844 = vsel %vm1842, %v1811, %v1457
      %v1845 = vsel %vm1842, %v1812, %v1459
      %v1846 = vsel %vm1842, %v1813, %v1461
      %v1847 = vsel %vm1842, %v1814, %v1463
      %v1848 = vsel %vm1842, %v1815, %v1465
      %v1849 = vsel %vm1842, %v1816, %v1467
      %v1850 = vsel %vm1842, %v1817, %v1469
      %v1851 = vsel %vm1842, %v1818, %v1471
      %v1852 = vsel %vm1842, %v1819, %v1473
      %v1853 = vsel %vm1842, %v1820, %v1475
      %v1854 = vsel %vm1842, %v1821, %v1477
      %v1855 = vsel %vm1842, %v1822, %v1479
      %v1856 = vsel %vm1842, %v1823, %v1481
      %v1857 = vsel %vm1842, %v1824, %v1483
      %v1858 = vsel %vm1842, %v1825, %v1485
      %v1859 = vsel %vm1842, %v1826, %v1487
      %v1860 = vsel %vm1842, %v1827, %v1489
      %v1861 = vsel %vm1842, %v1828, %v1491
      %v1862 = vsel %vm1842, %v1829, %v1493
      %v1863 = vsel %vm1842, %v1830, %v1495
      %v1864 = vsel %vm1842, %v1831, %v1497
      %v1865 = vsel %vm1842, %v1832, %v1499
      %v1866 = vsel %vm1842, %v1833, %v1501
      %v1867 = vsel %vm1842, %v1834, %v1503
      %v1868 = vsel %vm1842, %v1835, %v1505
      %v1869 = vsel %vm1842, %v1836, %v1507
      %v1870 = vsel %vm1842, %v1837, %v1509
      %v1871 = vsel %vm1842, %v1838, %v1511
      %v1872 = vsel %vm1842, %v1839, %v1513
      %v1873 = vsel %vm1842, %v1840, %v1515
      %v1874 = vsel %vm1842, %v1841, %v1517
      %vm1875 = vcmask 916480
      %v1876 = vsel %vm1875, %v1843, %v1583
      %v1877 = vsel %vm1875, %v1844, %v1585
      %v1878 = vsel %vm1875, %v1845, %v1587
      %v1879 = vsel %vm1875, %v1846, %v1589
      %v1880 = vsel %vm1875, %v1847, %v1591
      %v1881 = vsel %vm1875, %v1848, %v1593
      %v1882 = vsel %vm1875, %v1849, %v1595
      %v1883 = vsel %vm1875, %v1850, %v1597
      %v1884 = vsel %vm1875, %v1851, %v1599
      %v1885 = vsel %vm1875, %v1852, %v1601
      %v1886 = vsel %vm1875, %v1853, %v1603
      %v1887 = vsel %vm1875, %v1854, %v1605
      %v1888 = vsel %vm1875, %v1855, %v1607
      %v1889 = vsel %vm1875, %v1856, %v1609
      %v1890 = vsel %vm1875, %v1857, %v1611
      %v1891 = vsel %vm1875, %v1858, %v1613
      %v1892 = vsel %vm1875, %v1859, %v1615
      %v1893 = vsel %vm1875, %v1860, %v1617
      %v1894 = vsel %vm1875, %v1861, %v1619
      %v1895 = vsel %vm1875, %v1862, %v1621
      %v1896 = vsel %vm1875, %v1863, %v1623
      %v1897 = vsel %vm1875, %v1864, %v1625
      %v1898 = vsel %vm1875, %v1865, %v1627
      %v1899 = vsel %vm1875, %v1866, %v1629
      %v1900 = vsel %vm1875, %v1867, %v1631
      %v1901 = vsel %vm1875, %v1868, %v1633
      %v1902 = vsel %vm1875, %v1869, %v1635
      %v1903 = vsel %vm1875, %v1870, %v1637
      %v1904 = vsel %vm1875, %v1871, %v1639
      %v1905 = vsel %vm1875, %v1872, %v1641
      %v1906 = vsel %vm1875, %v1873, %v1643
      %v1907 = vsel %vm1875, %v1874, %v1645
      %v1908 = vld [vmem:[%s4] sm:$0xff]
      %v1909 = vld [vmem:[%s4 + $0x8] sm:$0xff]
      %v1910 = vld [vmem:[%s4 + $0x10] sm:$0xff]
      %v1911 = vld [vmem:[%s4 + $0x18] sm:$0xff]
      %v1912 = vld [vmem:[%s4 + $0x20] sm:$0xff]
      %v1913 = vld [vmem:[%s4 + $0x28] sm:$0xff]
      %v1914 = vld [vmem:[%s4 + $0x30] sm:$0xff]
      %v1915 = vld [vmem:[%s4 + $0x38] sm:$0xff]
      %v1916 = vld [vmem:[%s4 + $0x40] sm:$0xff]
      %v1917 = vld [vmem:[%s4 + $0x48] sm:$0xff]
      %v1918 = vld [vmem:[%s4 + $0x50] sm:$0xff]
      %v1919 = vld [vmem:[%s4 + $0x58] sm:$0xff]
      %v1920 = vld [vmem:[%s4 + $0x60] sm:$0xff]
      %v1921 = vld [vmem:[%s4 + $0x68] sm:$0xff]
      %v1922 = vld [vmem:[%s4 + $0x70] sm:$0xff]
      %v1923 = vld [vmem:[%s4 + $0x78] sm:$0xff]
      %v1924 = vld [vmem:[%s4 + $0x80] sm:$0xff]
      %v1925 = vld [vmem:[%s4 + $0x88] sm:$0xff]
      %v1927 = vsel %vm387, %v750, 0
      %v1930 = vsel %vm387, %v751, 0
      %v1933 = vsel %vm387, %v752, 0
      %v1936 = vsel %vm387, %v753, 0
      %v1939 = vsel %vm387, %v754, 0
      %v1942 = vsel %vm387, %v755, 0
      %v1945 = vsel %vm387, %v756, 0
      %v1948 = vsel %vm387, %v757, 0
      %v1951 = vsel %vm387, %v758, 0
      %v1954 = vsel %vm387, %v759, 0
      %v1957 = vsel %vm387, %v760, 0
      %v1960 = vsel %vm387, %v761, 0
      %v1963 = vsel %vm387, %v762, 0
      %v1966 = vsel %vm387, %v763, 0
      %v1969 = vsel %vm387, %v764, 0
      %v1972 = vsel %vm387, %v765, 0
      %v1975 = vsel %vm387, %v766, 0
      %v1978 = vsel %vm387, %v767, 0
      %v1981 = vsel %vm387, %v768, 0
      %v1984 = vsel %vm387, %v769, 0
      %v1987 = vsel %vm387, %v770, 0
      %v1990 = vsel %vm387, %v771, 0
      %v1993 = vsel %vm387, %v772, 0
      %v1996 = vsel %vm387, %v773, 0
      %v1999 = vsel %vm387, %v774, 0
      %v2002 = vsel %vm387, %v775, 0
      %v2005 = vsel %vm387, %v776, 0
      %v2008 = vsel %vm387, %v777, 0
      %v2011 = vsel %vm387, %v778, 0
      %v2014 = vsel %vm387, %v779, 0
      %v2017 = vsel %vm387, %v780, 0
      %v2020 = vsel %vm387, %v781, 0
      %2022 = vmatprep.subr.mxu0 0.0
      %2023 = vmatpush1.msra.mxu0 %v1908
      %2024 = vmatprep.subr.mxu0 0.0
      %2025 = vmatpush1.msra.mxu0 %v1909
      %2026 = vmatprep.subr.mxu0 0.0
      %2027 = vmatpush1.msra.mxu0 %v1910
      %2028 = vmatprep.subr.mxu0 0.0
      %2029 = vmatpush1.msra.mxu0 %v1911
      %2030 = vmatprep.subr.mxu0 0.0
      %2031 = vmatpush1.msra.mxu0 %v1912
      %2032 = vmatprep.subr.mxu0 0.0
      %2033 = vmatpush1.msra.mxu0 %v1913
      %2034 = vmatprep.subr.mxu0 0.0
      %2035 = vmatpush1.msra.mxu0 %v1914
      %2036 = vmatprep.subr.mxu0 0.0
      %2037 = vmatpush1.msra.mxu0 %v1915
      %2038 = vmatprep.subr.mxu0 0.0
      %2039 = vmatpush1.msra.mxu0 %v1916
      %2040 = vmatprep.subr.mxu0 0.0
      %2041 = vmatpush1.msra.mxu0 %v1917
      %2042 = vmatprep.subr.mxu0 0.0
      %2043 = vmatpush1.msra.mxu0 %v1918
      %2044 = vmatprep.subr.mxu0 0.0
      %2045 = vmatpush1.msra.mxu0 %v1919
      %2046 = vmatprep.subr.mxu0 0.0
      %2047 = vmatpush1.msra.mxu0 %v1920
      %2048 = vmatprep.subr.mxu0 0.0
      %2049 = vmatpush1.msra.mxu0 %v1921
      %2050 = vmatprep.subr.mxu0 0.0
      %2051 = vmatpush1.msra.mxu0 %v1922
      %2052 = vmatprep.subr.mxu0 0.0
      %2053 = vmatpush1.msra.mxu0 %v1923
      %2054 = vmatprep.subr.mxu0 0.0
      %2055 = vmatpush1.msra.mxu0 %v1924
      %2056 = vmatprep.subr.mxu0 0.0
      %2057 = vmatpush1.msra.mxu0 %v1925
      %2058 = vmatprep.subr.mxu0 0.0
      %2059 = vmatpush1.msra.mxu0 0.0
      %2060 = vmatprep.subr.mxu0 0.0
      %2061 = vmatpush1.msra.mxu0 0.0
      %2062 = vmatprep.subr.mxu0 0.0
      %2063 = vmatpush1.msra.mxu0 0.0
      %2064 = vmatprep.subr.mxu0 0.0
      %2065 = vmatpush1.msra.mxu0 0.0
      %2066 = vmatprep.subr.mxu0 0.0
      %2067 = vmatpush1.msra.mxu0 0.0
      %2068 = vmatprep.subr.mxu0 0.0
      %2069 = vmatpush1.msra.mxu0 0.0
      %2070 = vmatprep.subr.mxu0 0.0
      %2071 = vmatpush1.msra.mxu0 0.0
      %2072 = vmatprep.subr.mxu0 0.0
      %2073 = vmatpush1.msra.mxu0 0.0
      %2074 = vmatprep.subr.mxu0 0.0
      %2075 = vmatpush1.msra.mxu0 0.0
      %2076 = vmatprep.subr.mxu0 0.0
      %2077 = vmatpush1.msra.mxu0 0.0
      %2078 = vmatprep.subr.mxu0 0.0
      %2079 = vmatpush1.msra.mxu0 0.0
      %2080 = vmatprep.subr.mxu0 0.0
      %2081 = vmatpush1.msra.mxu0 0.0
      %2082 = vmatprep.subr.mxu0 0.0
      %2083 = vmatpush1.msra.mxu0 0.0
      %2084 = vmatprep.subr.mxu0 0.0
      %2085 = vmatpush1.msra.mxu0 0.0
      %2086 = vmatprep.mubr.f32.mxu0 %v1927
      %2087 = vmatmul.mubr.f32.gmra.mrb[0].mxu0 %v1876
      %v2088 = vpop.f32.mrb[0].mxu0
      %v2089 = vadd.f32 0.0, %v2088
      %v2090 = vpop.f32.mrb[0].mxu0
      %2091 = vmatprep.mubr.f32.mxu0 %v1930
      %2092 = vmatmul.mubr.f32.gmra.mrb[0].mxu0 %v1877
      %v2093 = vpop.f32.mrb[0].mxu0
      %v2094 = vadd.f32 0.0, %v2093
      %v2095 = vpop.f32.mrb[0].mxu0
      %2096 = vmatprep.mubr.f32.mxu0 %v1933
      %2097 = vmatmul.mubr.f32.gmra.mrb[0].mxu0 %v1878
      %v2098 = vpop.f32.mrb[0].mxu0
      %v2099 = vadd.f32 0.0, %v2098
      %v2100 = vpop.f32.mrb[0].mxu0
      %2101 = vmatprep.mubr.f32.mxu0 %v1936
      %2102 = vmatmul.mubr.f32.gmra.mrb[0].mxu0 %v1879
      %v2103 = vpop.f32.mrb[0].mxu0
      %v2104 = vadd.f32 0.0, %v2103
      %v2105 = vpop.f32.mrb[0].mxu0
      %2106 = vmatprep.mubr.f32.mxu0 %v1939
      %2107 = vmatmul.mubr.f32.gmra.mrb[0].mxu0 %v1880
      %v2108 = vpop.f32.mrb[0].mxu0
      %v2109 = vadd.f32 0.0, %v2108
      %v2110 = vpop.f32.mrb[0].mxu0
      %2111 = vmatprep.mubr.f32.mxu0 %v1942
      %2112 = vmatmul.mubr.f32.gmra.mrb[0].mxu0 %v1881
      %v2113 = vpop.f32.mrb[0].mxu0
      %v2114 = vadd.f32 0.0, %v2113
      %v2115 = vpop.f32.mrb[0].mxu0
      %2116 = vmatprep.mubr.f32.mxu0 %v1945
      %2117 = vmatmul.mubr.f32.gmra.mrb[0].mxu0 %v1882
      %v2118 = vpop.f32.mrb[0].mxu0
      %v2119 = vadd.f32 0.0, %v2118
      %v2120 = vpop.f32.mrb[0].mxu0
      %2121 = vmatprep.mubr.f32.mxu0 %v1948
      %2122 = vmatmul.mubr.f32.gmra.mrb[0].mxu0 %v1883
      %v2123 = vpop.f32.mrb[0].mxu0
      %v2124 = vadd.f32 0.0, %v2123
      %v2125 = vpop.f32.mrb[0].mxu0
      %2126 = vmatprep.mubr.f32.mxu0 %v1951
      %2127 = vmatmul.mubr.f32.gmra.mrb[0].mxu0 %v1884
      %v2128 = vpop.f32.mrb[0].mxu0
      %v2129 = vadd.f32 0.0, %v2128
      %v2130 = vpop.f32.mrb[0].mxu0
      %2131 = vmatprep.mubr.f32.mxu0 %v1954
      %2132 = vmatmul.mubr.f32.gmra.mrb[0].mxu0 %v1885
      %v2133 = vpop.f32.mrb[0].mxu0
      %v2134 = vadd.f32 0.0, %v2133
      %v2135 = vpop.f32.mrb[0].mxu0
      %2136 = vmatprep.mubr.f32.mxu0 %v1957
      %2137 = vmatmul.mubr.f32.gmra.mrb[0].mxu0 %v1886
      %v2138 = vpop.f32.mrb[0].mxu0
      %v2139 = vadd.f32 0.0, %v2138
      %v2140 = vpop.f32.mrb[0].mxu0
      %2141 = vmatprep.mubr.f32.mxu0 %v1960
      %2142 = vmatmul.mubr.f32.gmra.mrb[0].mxu0 %v1887
      %v2143 = vpop.f32.mrb[0].mxu0
      %v2144 = vadd.f32 0.0, %v2143
      %v2145 = vpop.f32.mrb[0].mxu0
      %2146 = vmatprep.mubr.f32.mxu0 %v1963
      %2147 = vmatmul.mubr.f32.gmra.mrb[0].mxu0 %v1888
      %v2148 = vpop.f32.mrb[0].mxu0
      %v2149 = vadd.f32 0.0, %v2148
      %v2150 = vpop.f32.mrb[0].mxu0
      %2151 = vmatprep.mubr.f32.mxu0 %v1966
      %2152 = vmatmul.mubr.f32.gmra.mrb[0].mxu0 %v1889
      %v2153 = vpop.f32.mrb[0].mxu0
      %v2154 = vadd.f32 0.0, %v2153
      %v2155 = vpop.f32.mrb[0].mxu0
      %2156 = vmatprep.mubr.f32.mxu0 %v1969
      %2157 = vmatmul.mubr.f32.gmra.mrb[0].mxu0 %v1890
      %v2158 = vpop.f32.mrb[0].mxu0
      %v2159 = vadd.f32 0.0, %v2158
      %v2160 = vpop.f32.mrb[0].mxu0
      %2161 = vmatprep.mubr.f32.mxu0 %v1972
      %2162 = vmatmul.mubr.f32.gmra.mrb[0].mxu0 %v1891
      %v2163 = vpop.f32.mrb[0].mxu0
      %v2164 = vadd.f32 0.0, %v2163
      %v2165 = vpop.f32.mrb[0].mxu0
      %2166 = vmatprep.mubr.f32.mxu0 %v1975
      %2167 = vmatmul.mubr.f32.gmra.mrb[0].mxu0 %v1892
      %v2168 = vpop.f32.mrb[0].mxu0
      %v2169 = vadd.f32 0.0, %v2168
      %v2170 = vpop.f32.mrb[0].mxu0
      %2171 = vmatprep.mubr.f32.mxu0 %v1978
      %2172 = vmatmul.mubr.f32.gmra.mrb[0].mxu0 %v1893
      %v2173 = vpop.f32.mrb[0].mxu0
      %v2174 = vadd.f32 0.0, %v2173
      %v2175 = vpop.f32.mrb[0].mxu0
      %2176 = vmatprep.mubr.f32.mxu0 %v1981
      %2177 = vmatmul.mubr.f32.gmra.mrb[0].mxu0 %v1894
      %v2178 = vpop.f32.mrb[0].mxu0
      %v2179 = vadd.f32 0.0, %v2178
      %v2180 = vpop.f32.mrb[0].mxu0
      %2181 = vmatprep.mubr.f32.mxu0 %v1984
      %2182 = vmatmul.mubr.f32.gmra.mrb[0].mxu0 %v1895
      %v2183 = vpop.f32.mrb[0].mxu0
      %v2184 = vadd.f32 0.0, %v2183
      %v2185 = vpop.f32.mrb[0].mxu0
      %2186 = vmatprep.mubr.f32.mxu0 %v1987
      %2187 = vmatmul.mubr.f32.gmra.mrb[0].mxu0 %v1896
      %v2188 = vpop.f32.mrb[0].mxu0
      %v2189 = vadd.f32 0.0, %v2188
      %v2190 = vpop.f32.mrb[0].mxu0
      %2191 = vmatprep.mubr.f32.mxu0 %v1990
      %2192 = vmatmul.mubr.f32.gmra.mrb[0].mxu0 %v1897
      %v2193 = vpop.f32.mrb[0].mxu0
      %v2194 = vadd.f32 0.0, %v2193
      %v2195 = vpop.f32.mrb[0].mxu0
      %2196 = vmatprep.mubr.f32.mxu0 %v1993
      %2197 = vmatmul.mubr.f32.gmra.mrb[0].mxu0 %v1898
      %v2198 = vpop.f32.mrb[0].mxu0
      %v2199 = vadd.f32 0.0, %v2198
      %v2200 = vpop.f32.mrb[0].mxu0
      %2201 = vmatprep.mubr.f32.mxu0 %v1996
      %2202 = vmatmul.mubr.f32.gmra.mrb[0].mxu0 %v1899
      %v2203 = vpop.f32.mrb[0].mxu0
      %v2204 = vadd.f32 0.0, %v2203
      %v2205 = vpop.f32.mrb[0].mxu0
      %2206 = vmatprep.mubr.f32.mxu0 %v1999
      %2207 = vmatmul.mubr.f32.gmra.mrb[0].mxu0 %v1900
      %v2208 = vpop.f32.mrb[0].mxu0
      %v2209 = vadd.f32 0.0, %v2208
      %v2210 = vpop.f32.mrb[0].mxu0
      %2211 = vmatprep.mubr.f32.mxu0 %v2002
      %2212 = vmatmul.mubr.f32.gmra.mrb[0].mxu0 %v1901
      %v2213 = vpop.f32.mrb[0].mxu0
      %v2214 = vadd.f32 0.0, %v2213
      %v2215 = vpop.f32.mrb[0].mxu0
      %2216 = vmatprep.mubr.f32.mxu0 %v2005
      %2217 = vmatmul.mubr.f32.gmra.mrb[0].mxu0 %v1902
      %v2218 = vpop.f32.mrb[0].mxu0
      %v2219 = vadd.f32 0.0, %v2218
      %v2220 = vpop.f32.mrb[0].mxu0
      %2221 = vmatprep.mubr.f32.mxu0 %v2008
      %2222 = vmatmul.mubr.f32.gmra.mrb[0].mxu0 %v1903
      %v2223 = vpop.f32.mrb[0].mxu0
      %v2224 = vadd.f32 0.0, %v2223
      %v2225 = vpop.f32.mrb[0].mxu0
      %2226 = vmatprep.mubr.f32.mxu0 %v2011
      %2227 = vmatmul.mubr.f32.gmra.mrb[0].mxu0 %v1904
      %v2228 = vpop.f32.mrb[0].mxu0
      %v2229 = vadd.f32 0.0, %v2228
      %v2230 = vpop.f32.mrb[0].mxu0
      %2231 = vmatprep.mubr.f32.mxu0 %v2014
      %2232 = vmatmul.mubr.f32.gmra.mrb[0].mxu0 %v1905
      %v2233 = vpop.f32.mrb[0].mxu0
      %v2234 = vadd.f32 0.0, %v2233
      %v2235 = vpop.f32.mrb[0].mxu0
      %2236 = vmatprep.mubr.f32.mxu0 %v2017
      %2237 = vmatmul.mubr.f32.gmra.mrb[0].mxu0 %v1906
      %v2238 = vpop.f32.mrb[0].mxu0
      %v2239 = vadd.f32 0.0, %v2238
      %v2240 = vpop.f32.mrb[0].mxu0
      %2241 = vmatprep.mubr.f32.mxu0 %v2020
      %2242 = vmatmul.mubr.f32.gmra.mrb[0].mxu0 %v1907
      %v2243 = vpop.f32.mrb[0].mxu0
      %v2244 = vadd.f32 0.0, %v2243
      %v2245 = vpop.f32.mrb[0].mxu0
      %2246 = vdwg.mxu0
      %v2247 = vld [vmem:[%s239] sm:$0xff]
      %v2248 = vld [vmem:[%s239 + $0x8] sm:$0xff]
      %v2249 = vld [vmem:[%s239 + $0x10] sm:$0xff]
      %v2250 = vld [vmem:[%s239 + $0x18] sm:$0xff]
      %v2251 = vld [vmem:[%s239 + $0x20] sm:$0xff]
      %v2252 = vld [vmem:[%s239 + $0x28] sm:$0xff]
      %v2253 = vld [vmem:[%s239 + $0x30] sm:$0xff]
      %v2254 = vld [vmem:[%s239 + $0x38] sm:$0xff]
      %v2255 = vld [vmem:[%s239 + $0x40] sm:$0xff]
      %v2256 = vld [vmem:[%s239 + $0x48] sm:$0xff]
      %v2257 = vld [vmem:[%s239 + $0x50] sm:$0xff]
      %v2258 = vld [vmem:[%s239 + $0x58] sm:$0xff]
      %v2259 = vld [vmem:[%s239 + $0x60] sm:$0xff]
      %v2260 = vld [vmem:[%s239 + $0x68] sm:$0xff]
      %v2261 = vld [vmem:[%s239 + $0x70] sm:$0xff]
      %v2262 = vld [vmem:[%s239 + $0x78] sm:$0xff]
      %v2263 = vld [vmem:[%s239 + $0x80] sm:$0xff]
      %v2264 = vld [vmem:[%s239 + $0x88] sm:$0xff]
      %v2265 = vld [vmem:[%s239 + $0x90] sm:$0xff]
      %v2266 = vld [vmem:[%s239 + $0x98] sm:$0xff]
      %v2267 = vld [vmem:[%s239 + $0xa0] sm:$0xff]
      %v2268 = vld [vmem:[%s239 + $0xa8] sm:$0xff]
      %v2269 = vld [vmem:[%s239 + $0xb0] sm:$0xff]
      %v2270 = vld [vmem:[%s239 + $0xb8] sm:$0xff]
      %v2271 = vld [vmem:[%s239 + $0xc0] sm:$0xff]
      %v2272 = vld [vmem:[%s239 + $0xc8] sm:$0xff]
      %v2273 = vld [vmem:[%s239 + $0xd0] sm:$0xff]
      %v2274 = vld [vmem:[%s239 + $0xd8] sm:$0xff]
      %v2275 = vld [vmem:[%s239 + $0xe0] sm:$0xff]
      %v2276 = vld [vmem:[%s239 + $0xe8] sm:$0xff]
      %v2277 = vld [vmem:[%s239 + $0xf0] sm:$0xff]
      %v2278 = vld [vmem:[%s239 + $0xf8] sm:$0xff]
      %2311 = vrot.lane.b32.xlu0 %v2089, 8
      %v2312 = vpop.permute.xlu0 %2311
      %2313 = vrot.lane.b32.xlu0 %v2094, 8
      %v2314 = vpop.permute.xlu0 %2313
      %2315 = vrot.lane.b32.xlu0 %v2099, 8
      %v2316 = vpop.permute.xlu0 %2315
      %2317 = vrot.lane.b32.xlu0 %v2104, 8
      %v2318 = vpop.permute.xlu0 %2317
      %2319 = vrot.lane.b32.xlu0 %v2109, 8
      %v2320 = vpop.permute.xlu0 %2319
      %2321 = vrot.lane.b32.xlu0 %v2114, 8
      %v2322 = vpop.permute.xlu0 %2321
      %2323 = vrot.lane.b32.xlu0 %v2119, 8
      %v2324 = vpop.permute.xlu0 %2323
      %2325 = vrot.lane.b32.xlu0 %v2124, 8
      %v2326 = vpop.permute.xlu0 %2325
      %2327 = vrot.lane.b32.xlu0 %v2129, 8
      %v2328 = vpop.permute.xlu0 %2327
      %2329 = vrot.lane.b32.xlu0 %v2134, 8
      %v2330 = vpop.permute.xlu0 %2329
      %2331 = vrot.lane.b32.xlu0 %v2139, 8
      %v2332 = vpop.permute.xlu0 %2331
      %2333 = vrot.lane.b32.xlu0 %v2144, 8
      %v2334 = vpop.permute.xlu0 %2333
      %2335 = vrot.lane.b32.xlu0 %v2149, 8
      %v2336 = vpop.permute.xlu0 %2335
      %2337 = vrot.lane.b32.xlu0 %v2154, 8
      %v2338 = vpop.permute.xlu0 %2337
      %2339 = vrot.lane.b32.xlu0 %v2159, 8
      %v2340 = vpop.permute.xlu0 %2339
      %2341 = vrot.lane.b32.xlu0 %v2164, 8
      %v2342 = vpop.permute.xlu0 %2341
      %2343 = vrot.lane.b32.xlu0 %v2169, 8
      %v2344 = vpop.permute.xlu0 %2343
      %2345 = vrot.lane.b32.xlu0 %v2174, 8
      %v2346 = vpop.permute.xlu0 %2345
      %2347 = vrot.lane.b32.xlu0 %v2179, 8
      %v2348 = vpop.permute.xlu0 %2347
      %2349 = vrot.lane.b32.xlu0 %v2184, 8
      %v2350 = vpop.permute.xlu0 %2349
      %2351 = vrot.lane.b32.xlu0 %v2189, 8
      %v2352 = vpop.permute.xlu0 %2351
      %2353 = vrot.lane.b32.xlu0 %v2194, 8
      %v2354 = vpop.permute.xlu0 %2353
      %2355 = vrot.lane.b32.xlu0 %v2199, 8
      %v2356 = vpop.permute.xlu0 %2355
      %2357 = vrot.lane.b32.xlu0 %v2204, 8
      %v2358 = vpop.permute.xlu0 %2357
      %2359 = vrot.lane.b32.xlu0 %v2209, 8
      %v2360 = vpop.permute.xlu0 %2359
      %2361 = vrot.lane.b32.xlu0 %v2214, 8
      %v2362 = vpop.permute.xlu0 %2361
      %2363 = vrot.lane.b32.xlu0 %v2219, 8
      %v2364 = vpop.permute.xlu0 %2363
      %2365 = vrot.lane.b32.xlu0 %v2224, 8
      %v2366 = vpop.permute.xlu0 %2365
      %2367 = vrot.lane.b32.xlu0 %v2229, 8
      %v2368 = vpop.permute.xlu0 %2367
      %2369 = vrot.lane.b32.xlu0 %v2234, 8
      %v2370 = vpop.permute.xlu0 %2369
      %2371 = vrot.lane.b32.xlu0 %v2239, 8
      %v2372 = vpop.permute.xlu0 %2371
      %2373 = vrot.lane.b32.xlu0 %v2244, 8
      %v2374 = vpop.permute.xlu0 %2373
      %vm2407 = vcmask 64512
      %v2408 = vsel %vm2407, %v2247, %v2312
      %v2409 = vsel %vm2407, %v2248, %v2314
      %v2410 = vsel %vm2407, %v2249, %v2316
      %v2411 = vsel %vm2407, %v2250, %v2318
      %v2412 = vsel %vm2407, %v2251, %v2320
      %v2413 = vsel %vm2407, %v2252, %v2322
      %v2414 = vsel %vm2407, %v2253, %v2324
      %v2415 = vsel %vm2407, %v2254, %v2326
      %v2416 = vsel %vm2407, %v2255, %v2328
      %v2417 = vsel %vm2407, %v2256, %v2330
      %v2418 = vsel %vm2407, %v2257, %v2332
      %v2419 = vsel %vm2407, %v2258, %v2334
      %v2420 = vsel %vm2407, %v2259, %v2336
      %v2421 = vsel %vm2407, %v2260, %v2338
      %v2422 = vsel %vm2407, %v2261, %v2340
      %v2423 = vsel %vm2407, %v2262, %v2342
      %v2424 = vsel %vm2407, %v2263, %v2344
      %v2425 = vsel %vm2407, %v2264, %v2346
      %v2426 = vsel %vm2407, %v2265, %v2348
      %v2427 = vsel %vm2407, %v2266, %v2350
      %v2428 = vsel %vm2407, %v2267, %v2352
      %v2429 = vsel %vm2407, %v2268, %v2354
      %v2430 = vsel %vm2407, %v2269, %v2356
      %v2431 = vsel %vm2407, %v2270, %v2358
      %v2432 = vsel %vm2407, %v2271, %v2360
      %v2433 = vsel %vm2407, %v2272, %v2362
      %v2434 = vsel %vm2407, %v2273, %v2364
      %v2435 = vsel %vm2407, %v2274, %v2366
      %v2436 = vsel %vm2407, %v2275, %v2368
      %v2437 = vsel %vm2407, %v2276, %v2370
      %v2438 = vsel %vm2407, %v2277, %v2372
      %v2439 = vsel %vm2407, %v2278, %v2374
      %vm2440 = vcmask 97280
      %2441 = vst.msk [vmem:[%s244] sm:$0xff] %vm2440, %v2408
      %2442 = vst.msk [vmem:[%s244 + $0x8] sm:$0xff] %vm2440, %v2409
      %2443 = vst.msk [vmem:[%s244 + $0x10] sm:$0xff] %vm2440, %v2410
      %2444 = vst.msk [vmem:[%s244 + $0x18] sm:$0xff] %vm2440, %v2411
      %2445 = vst.msk [vmem:[%s244 + $0x20] sm:$0xff] %vm2440, %v2412
      %2446 = vst.msk [vmem:[%s244 + $0x28] sm:$0xff] %vm2440, %v2413
      %2447 = vst.msk [vmem:[%s244 + $0x30] sm:$0xff] %vm2440, %v2414
      %2448 = vst.msk [vmem:[%s244 + $0x38] sm:$0xff] %vm2440, %v2415
      %2449 = vst.msk [vmem:[%s244 + $0x40] sm:$0xff] %vm2440, %v2416
      %2450 = vst.msk [vmem:[%s244 + $0x48] sm:$0xff] %vm2440, %v2417
      %2451 = vst.msk [vmem:[%s244 + $0x50] sm:$0xff] %vm2440, %v2418
      %2452 = vst.msk [vmem:[%s244 + $0x58] sm:$0xff] %vm2440, %v2419
      %2453 = vst.msk [vmem:[%s244 + $0x60] sm:$0xff] %vm2440, %v2420
      %2454 = vst.msk [vmem:[%s244 + $0x68] sm:$0xff] %vm2440, %v2421
      %2455 = vst.msk [vmem:[%s244 + $0x70] sm:$0xff] %vm2440, %v2422
      %2456 = vst.msk [vmem:[%s244 + $0x78] sm:$0xff] %vm2440, %v2423
      %2457 = vst.msk [vmem:[%s244 + $0x80] sm:$0xff] %vm2440, %v2424
      %2458 = vst.msk [vmem:[%s244 + $0x88] sm:$0xff] %vm2440, %v2425
      %2459 = vst.msk [vmem:[%s244 + $0x90] sm:$0xff] %vm2440, %v2426
      %2460 = vst.msk [vmem:[%s244 + $0x98] sm:$0xff] %vm2440, %v2427
      %2461 = vst.msk [vmem:[%s244 + $0xa0] sm:$0xff] %vm2440, %v2428
      %2462 = vst.msk [vmem:[%s244 + $0xa8] sm:$0xff] %vm2440, %v2429
      %2463 = vst.msk [vmem:[%s244 + $0xb0] sm:$0xff] %vm2440, %v2430
      %2464 = vst.msk [vmem:[%s244 + $0xb8] sm:$0xff] %vm2440, %v2431
      %2465 = vst.msk [vmem:[%s244 + $0xc0] sm:$0xff] %vm2440, %v2432
      %2466 = vst.msk [vmem:[%s244 + $0xc8] sm:$0xff] %vm2440, %v2433
      %2467 = vst.msk [vmem:[%s244 + $0xd0] sm:$0xff] %vm2440, %v2434
      %2468 = vst.msk [vmem:[%s244 + $0xd8] sm:$0xff] %vm2440, %v2435
      %2469 = vst.msk [vmem:[%s244 + $0xe0] sm:$0xff] %vm2440, %v2436
      %2470 = vst.msk [vmem:[%s244 + $0xe8] sm:$0xff] %vm2440, %v2437
      %2471 = vst.msk [vmem:[%s244 + $0xf0] sm:$0xff] %vm2440, %v2438
      %2472 = vst.msk [vmem:[%s244 + $0xf8] sm:$0xff] %vm2440, %v2439
      %p2473 = scmp.lt.s32.totalorder %s16, 1
      %s2474 = scalar_select %p2473, %s16, 1
      %s2475 = smul.addr %s2474, 32
      %s2476 = smul.addr %s2475, 8
      %s2477 = scalar_lea.vmem %s5, %s2476
      // Predicated region
      $region41: #{_lambda_.5} parent=39 // pred_check
        %p2478 = pneg %p149
      $region42: #{_lambda_.5} parent=39 // pred_check_branch
        %2480 = sbr.rel (%p2478) target = $region44
      $region43: #{_lambda_.5} parent=39 // pred_region
        _
      $region44: #{_lambda_.5} parent=39 // pred_fallthru
        _
    $region40: #{_lambda_.5} parent=5 // pred_fallthru
      _
    %p2481 = scmp.le.s32.totalorder 2, %s11
    // Predicated region
    $region45: #{_lambda_.5} parent=5 // pred_check
      %p2482 = pneg %p2481
    $region46: #{_lambda_.5} parent=5 // pred_check_branch
      %2484 = sbr.rel (%p2482) target = $region48
    $region47: #{_lambda_.5} parent=5 // pred_region
      %s2485 = ssub.s32 %s11, 2
      // Predicated region
      $region49: #{_lambda_.5} parent=47 // pred_check
        %p2486 = pneg %p155
      $region50: #{_lambda_.5} parent=47 // pred_check_branch
        %2488 = sbr.rel (%p2486) target = $region52
      $region51: #{_lambda_.5} parent=47 // pred_region
        %p2489 = scmp.lt.s32.totalorder %s17, 1
        %s2490 = scalar_select %p2489, %s17, 1
        %s2491 = smul.addr %s2490, 32
        %s2492 = smul.addr %s2491, 8
        %s2493 = scalar_lea.vmem %s5, %s2492
      $region52: #{_lambda_.5} parent=47 // pred_fallthru
        _
    $region48: #{_lambda_.5} parent=5 // pred_fallthru
      _
  $region6: #{_lambda_.5} parent=0 // loop_footer
    %s15 = sadd.s32 1, %s11
  $region7: #{_lambda_.5} parent=0 // loop_footer_branch
    %10 = sbr.rel target = $region3
  $region8: #{_lambda_.5} parent=0 // loop_exit
    _

</llo_original>
